<compile_context>
chip_gen: v7x
topology: tpu7x:2x2x1
jax: 0.10.0
libtpu: 0.0.40
codegen_flags: <defaults>
</compile_context>

<pallas_src>
import functools

import jax
import jax.numpy as jnp
from jax.experimental import pallas as pl
from jax.experimental.pallas import tpu as pltpu

_LANE = 128


def _round_up(n, m):
    return (n + m - 1) // m * m


def _mlp_kernel(x_ref, w1_ref, b1_ref, w2_ref, b2_ref, o_ref):
    # x arrives as f32 straight from HBM; cast to bf16 here (free VPU filler
    # under the DMA/MXU bound), accumulate both matmuls in f32 on the MXU.
    x = x_ref[...].astype(w1_ref.dtype)
    h = jnp.dot(x, w1_ref[...], preferred_element_type=jnp.float32)
    h = jnp.maximum(h + b1_ref[...], 0.0)
    y = jnp.dot(h.astype(w2_ref.dtype), w2_ref[...],
                preferred_element_type=jnp.float32)
    o_ref[...] = (y + b2_ref[...]).astype(o_ref.dtype)


def prepare_params(w1, b1, w2, b2, weight_dtype=jnp.bfloat16):
    """One-time conversion from PyTorch Linear layout to kernel layout.

    PyTorch layout: w1 (hidden, d_in), b1 (hidden,), w2 (d_out, hidden), b2 (d_out,).
    Kernel layout (zero-padded to lane multiples of 128 on hidden/output):
      w1t (d_in, hidden_p) bf16, b1r (1, hidden_p) f32,
      w2t (hidden_p, d_out_p) bf16, b2r (1, d_out_p) f32.
    d_in is deliberately NOT padded so the activations need no extra HBM pass.
    """
    w1 = jnp.asarray(w1, jnp.float32)
    b1 = jnp.asarray(b1, jnp.float32)
    w2 = jnp.asarray(w2, jnp.float32)
    b2 = jnp.asarray(b2, jnp.float32)
    hidden, d_in = w1.shape
    d_out = w2.shape[0]
    hidden_p = _round_up(hidden, _LANE)
    d_out_p = _round_up(d_out, _LANE)

    # Zero weight columns + zero bias in the padded hidden slots => ReLU(0)=0
    # there, contributing nothing downstream; padded output columns are zero
    # and get sliced off in the wrapper.
    w1t = jnp.zeros((d_in, hidden_p), weight_dtype).at[:, :hidden].set(
        w1.T.astype(weight_dtype))
    b1r = jnp.zeros((1, hidden_p), jnp.float32).at[:, :hidden].set(b1)
    w2t = jnp.zeros((hidden_p, d_out_p), weight_dtype).at[:hidden, :d_out].set(
        w2.T.astype(weight_dtype))
    b2r = jnp.zeros((1, d_out_p), jnp.float32).at[:, :d_out].set(b2)
    return w1t, b1r, w2t, b2r


@functools.partial(jax.jit,
                   static_argnames=("n_outputs", "tile_b", "out_dtype"))
def small_repr_net_forward(x, w1t, b1r, w2t, b2r, *, n_outputs,
                           tile_b=512, out_dtype=jnp.float32):
    """Forward pass. x: (B, ...) flattening to d_in. Params from prepare_params."""
    B = x.shape[0]
    d_in, hidden_p = w1t.shape
    d_out_p = w2t.shape[1]

    x2d = x.reshape(B, -1)              # nn.Flatten(); stays f32, cast in-kernel
    assert x2d.shape[1] == d_in

    # Batch tiling.  No explicit batch padding: Pallas masks the partial last
    # block on load/store, and every output row depends only on its own input
    # row, so garbage in the out-of-bounds rows of a partial tile is harmless
    # (never add a cross-batch reduction to the kernel body).
    if B <= tile_b:
        tb, n_tiles = B, 1              # tiny-batch: single tile, weight-DMA bound
    else:
        tb = tile_b
        n_tiles = pl.cdiv(B, tb)        # >= 2 tiles -> "parallel" axis splits TCs

    out = pl.pallas_call(
        _mlp_kernel,
        out_shape=jax.ShapeDtypeStruct((B, d_out_p), out_dtype),
        grid=(n_tiles,),
        in_specs=[
            pl.BlockSpec((tb, d_in), lambda i: (i, 0)),       # x: batch-tiled, f32
            pl.BlockSpec((d_in, hidden_p), lambda i: (0, 0)),  # W1: VMEM-resident
            pl.BlockSpec((1, hidden_p), lambda i: (0, 0)),     # b1: resident
            pl.BlockSpec((hidden_p, d_out_p), lambda i: (0, 0)),  # W2: resident
            pl.BlockSpec((1, d_out_p), lambda i: (0, 0)),      # b2: resident
        ],
        out_specs=pl.BlockSpec((tb, d_out_p), lambda i: (i, 0)),
        compiler_params=pltpu.CompilerParams(
            dimension_semantics=("parallel",),
            vmem_limit_bytes=32 << 20,  # <= half a v7x core; trivial on v5e/v6e
        ),
    )(x2d, w1t, b1r, w2t, b2r)

    # Only the padded output columns need slicing; rows are already exact.
    return out[:, :n_outputs] if n_outputs != d_out_p else out


def init_params(key, n_inputs=784, n_outputs=784):
    hidden = max(n_outputs, 600)
    k1, k2, k3, k4 = jax.random.split(key, 4)
    # Mimics PyTorch Linear's uniform(-1/sqrt(fan_in), +1/sqrt(fan_in)) init.
    lim1 = 1.0 / float(n_inputs) ** 0.5
    lim2 = 1.0 / float(hidden) ** 0.5
    w1 = jax.random.uniform(k1, (hidden, n_inputs), jnp.float32, -lim1, lim1)
    b1 = jax.random.uniform(k2, (hidden,), jnp.float32, -lim1, lim1)
    w2 = jax.random.uniform(k3, (n_outputs, hidden), jnp.float32, -lim2, lim2)
    b2 = jax.random.uniform(k4, (n_outputs,), jnp.float32, -lim2, lim2)
    return w1, b1, w2, b2


def _check(y, x, w1, b1, w2, b2, w1t, b1r, w2t, b2r, n_outputs):
    B = x.shape[0]
    x2d = x.reshape(B, -1)
    # Reference 1: full-f32 PyTorch math (loose tol: bf16 weights/activations).
    ref_f32 = jnp.maximum(x2d @ w1.T + b1, 0.0) @ w2.T + b2
    assert jnp.allclose(y, ref_f32, atol=5e-2, rtol=5e-2), float(
        jnp.max(jnp.abs(y - ref_f32)))
    # Reference 2: same mixed precision / padding as the kernel (tight tol).
    h_ref = jnp.dot(x2d.astype(jnp.bfloat16), w1t,
                    preferred_element_type=jnp.float32) + b1r
    h_ref = jnp.maximum(h_ref, 0.0).astype(jnp.bfloat16)
    ref_mp = (jnp.dot(h_ref, w2t, preferred_element_type=jnp.float32)
              + b2r)[:, :n_outputs]
    assert jnp.allclose(y, ref_mp, atol=1e-3, rtol=1e-3), float(
        jnp.max(jnp.abs(y - ref_mp)))


if __name__ == "__main__":
    key = jax.random.PRNGKey(0)
    kx, kx2, kp = jax.random.split(key, 3)

    n_inputs, n_outputs = 784, 784              # module defaults (28*28)
    B = 2
    # NCHW input, as PyTorch would receive it; flatten happens in the wrapper.
    x = jax.random.normal(kx, (B, 1, 28, 28), jnp.float32)
    w1, b1, w2, b2 = init_params(kp, n_inputs, n_outputs)

    # One-time layout/dtype/padding prep (NOT part of the per-call path).
    w1t, b1r, w2t, b2r = prepare_params(w1, b1, w2, b2)

    # Tiny-batch path (single tile).
    y = small_repr_net_forward(x, w1t, b1r, w2t, b2r, n_outputs=n_outputs)
    y = jax.block_until_ready(y)
    assert y.shape == (B, n_outputs)
    assert y.dtype == jnp.float32
    _check(y, x, w1, b1, w2, b2, w1t, b1r, w2t, b2r, n_outputs)

    # Multi-tile path with a ragged last block (exercises the no-pad masking).
    B2 = 520
    x2 = jax.random.normal(kx2, (B2, 1, 28, 28), jnp.float32)
    y2 = small_repr_net_forward(x2, w1t, b1r, w2t, b2r, n_outputs=n_outputs)
    y2 = jax.block_until_ready(y2)
    assert y2.shape == (B2, n_outputs)
    _check(y2, x2, w1, b1, w2, b2, w1t, b1r, w2t, b2r, n_outputs)

    print("KERNEL_OK")
</pallas_src>

<mosaic_0001>
module attributes {stable_mosaic.version = 11 : i64} {
  func.func @_mlp_kernel(%arg0: i32, %arg1: memref<2x784xf32, #tpu.memory_space<vmem>>, %arg2: memref<784x896xbf16, #tpu.memory_space<vmem>>, %arg3: memref<1x896xf32, #tpu.memory_space<vmem>>, %arg4: memref<896x896xbf16, #tpu.memory_space<vmem>>, %arg5: memref<1x896xf32, #tpu.memory_space<vmem>>, %arg6: memref<2x896xf32, #tpu.memory_space<vmem>>) attributes {dimension_semantics = [#tpu.dimension_semantics<parallel>], iteration_bounds = array<i64: 1>, scalar_prefetch = 0 : i64, scratch_operands = 0 : i64, tpu.core_type = #tpu.core_type<tc>, window_params = [{transform_indices = @transform_0, window_bounds = array<i64: 2, 784>}, {pipeline_mode = #tpu.pipeline_mode<synchronous>, transform_indices = @transform_1, window_bounds = array<i64: 784, 896>}, {pipeline_mode = #tpu.pipeline_mode<synchronous>, transform_indices = @transform_2, window_bounds = array<i64: 1, 896>}, {pipeline_mode = #tpu.pipeline_mode<synchronous>, transform_indices = @transform_3, window_bounds = array<i64: 896, 896>}, {pipeline_mode = #tpu.pipeline_mode<synchronous>, transform_indices = @transform_4, window_bounds = array<i64: 1, 896>}, {transform_indices = @transform_5, window_bounds = array<i64: 2, 896>}]} {
    %c0 = arith.constant 0 : index
    %c0_0 = arith.constant 0 : index
    %0 = vector.load %arg1[%c0, %c0_0] : memref<2x784xf32, #tpu.memory_space<vmem>>, vector<2x784xf32>
    %1 = arith.truncf %0 : vector<2x784xf32> to vector<2x784xbf16>
    %c0_1 = arith.constant 0 : index
    %c0_2 = arith.constant 0 : index
    %2 = vector.load %arg2[%c0_1, %c0_2] : memref<784x896xbf16, #tpu.memory_space<vmem>>, vector<784x896xbf16>
    %cst = arith.constant dense<0.000000e+00> : vector<2x896xf32>
    %3 = tpu.matmul %1, %2, %cst {dimension_numbers = #tpu.dot_dimension_numbers<[1], [0], [0], [1], [0, 0, 1, 1], [], []>} : vector<2x784xbf16>, vector<784x896xbf16>, vector<2x896xf32> -> vector<2x896xf32>
    %c0_3 = arith.constant 0 : index
    %c0_4 = arith.constant 0 : index
    %4 = vector.load %arg3[%c0_3, %c0_4] : memref<1x896xf32, #tpu.memory_space<vmem>>, vector<1x896xf32>
    %5 = vector.broadcast %4 : vector<1x896xf32> to vector<2x896xf32>
    %6 = arith.addf %3, %5 : vector<2x896xf32>
    %cst_5 = arith.constant 0.000000e+00 : f32
    %7 = vector.broadcast %cst_5 : f32 to vector<2x896xf32>
    %8 = arith.maximumf %6, %7 : vector<2x896xf32>
    %9 = arith.truncf %8 : vector<2x896xf32> to vector<2x896xbf16>
    %c0_6 = arith.constant 0 : index
    %c0_7 = arith.constant 0 : index
    %10 = vector.load %arg4[%c0_6, %c0_7] : memref<896x896xbf16, #tpu.memory_space<vmem>>, vector<896x896xbf16>
    %cst_8 = arith.constant dense<0.000000e+00> : vector<2x896xf32>
    %11 = tpu.matmul %9, %10, %cst_8 {dimension_numbers = #tpu.dot_dimension_numbers<[1], [0], [0], [1], [0, 0, 1, 1], [], []>} : vector<2x896xbf16>, vector<896x896xbf16>, vector<2x896xf32> -> vector<2x896xf32>
    %c0_9 = arith.constant 0 : index
    %c0_10 = arith.constant 0 : index
    %12 = vector.load %arg5[%c0_9, %c0_10] : memref<1x896xf32, #tpu.memory_space<vmem>>, vector<1x896xf32>
    %13 = vector.broadcast %12 : vector<1x896xf32> to vector<2x896xf32>
    %14 = arith.addf %11, %13 : vector<2x896xf32>
    %c0_11 = arith.constant 0 : index
    %c0_12 = arith.constant 0 : index
    %15 = vector.load %arg6[%c0_11, %c0_12] : memref<2x896xf32, #tpu.memory_space<vmem>>, vector<2x896xf32>
    tpu.vector_store %arg6[%c0_11, %c0_12], %14 {strides = array<i32>} : memref<2x896xf32, #tpu.memory_space<vmem>>, vector<2x896xf32>,
    return
  }
  func.func @transform_0(%arg0: i32) -> (i32, i32) {
    %c0_i32 = arith.constant 0 : i32
    %c0_i32_0 = arith.constant 0 : i32
    return %arg0, %c0_i32 : i32, i32
  }
  func.func @transform_1(%arg0: i32) -> (i32, i32) {
    %c0_i32 = arith.constant 0 : i32
    %c0_i32_0 = arith.constant 0 : i32
    %c0_i32_1 = arith.constant 0 : i32
    return %c0_i32, %c0_i32_0 : i32, i32
  }
  func.func @transform_2(%arg0: i32) -> (i32, i32) {
    %c0_i32 = arith.constant 0 : i32
    %c0_i32_0 = arith.constant 0 : i32
    %c0_i32_1 = arith.constant 0 : i32
    return %c0_i32, %c0_i32_0 : i32, i32
  }
  func.func @transform_3(%arg0: i32) -> (i32, i32) {
    %c0_i32 = arith.constant 0 : i32
    %c0_i32_0 = arith.constant 0 : i32
    %c0_i32_1 = arith.constant 0 : i32
    return %c0_i32, %c0_i32_0 : i32, i32
  }
  func.func @transform_4(%arg0: i32) -> (i32, i32) {
    %c0_i32 = arith.constant 0 : i32
    %c0_i32_0 = arith.constant 0 : i32
    %c0_i32_1 = arith.constant 0 : i32
    return %c0_i32, %c0_i32_0 : i32, i32
  }
  func.func @transform_5(%arg0: i32) -> (i32, i32) {
    %c0_i32 = arith.constant 0 : i32
    %c0_i32_0 = arith.constant 0 : i32
    return %arg0, %c0_i32 : i32, i32
  }
}

</mosaic_0001>

<llo_original>
// kernel: small_repr_net_forward.1
$region0: #{small_repr_net_forward.1}
  #allocation0 [shape = 'u32[]', space=smem, size = 0x4, offset = 0x4, fixed_abs, tag = 'smem constant byte address 0x4 - core index']
  #allocation1 [shape = 'u32[144,128]{1,0:T(1,128)}', space=vmem, size = 0x12000, scoped, tag = 'internal scratch']
  %s0 = inlined_call_operand.vmem [shape: f32[2,784], index: 0, kind: input, shape index: {}]
  %s1 = inlined_call_operand.hbm [shape: bf16[784,896], index: 1, kind: input, shape index: {}]
  %s2 = inlined_call_operand.hbm [shape: f32[1,896], index: 2, kind: input, shape index: {}]
  %s3 = inlined_call_operand.hbm [shape: bf16[896,896], index: 3, kind: input, shape index: {}]
  %s4 = inlined_call_operand.hbm [shape: f32[1,896], index: 4, kind: input, shape index: {}]
  %s5 = inlined_call_operand.hbm [shape: f32[2,896], index: 5, kind: output, shape index: {}]
  %s6 = sld [smem:[#allocation0]]
  $region46: #{small_repr_net_forward.1} parent=0
    _
  %s8 = ssub.s32 1, %s6
  %s9 = scalar_select 0, %s8, %s6
  $region1: #{small_repr_net_forward.1} parent=0
    #allocation2 [shape = 'u8[1404928]{0}', space=vmem, size = 0x157000, scoped, tag = 'input window, operand 1, single buffered']
    #allocation3 [shape = 's32[1]{0}', space=sflag, size = 0x4, scoped, tag = 'scoped memory for small_repr_net_forward.1']
    #allocation4 [shape = 's32[1]{0}', space=sflag, size = 0x4, scoped, tag = 'scoped memory for small_repr_net_forward.1']
    #allocation5 [shape = 'u8[3584]{0}', space=vmem, size = 0x1000, scoped, tag = 'input window, operand 2, single buffered']
    #allocation6 [shape = 's32[1]{0}', space=sflag, size = 0x4, scoped, tag = 'scoped memory for small_repr_net_forward.1']
    #allocation7 [shape = 'u8[1605632]{0}', space=vmem, size = 0x188000, scoped, tag = 'input window, operand 3, single buffered']
    #allocation8 [shape = 'u8[3584]{0}', space=vmem, size = 0x1000, scoped, tag = 'input window, operand 4, single buffered']
    #allocation9 [shape = 's32[1]{0}', space=sflag, size = 0x4, scoped, tag = 'scoped memory for small_repr_net_forward.1']
    #allocation10 [shape = 'u8[7168]{0}', space=vmem, size = 0x1c00, scoped, tag = 'output window, operand 0, single buffered']
    %10 = vsyncpa [#allocation3], 0
    %11 = vsyncpa [#allocation6], 0
    %12 = vsyncpa [#allocation9], 0
    %13 = vsyncpa [#allocation4], 0
    // Predicated region
    $region2: #{small_repr_net_forward.1} parent=1 // pred_check
      _
    $region3: #{small_repr_net_forward.1} parent=1 // pred_check_branch
      %15 = sbr.rel (0) target = $region5
    $region4: #{small_repr_net_forward.1} parent=1 // pred_region
      _
    $region5: #{small_repr_net_forward.1} parent=1 // pred_fallthru
      _
    // Predicated region
    $region6: #{small_repr_net_forward.1} parent=1 // pred_check
      _
    $region7: #{small_repr_net_forward.1} parent=1 // pred_check_branch
      %17 = sbr.rel (0) target = $region9
    $region8: #{small_repr_net_forward.1} parent=1 // pred_region
      %s19 = ssub.s32 43904, 43904
      %20 = vsyncadd [#allocation3], %s19
      %s21 = sshll.u32 [#allocation2], 4
      %s22 = int_to_ptr.vmem [resolvable:$true] %s21
      %27 = dma.hbm_to_vmem [thread:$0]  %s1, 43904, %s22, [#allocation3], 448, 448, 28
    $region9: #{small_repr_net_forward.1} parent=1 // pred_fallthru
      _
    // Predicated region
    $region10: #{small_repr_net_forward.1} parent=1 // pred_check
      _
    $region11: #{small_repr_net_forward.1} parent=1 // pred_check_branch
      %29 = sbr.rel (0) target = $region13
    $region12: #{small_repr_net_forward.1} parent=1 // pred_region
      %s31 = ssub.s32 112, 112
      %32 = vsyncadd [#allocation6], %s31
      %s34 = sshll.u32 [#allocation5], 4
      %s35 = int_to_ptr.vmem [resolvable:$true] %s34
      %37 = dma.hbm_to_vmem [thread:$0]  %s2, 112, %s35, [#allocation6]
    $region13: #{small_repr_net_forward.1} parent=1 // pred_fallthru
      _
    // Predicated region
    $region14: #{small_repr_net_forward.1} parent=1 // pred_check
      _
    $region15: #{small_repr_net_forward.1} parent=1 // pred_check_branch
      %39 = sbr.rel (0) target = $region17
    $region16: #{small_repr_net_forward.1} parent=1 // pred_region
      %s41 = ssub.s32 50176, 50176
      %42 = vsyncadd [#allocation6], %s41
      %s43 = sshll.u32 [#allocation7], 4
      %s44 = int_to_ptr.vmem [resolvable:$true] %s43
      %49 = dma.hbm_to_vmem [thread:$0]  %s3, 50176, %s44, [#allocation6], 448, 448, 28
    $region17: #{small_repr_net_forward.1} parent=1 // pred_fallthru
      _
    // Predicated region
    $region18: #{small_repr_net_forward.1} parent=1 // pred_check
      _
    $region19: #{small_repr_net_forward.1} parent=1 // pred_check_branch
      %51 = sbr.rel (0) target = $region21
    $region20: #{small_repr_net_forward.1} parent=1 // pred_region
      %s53 = ssub.s32 112, 112
      %54 = vsyncadd [#allocation9], %s53
      %s56 = sshll.u32 [#allocation8], 4
      %s57 = int_to_ptr.vmem [resolvable:$true] %s56
      %59 = dma.hbm_to_vmem [thread:$0]  %s4, 112, %s57, [#allocation9]
    $region21: #{small_repr_net_forward.1} parent=1 // pred_fallthru
      _
    // Predicated region
    $region22: #{small_repr_net_forward.1} parent=1 // pred_check
      _
    $region23: #{small_repr_net_forward.1} parent=1 // pred_check_branch
      %61 = sbr.rel (0) target = $region25
    $region24: #{small_repr_net_forward.1} parent=1 // pred_region
      %62 = dma.done [#allocation3], 43904
    $region25: #{small_repr_net_forward.1} parent=1 // pred_fallthru
      _
    // Predicated region
    $region26: #{small_repr_net_forward.1} parent=1 // pred_check
      _
    $region27: #{small_repr_net_forward.1} parent=1 // pred_check_branch
      %64 = sbr.rel (0) target = $region29
    $region28: #{small_repr_net_forward.1} parent=1 // pred_region
      %65 = dma.done [#allocation6], 112
    $region29: #{small_repr_net_forward.1} parent=1 // pred_fallthru
      _
    // Predicated region
    $region30: #{small_repr_net_forward.1} parent=1 // pred_check
      _
    $region31: #{small_repr_net_forward.1} parent=1 // pred_check_branch
      %67 = sbr.rel (0) target = $region33
    $region32: #{small_repr_net_forward.1} parent=1 // pred_region
      %68 = dma.done [#allocation6], 50176
    $region33: #{small_repr_net_forward.1} parent=1 // pred_fallthru
      _
    // Predicated region
    $region34: #{small_repr_net_forward.1} parent=1 // pred_check
      _
    $region35: #{small_repr_net_forward.1} parent=1 // pred_check_branch
      %70 = sbr.rel (0) target = $region37
    $region36: #{small_repr_net_forward.1} parent=1 // pred_region
      %71 = dma.done [#allocation9], 112
    $region37: #{small_repr_net_forward.1} parent=1 // pred_fallthru
      _
    %v73 = vld [vmem:[%s0] sm:$0xff]
    %v74 = vld [vmem:[%s0 + $0x8] sm:$0x3f]
    %v77 = vcombine.high %v73, %v73
    %v79 = vunpack.c.l.s4 1983009808
    %v80 = vunpack.c.0.s8 %v79
    %v81 = vlaneseq
    %v82 = vshrl.u32 %v81, 7
    %v83 = vsub.s32 %v80, %v82
    %v84 = vrot.slane %v73, %v83
    %v86 = vunpack.c.l.s4 1983009808
    %v87 = vunpack.c.0.s8 %v86
    %v88 = vlaneseq
    %v89 = vshrl.u32 %v88, 7
    %v90 = vsub.s32 %v87, %v89
    %v91 = vrot.slane %v77, %v90
    %v92 = vcombine.high %v84, %v84
    %v93 = vcombine.high %v91, %v91
    %v94 = vcombine.high %v74, %v74
    %v96 = vunpack.c.l.s4 1983009808
    %v97 = vunpack.c.0.s8 %v96
    %v98 = vlaneseq
    %v99 = vshrl.u32 %v98, 7
    %v100 = vsub.s32 %v97, %v99
    %v101 = vrot.slane %v74, %v100
    %v103 = vunpack.c.l.s4 1983009808
    %v104 = vunpack.c.0.s8 %v103
    %v105 = vlaneseq
    %v106 = vshrl.u32 %v105, 7
    %v107 = vsub.s32 %v104, %v106
    %v108 = vrot.slane %v94, %v107
    %v109 = vcombine.high %v101, %v101
    %v117 = vpack.c.bf16 %v84, %v84
    %v118 = vpack.c.bf16 %v92, %v92
    %v119 = vpack.c.bf16 %v91, %v91
    %v120 = vpack.c.bf16 %v93, %v93
    %v121 = vpack.c.bf16 %v101, %v101
    %v122 = vpack.c.bf16 %v109, %v109
    %v123 = vpack.c.bf16 %v108, %v108
    %v124 = vld [vmem:[#allocation2] sm:$0xff]
    %v125 = vld [vmem:[#allocation2 + $0x8] sm:$0xff]
    %v126 = vld [vmem:[#allocation2 + $0x10] sm:$0xff]
    %v127 = vld [vmem:[#allocation2 + $0x18] sm:$0xf]
    %v128 = vld [vmem:[#allocation2 + $0x1c] sm:$0xff]
    %v129 = vld [vmem:[#allocation2 + $0x24] sm:$0xff]
    %v130 = vld [vmem:[#allocation2 + $0x2c] sm:$0xff]
    %v131 = vld [vmem:[#allocation2 + $0x34] sm:$0xf]
    %v132 = vld [vmem:[#allocation2 + $0x38] sm:$0xff]
    %v133 = vld [vmem:[#allocation2 + $0x40] sm:$0xff]
    %v134 = vld [vmem:[#allocation2 + $0x48] sm:$0xff]
    %v135 = vld [vmem:[#allocation2 + $0x50] sm:$0xf]
    %v136 = vld [vmem:[#allocation2 + $0x54] sm:$0xff]
    %v137 = vld [vmem:[#allocation2 + $0x5c] sm:$0xff]
    %v138 = vld [vmem:[#allocation2 + $0x64] sm:$0xff]
    %v139 = vld [vmem:[#allocation2 + $0x6c] sm:$0xf]
    %v140 = vld [vmem:[#allocation2 + $0x70] sm:$0xff]
    %v141 = vld [vmem:[#allocation2 + $0x78] sm:$0xff]
    %v142 = vld [vmem:[#allocation2 + $0x80] sm:$0xff]
    %v143 = vld [vmem:[#allocation2 + $0x88] sm:$0xf]
    %v144 = vld [vmem:[#allocation2 + $0x8c] sm:$0xff]
    %v145 = vld [vmem:[#allocation2 + $0x94] sm:$0xff]
    %v146 = vld [vmem:[#allocation2 + $0x9c] sm:$0xff]
    %v147 = vld [vmem:[#allocation2 + $0xa4] sm:$0xf]
    %v148 = vld [vmem:[#allocation2 + $0xa8] sm:$0xff]
    %v149 = vld [vmem:[#allocation2 + $0xb0] sm:$0xff]
    %v150 = vld [vmem:[#allocation2 + $0xb8] sm:$0xff]
    %v151 = vld [vmem:[#allocation2 + $0xc0] sm:$0xf]
    %v152 = vld [vmem:[#allocation2 + $0xc4] sm:$0xff]
    %v153 = vld [vmem:[#allocation2 + $0xcc] sm:$0xff]
    %v154 = vld [vmem:[#allocation2 + $0xd4] sm:$0xff]
    %v155 = vld [vmem:[#allocation2 + $0xdc] sm:$0xf]
    %v156 = vld [vmem:[#allocation2 + $0xe0] sm:$0xff]
    %v157 = vld [vmem:[#allocation2 + $0xe8] sm:$0xff]
    %v158 = vld [vmem:[#allocation2 + $0xf0] sm:$0xff]
    %v159 = vld [vmem:[#allocation2 + $0xf8] sm:$0xf]
    %v160 = vld [vmem:[#allocation2 + $0xfc] sm:$0xff]
    %v161 = vld [vmem:[#allocation2 + $0x104] sm:$0xff]
    %v162 = vld [vmem:[#allocation2 + $0x10c] sm:$0xff]
    %v163 = vld [vmem:[#allocation2 + $0x114] sm:$0xf]
    %v164 = vld [vmem:[#allocation2 + $0x118] sm:$0xff]
    %v165 = vld [vmem:[#allocation2 + $0x120] sm:$0xff]
    %v166 = vld [vmem:[#allocation2 + $0x128] sm:$0xff]
    %v167 = vld [vmem:[#allocation2 + $0x130] sm:$0xf]
    %v168 = vld [vmem:[#allocation2 + $0x134] sm:$0xff]
    %v169 = vld [vmem:[#allocation2 + $0x13c] sm:$0xff]
    %v170 = vld [vmem:[#allocation2 + $0x144] sm:$0xff]
    %v171 = vld [vmem:[#allocation2 + $0x14c] sm:$0xf]
    %v172 = vld [vmem:[#allocation2 + $0x150] sm:$0xff]
    %v173 = vld [vmem:[#allocation2 + $0x158] sm:$0xff]
    %v174 = vld [vmem:[#allocation2 + $0x160] sm:$0xff]
    %v175 = vld [vmem:[#allocation2 + $0x168] sm:$0xf]
    %v176 = vld [vmem:[#allocation2 + $0x16c] sm:$0xff]
    %v177 = vld [vmem:[#allocation2 + $0x174] sm:$0xff]
    %v178 = vld [vmem:[#allocation2 + $0x17c] sm:$0xff]
    %v179 = vld [vmem:[#allocation2 + $0x184] sm:$0xf]
    %v180 = vld [vmem:[#allocation2 + $0x188] sm:$0xff]
    %v181 = vld [vmem:[#allocation2 + $0x190] sm:$0xff]
    %v182 = vld [vmem:[#allocation2 + $0x198] sm:$0xff]
    %v183 = vld [vmem:[#allocation2 + $0x1a0] sm:$0xf]
    %v184 = vld [vmem:[#allocation2 + $0x1a4] sm:$0xff]
    %v185 = vld [vmem:[#allocation2 + $0x1ac] sm:$0xff]
    %v186 = vld [vmem:[#allocation2 + $0x1b4] sm:$0xff]
    %v187 = vld [vmem:[#allocation2 + $0x1bc] sm:$0xf]
    %v188 = vld [vmem:[#allocation2 + $0x1c0] sm:$0xff]
    %v189 = vld [vmem:[#allocation2 + $0x1c8] sm:$0xff]
    %v190 = vld [vmem:[#allocation2 + $0x1d0] sm:$0xff]
    %v191 = vld [vmem:[#allocation2 + $0x1d8] sm:$0xf]
    %v192 = vld [vmem:[#allocation2 + $0x1dc] sm:$0xff]
    %v193 = vld [vmem:[#allocation2 + $0x1e4] sm:$0xff]
    %v194 = vld [vmem:[#allocation2 + $0x1ec] sm:$0xff]
    %v195 = vld [vmem:[#allocation2 + $0x1f4] sm:$0xf]
    %v196 = vld [vmem:[#allocation2 + $0x1f8] sm:$0xff]
    %v197 = vld [vmem:[#allocation2 + $0x200] sm:$0xff]
    %v198 = vld [vmem:[#allocation2 + $0x208] sm:$0xff]
    %v199 = vld [vmem:[#allocation2 + $0x210] sm:$0xf]
    %v200 = vld [vmem:[#allocation2 + $0x214] sm:$0xff]
    %v201 = vld [vmem:[#allocation2 + $0x21c] sm:$0xff]
    %v202 = vld [vmem:[#allocation2 + $0x224] sm:$0xff]
    %v203 = vld [vmem:[#allocation2 + $0x22c] sm:$0xf]
    %v204 = vld [vmem:[#allocation2 + $0x230] sm:$0xff]
    %v205 = vld [vmem:[#allocation2 + $0x238] sm:$0xff]
    %v206 = vld [vmem:[#allocation2 + $0x240] sm:$0xff]
    %v207 = vld [vmem:[#allocation2 + $0x248] sm:$0xf]
    %v208 = vld [vmem:[#allocation2 + $0x24c] sm:$0xff]
    %v209 = vld [vmem:[#allocation2 + $0x254] sm:$0xff]
    %v210 = vld [vmem:[#allocation2 + $0x25c] sm:$0xff]
    %v211 = vld [vmem:[#allocation2 + $0x264] sm:$0xf]
    %v212 = vld [vmem:[#allocation2 + $0x268] sm:$0xff]
    %v213 = vld [vmem:[#allocation2 + $0x270] sm:$0xff]
    %v214 = vld [vmem:[#allocation2 + $0x278] sm:$0xff]
    %v215 = vld [vmem:[#allocation2 + $0x280] sm:$0xf]
    %v216 = vld [vmem:[#allocation2 + $0x284] sm:$0xff]
    %v217 = vld [vmem:[#allocation2 + $0x28c] sm:$0xff]
    %v218 = vld [vmem:[#allocation2 + $0x294] sm:$0xff]
    %v219 = vld [vmem:[#allocation2 + $0x29c] sm:$0xf]
    %v220 = vld [vmem:[#allocation2 + $0x2a0] sm:$0xff]
    %v221 = vld [vmem:[#allocation2 + $0x2a8] sm:$0xff]
    %v222 = vld [vmem:[#allocation2 + $0x2b0] sm:$0xff]
    %v223 = vld [vmem:[#allocation2 + $0x2b8] sm:$0xf]
    %v224 = vld [vmem:[#allocation2 + $0x2bc] sm:$0xff]
    %v225 = vld [vmem:[#allocation2 + $0x2c4] sm:$0xff]
    %v226 = vld [vmem:[#allocation2 + $0x2cc] sm:$0xff]
    %v227 = vld [vmem:[#allocation2 + $0x2d4] sm:$0xf]
    %v228 = vld [vmem:[#allocation2 + $0x2d8] sm:$0xff]
    %v229 = vld [vmem:[#allocation2 + $0x2e0] sm:$0xff]
    %v230 = vld [vmem:[#allocation2 + $0x2e8] sm:$0xff]
    %v231 = vld [vmem:[#allocation2 + $0x2f0] sm:$0xf]
    %v232 = vld [vmem:[#allocation2 + $0x2f4] sm:$0xff]
    %v233 = vld [vmem:[#allocation2 + $0x2fc] sm:$0xff]
    %v234 = vld [vmem:[#allocation2 + $0x304] sm:$0xff]
    %v235 = vld [vmem:[#allocation2 + $0x30c] sm:$0xf]
    %v236 = vld [vmem:[#allocation2 + $0x310] sm:$0xff]
    %v237 = vld [vmem:[#allocation2 + $0x318] sm:$0xff]
    %v238 = vld [vmem:[#allocation2 + $0x320] sm:$0xff]
    %v239 = vld [vmem:[#allocation2 + $0x328] sm:$0xf]
    %v240 = vld [vmem:[#allocation2 + $0x32c] sm:$0xff]
    %v241 = vld [vmem:[#allocation2 + $0x334] sm:$0xff]
    %v242 = vld [vmem:[#allocation2 + $0x33c] sm:$0xff]
    %v243 = vld [vmem:[#allocation2 + $0x344] sm:$0xf]
    %v244 = vld [vmem:[#allocation2 + $0x348] sm:$0xff]
    %v245 = vld [vmem:[#allocation2 + $0x350] sm:$0xff]
    %v246 = vld [vmem:[#allocation2 + $0x358] sm:$0xff]
    %v247 = vld [vmem:[#allocation2 + $0x360] sm:$0xf]
    %v248 = vld [vmem:[#allocation2 + $0x364] sm:$0xff]
    %v249 = vld [vmem:[#allocation2 + $0x36c] sm:$0xff]
    %v250 = vld [vmem:[#allocation2 + $0x374] sm:$0xff]
    %v251 = vld [vmem:[#allocation2 + $0x37c] sm:$0xf]
    %v252 = vld [vmem:[#allocation2 + $0x380] sm:$0xff]
    %v253 = vld [vmem:[#allocation2 + $0x388] sm:$0xff]
    %v254 = vld [vmem:[#allocation2 + $0x390] sm:$0xff]
    %v255 = vld [vmem:[#allocation2 + $0x398] sm:$0xf]
    %v256 = vld [vmem:[#allocation2 + $0x39c] sm:$0xff]
    %v257 = vld [vmem:[#allocation2 + $0x3a4] sm:$0xff]
    %v258 = vld [vmem:[#allocation2 + $0x3ac] sm:$0xff]
    %v259 = vld [vmem:[#allocation2 + $0x3b4] sm:$0xf]
    %v260 = vld [vmem:[#allocation2 + $0x3b8] sm:$0xff]
    %v261 = vld [vmem:[#allocation2 + $0x3c0] sm:$0xff]
    %v262 = vld [vmem:[#allocation2 + $0x3c8] sm:$0xff]
    %v263 = vld [vmem:[#allocation2 + $0x3d0] sm:$0xf]
    %v264 = vld [vmem:[#allocation2 + $0x3d4] sm:$0xff]
    %v265 = vld [vmem:[#allocation2 + $0x3dc] sm:$0xff]
    %v266 = vld [vmem:[#allocation2 + $0x3e4] sm:$0xff]
    %v267 = vld [vmem:[#allocation2 + $0x3ec] sm:$0xf]
    %v268 = vld [vmem:[#allocation2 + $0x3f0] sm:$0xff]
    %v269 = vld [vmem:[#allocation2 + $0x3f8] sm:$0xff]
    %v270 = vld [vmem:[#allocation2 + $0x400] sm:$0xff]
    %v271 = vld [vmem:[#allocation2 + $0x408] sm:$0xf]
    %v272 = vld [vmem:[#allocation2 + $0x40c] sm:$0xff]
    %v273 = vld [vmem:[#allocation2 + $0x414] sm:$0xff]
    %v274 = vld [vmem:[#allocation2 + $0x41c] sm:$0xff]
    %v275 = vld [vmem:[#allocation2 + $0x424] sm:$0xf]
    %v276 = vld [vmem:[#allocation2 + $0x428] sm:$0xff]
    %v277 = vld [vmem:[#allocation2 + $0x430] sm:$0xff]
    %v278 = vld [vmem:[#allocation2 + $0x438] sm:$0xff]
    %v279 = vld [vmem:[#allocation2 + $0x440] sm:$0xf]
    %v280 = vld [vmem:[#allocation2 + $0x444] sm:$0xff]
    %v281 = vld [vmem:[#allocation2 + $0x44c] sm:$0xff]
    %v282 = vld [vmem:[#allocation2 + $0x454] sm:$0xff]
    %v283 = vld [vmem:[#allocation2 + $0x45c] sm:$0xf]
    %v284 = vld [vmem:[#allocation2 + $0x460] sm:$0xff]
    %v285 = vld [vmem:[#allocation2 + $0x468] sm:$0xff]
    %v286 = vld [vmem:[#allocation2 + $0x470] sm:$0xff]
    %v287 = vld [vmem:[#allocation2 + $0x478] sm:$0xf]
    %v288 = vld [vmem:[#allocation2 + $0x47c] sm:$0xff]
    %v289 = vld [vmem:[#allocation2 + $0x484] sm:$0xff]
    %v290 = vld [vmem:[#allocation2 + $0x48c] sm:$0xff]
    %v291 = vld [vmem:[#allocation2 + $0x494] sm:$0xf]
    %v292 = vld [vmem:[#allocation2 + $0x498] sm:$0xff]
    %v293 = vld [vmem:[#allocation2 + $0x4a0] sm:$0xff]
    %v294 = vld [vmem:[#allocation2 + $0x4a8] sm:$0xff]
    %v295 = vld [vmem:[#allocation2 + $0x4b0] sm:$0xf]
    %v296 = vld [vmem:[#allocation2 + $0x4b4] sm:$0xff]
    %v297 = vld [vmem:[#allocation2 + $0x4bc] sm:$0xff]
    %v298 = vld [vmem:[#allocation2 + $0x4c4] sm:$0xff]
    %v299 = vld [vmem:[#allocation2 + $0x4cc] sm:$0xf]
    %v300 = vld [vmem:[#allocation2 + $0x4d0] sm:$0xff]
    %v301 = vld [vmem:[#allocation2 + $0x4d8] sm:$0xff]
    %v302 = vld [vmem:[#allocation2 + $0x4e0] sm:$0xff]
    %v303 = vld [vmem:[#allocation2 + $0x4e8] sm:$0xf]
    %v304 = vld [vmem:[#allocation2 + $0x4ec] sm:$0xff]
    %v305 = vld [vmem:[#allocation2 + $0x4f4] sm:$0xff]
    %v306 = vld [vmem:[#allocation2 + $0x4fc] sm:$0xff]
    %v307 = vld [vmem:[#allocation2 + $0x504] sm:$0xf]
    %v308 = vld [vmem:[#allocation2 + $0x508] sm:$0xff]
    %v309 = vld [vmem:[#allocation2 + $0x510] sm:$0xff]
    %v310 = vld [vmem:[#allocation2 + $0x518] sm:$0xff]
    %v311 = vld [vmem:[#allocation2 + $0x520] sm:$0xf]
    %v312 = vld [vmem:[#allocation2 + $0x524] sm:$0xff]
    %v313 = vld [vmem:[#allocation2 + $0x52c] sm:$0xff]
    %v314 = vld [vmem:[#allocation2 + $0x534] sm:$0xff]
    %v315 = vld [vmem:[#allocation2 + $0x53c] sm:$0xf]
    %v316 = vld [vmem:[#allocation2 + $0x540] sm:$0xff]
    %v317 = vld [vmem:[#allocation2 + $0x548] sm:$0xff]
    %v318 = vld [vmem:[#allocation2 + $0x550] sm:$0xff]
    %v319 = vld [vmem:[#allocation2 + $0x558] sm:$0xf]
    %v320 = vld [vmem:[#allocation2 + $0x55c] sm:$0xff]
    %v321 = vld [vmem:[#allocation2 + $0x564] sm:$0xff]
    %v322 = vld [vmem:[#allocation2 + $0x56c] sm:$0xff]
    %v323 = vld [vmem:[#allocation2 + $0x574] sm:$0xf]
    %v324 = vld [vmem:[#allocation2 + $0x578] sm:$0xff]
    %v325 = vld [vmem:[#allocation2 + $0x580] sm:$0xff]
    %v326 = vld [vmem:[#allocation2 + $0x588] sm:$0xff]
    %v327 = vld [vmem:[#allocation2 + $0x590] sm:$0xf]
    %v328 = vld [vmem:[#allocation2 + $0x594] sm:$0xff]
    %v329 = vld [vmem:[#allocation2 + $0x59c] sm:$0xff]
    %v330 = vld [vmem:[#allocation2 + $0x5a4] sm:$0xff]
    %v331 = vld [vmem:[#allocation2 + $0x5ac] sm:$0xf]
    %v332 = vld [vmem:[#allocation2 + $0x5b0] sm:$0xff]
    %v333 = vld [vmem:[#allocation2 + $0x5b8] sm:$0xff]
    %v334 = vld [vmem:[#allocation2 + $0x5c0] sm:$0xff]
    %v335 = vld [vmem:[#allocation2 + $0x5c8] sm:$0xf]
    %v336 = vld [vmem:[#allocation2 + $0x5cc] sm:$0xff]
    %v337 = vld [vmem:[#allocation2 + $0x5d4] sm:$0xff]
    %v338 = vld [vmem:[#allocation2 + $0x5dc] sm:$0xff]
    %v339 = vld [vmem:[#allocation2 + $0x5e4] sm:$0xf]
    %v340 = vld [vmem:[#allocation2 + $0x5e8] sm:$0xff]
    %v341 = vld [vmem:[#allocation2 + $0x5f0] sm:$0xff]
    %v342 = vld [vmem:[#allocation2 + $0x5f8] sm:$0xff]
    %v343 = vld [vmem:[#allocation2 + $0x600] sm:$0xf]
    %v344 = vld [vmem:[#allocation2 + $0x604] sm:$0xff]
    %v345 = vld [vmem:[#allocation2 + $0x60c] sm:$0xff]
    %v346 = vld [vmem:[#allocation2 + $0x614] sm:$0xff]
    %v347 = vld [vmem:[#allocation2 + $0x61c] sm:$0xf]
    %v348 = vld [vmem:[#allocation2 + $0x620] sm:$0xff]
    %v349 = vld [vmem:[#allocation2 + $0x628] sm:$0xff]
    %v350 = vld [vmem:[#allocation2 + $0x630] sm:$0xff]
    %v351 = vld [vmem:[#allocation2 + $0x638] sm:$0xf]
    %v352 = vld [vmem:[#allocation2 + $0x63c] sm:$0xff]
    %v353 = vld [vmem:[#allocation2 + $0x644] sm:$0xff]
    %v354 = vld [vmem:[#allocation2 + $0x64c] sm:$0xff]
    %v355 = vld [vmem:[#allocation2 + $0x654] sm:$0xf]
    %v356 = vld [vmem:[#allocation2 + $0x658] sm:$0xff]
    %v357 = vld [vmem:[#allocation2 + $0x660] sm:$0xff]
    %v358 = vld [vmem:[#allocation2 + $0x668] sm:$0xff]
    %v359 = vld [vmem:[#allocation2 + $0x670] sm:$0xf]
    %v360 = vld [vmem:[#allocation2 + $0x674] sm:$0xff]
    %v361 = vld [vmem:[#allocation2 + $0x67c] sm:$0xff]
    %v362 = vld [vmem:[#allocation2 + $0x684] sm:$0xff]
    %v363 = vld [vmem:[#allocation2 + $0x68c] sm:$0xf]
    %v364 = vld [vmem:[#allocation2 + $0x690] sm:$0xff]
    %v365 = vld [vmem:[#allocation2 + $0x698] sm:$0xff]
    %v366 = vld [vmem:[#allocation2 + $0x6a0] sm:$0xff]
    %v367 = vld [vmem:[#allocation2 + $0x6a8] sm:$0xf]
    %v368 = vld [vmem:[#allocation2 + $0x6ac] sm:$0xff]
    %v369 = vld [vmem:[#allocation2 + $0x6b4] sm:$0xff]
    %v370 = vld [vmem:[#allocation2 + $0x6bc] sm:$0xff]
    %v371 = vld [vmem:[#allocation2 + $0x6c4] sm:$0xf]
    %v372 = vld [vmem:[#allocation2 + $0x6c8] sm:$0xff]
    %v373 = vld [vmem:[#allocation2 + $0x6d0] sm:$0xff]
    %v374 = vld [vmem:[#allocation2 + $0x6d8] sm:$0xff]
    %v375 = vld [vmem:[#allocation2 + $0x6e0] sm:$0xf]
    %v376 = vld [vmem:[#allocation2 + $0x6e4] sm:$0xff]
    %v377 = vld [vmem:[#allocation2 + $0x6ec] sm:$0xff]
    %v378 = vld [vmem:[#allocation2 + $0x6f4] sm:$0xff]
    %v379 = vld [vmem:[#allocation2 + $0x6fc] sm:$0xf]
    %v380 = vld [vmem:[#allocation2 + $0x700] sm:$0xff]
    %v381 = vld [vmem:[#allocation2 + $0x708] sm:$0xff]
    %v382 = vld [vmem:[#allocation2 + $0x710] sm:$0xff]
    %v383 = vld [vmem:[#allocation2 + $0x718] sm:$0xf]
    %v384 = vld [vmem:[#allocation2 + $0x71c] sm:$0xff]
    %v385 = vld [vmem:[#allocation2 + $0x724] sm:$0xff]
    %v386 = vld [vmem:[#allocation2 + $0x72c] sm:$0xff]
    %v387 = vld [vmem:[#allocation2 + $0x734] sm:$0xf]
    %v388 = vld [vmem:[#allocation2 + $0x738] sm:$0xff]
    %v389 = vld [vmem:[#allocation2 + $0x740] sm:$0xff]
    %v390 = vld [vmem:[#allocation2 + $0x748] sm:$0xff]
    %v391 = vld [vmem:[#allocation2 + $0x750] sm:$0xf]
    %v392 = vld [vmem:[#allocation2 + $0x754] sm:$0xff]
    %v393 = vld [vmem:[#allocation2 + $0x75c] sm:$0xff]
    %v394 = vld [vmem:[#allocation2 + $0x764] sm:$0xff]
    %v395 = vld [vmem:[#allocation2 + $0x76c] sm:$0xf]
    %v396 = vld [vmem:[#allocation2 + $0x770] sm:$0xff]
    %v397 = vld [vmem:[#allocation2 + $0x778] sm:$0xff]
    %v398 = vld [vmem:[#allocation2 + $0x780] sm:$0xff]
    %v399 = vld [vmem:[#allocation2 + $0x788] sm:$0xf]
    %v400 = vld [vmem:[#allocation2 + $0x78c] sm:$0xff]
    %v401 = vld [vmem:[#allocation2 + $0x794] sm:$0xff]
    %v402 = vld [vmem:[#allocation2 + $0x79c] sm:$0xff]
    %v403 = vld [vmem:[#allocation2 + $0x7a4] sm:$0xf]
    %v404 = vld [vmem:[#allocation2 + $0x7a8] sm:$0xff]
    %v405 = vld [vmem:[#allocation2 + $0x7b0] sm:$0xff]
    %v406 = vld [vmem:[#allocation2 + $0x7b8] sm:$0xff]
    %v407 = vld [vmem:[#allocation2 + $0x7c0] sm:$0xf]
    %v408 = vld [vmem:[#allocation2 + $0x7c4] sm:$0xff]
    %v409 = vld [vmem:[#allocation2 + $0x7cc] sm:$0xff]
    %v410 = vld [vmem:[#allocation2 + $0x7d4] sm:$0xff]
    %v411 = vld [vmem:[#allocation2 + $0x7dc] sm:$0xf]
    %v412 = vld [vmem:[#allocation2 + $0x7e0] sm:$0xff]
    %v413 = vld [vmem:[#allocation2 + $0x7e8] sm:$0xff]
    %v414 = vld [vmem:[#allocation2 + $0x7f0] sm:$0xff]
    %v415 = vld [vmem:[#allocation2 + $0x7f8] sm:$0xf]
    %v416 = vld [vmem:[#allocation2 + $0x7fc] sm:$0xff]
    %v417 = vld [vmem:[#allocation2 + $0x804] sm:$0xff]
    %v418 = vld [vmem:[#allocation2 + $0x80c] sm:$0xff]
    %v419 = vld [vmem:[#allocation2 + $0x814] sm:$0xf]
    %v420 = vld [vmem:[#allocation2 + $0x818] sm:$0xff]
    %v421 = vld [vmem:[#allocation2 + $0x820] sm:$0xff]
    %v422 = vld [vmem:[#allocation2 + $0x828] sm:$0xff]
    %v423 = vld [vmem:[#allocation2 + $0x830] sm:$0xf]
    %v424 = vld [vmem:[#allocation2 + $0x834] sm:$0xff]
    %v425 = vld [vmem:[#allocation2 + $0x83c] sm:$0xff]
    %v426 = vld [vmem:[#allocation2 + $0x844] sm:$0xff]
    %v427 = vld [vmem:[#allocation2 + $0x84c] sm:$0xf]
    %v428 = vld [vmem:[#allocation2 + $0x850] sm:$0xff]
    %v429 = vld [vmem:[#allocation2 + $0x858] sm:$0xff]
    %v430 = vld [vmem:[#allocation2 + $0x860] sm:$0xff]
    %v431 = vld [vmem:[#allocation2 + $0x868] sm:$0xf]
    %v432 = vld [vmem:[#allocation2 + $0x86c] sm:$0xff]
    %v433 = vld [vmem:[#allocation2 + $0x874] sm:$0xff]
    %v434 = vld [vmem:[#allocation2 + $0x87c] sm:$0xff]
    %v435 = vld [vmem:[#allocation2 + $0x884] sm:$0xf]
    %v436 = vld [vmem:[#allocation2 + $0x888] sm:$0xff]
    %v437 = vld [vmem:[#allocation2 + $0x890] sm:$0xff]
    %v438 = vld [vmem:[#allocation2 + $0x898] sm:$0xff]
    %v439 = vld [vmem:[#allocation2 + $0x8a0] sm:$0xf]
    %v440 = vld [vmem:[#allocation2 + $0x8a4] sm:$0xff]
    %v441 = vld [vmem:[#allocation2 + $0x8ac] sm:$0xff]
    %v442 = vld [vmem:[#allocation2 + $0x8b4] sm:$0xff]
    %v443 = vld [vmem:[#allocation2 + $0x8bc] sm:$0xf]
    %v444 = vld [vmem:[#allocation2 + $0x8c0] sm:$0xff]
    %v445 = vld [vmem:[#allocation2 + $0x8c8] sm:$0xff]
    %v446 = vld [vmem:[#allocation2 + $0x8d0] sm:$0xff]
    %v447 = vld [vmem:[#allocation2 + $0x8d8] sm:$0xf]
    %v448 = vld [vmem:[#allocation2 + $0x8dc] sm:$0xff]
    %v449 = vld [vmem:[#allocation2 + $0x8e4] sm:$0xff]
    %v450 = vld [vmem:[#allocation2 + $0x8ec] sm:$0xff]
    %v451 = vld [vmem:[#allocation2 + $0x8f4] sm:$0xf]
    %v452 = vld [vmem:[#allocation2 + $0x8f8] sm:$0xff]
    %v453 = vld [vmem:[#allocation2 + $0x900] sm:$0xff]
    %v454 = vld [vmem:[#allocation2 + $0x908] sm:$0xff]
    %v455 = vld [vmem:[#allocation2 + $0x910] sm:$0xf]
    %v456 = vld [vmem:[#allocation2 + $0x914] sm:$0xff]
    %v457 = vld [vmem:[#allocation2 + $0x91c] sm:$0xff]
    %v458 = vld [vmem:[#allocation2 + $0x924] sm:$0xff]
    %v459 = vld [vmem:[#allocation2 + $0x92c] sm:$0xf]
    %v460 = vld [vmem:[#allocation2 + $0x930] sm:$0xff]
    %v461 = vld [vmem:[#allocation2 + $0x938] sm:$0xff]
    %v462 = vld [vmem:[#allocation2 + $0x940] sm:$0xff]
    %v463 = vld [vmem:[#allocation2 + $0x948] sm:$0xf]
    %v464 = vld [vmem:[#allocation2 + $0x94c] sm:$0xff]
    %v465 = vld [vmem:[#allocation2 + $0x954] sm:$0xff]
    %v466 = vld [vmem:[#allocation2 + $0x95c] sm:$0xff]
    %v467 = vld [vmem:[#allocation2 + $0x964] sm:$0xf]
    %v468 = vld [vmem:[#allocation2 + $0x968] sm:$0xff]
    %v469 = vld [vmem:[#allocation2 + $0x970] sm:$0xff]
    %v470 = vld [vmem:[#allocation2 + $0x978] sm:$0xff]
    %v471 = vld [vmem:[#allocation2 + $0x980] sm:$0xf]
    %v472 = vld [vmem:[#allocation2 + $0x984] sm:$0xff]
    %v473 = vld [vmem:[#allocation2 + $0x98c] sm:$0xff]
    %v474 = vld [vmem:[#allocation2 + $0x994] sm:$0xff]
    %v475 = vld [vmem:[#allocation2 + $0x99c] sm:$0xf]
    %v476 = vld [vmem:[#allocation2 + $0x9a0] sm:$0xff]
    %v477 = vld [vmem:[#allocation2 + $0x9a8] sm:$0xff]
    %v478 = vld [vmem:[#allocation2 + $0x9b0] sm:$0xff]
    %v479 = vld [vmem:[#allocation2 + $0x9b8] sm:$0xf]
    %v480 = vld [vmem:[#allocation2 + $0x9bc] sm:$0xff]
    %v481 = vld [vmem:[#allocation2 + $0x9c4] sm:$0xff]
    %v482 = vld [vmem:[#allocation2 + $0x9cc] sm:$0xff]
    %v483 = vld [vmem:[#allocation2 + $0x9d4] sm:$0xf]
    %v484 = vld [vmem:[#allocation2 + $0x9d8] sm:$0xff]
    %v485 = vld [vmem:[#allocation2 + $0x9e0] sm:$0xff]
    %v486 = vld [vmem:[#allocation2 + $0x9e8] sm:$0xff]
    %v487 = vld [vmem:[#allocation2 + $0x9f0] sm:$0xf]
    %v488 = vld [vmem:[#allocation2 + $0x9f4] sm:$0xff]
    %v489 = vld [vmem:[#allocation2 + $0x9fc] sm:$0xff]
    %v490 = vld [vmem:[#allocation2 + $0xa04] sm:$0xff]
    %v491 = vld [vmem:[#allocation2 + $0xa0c] sm:$0xf]
    %v492 = vld [vmem:[#allocation2 + $0xa10] sm:$0xff]
    %v493 = vld [vmem:[#allocation2 + $0xa18] sm:$0xff]
    %v494 = vld [vmem:[#allocation2 + $0xa20] sm:$0xff]
    %v495 = vld [vmem:[#allocation2 + $0xa28] sm:$0xf]
    %v496 = vld [vmem:[#allocation2 + $0xa2c] sm:$0xff]
    %v497 = vld [vmem:[#allocation2 + $0xa34] sm:$0xff]
    %v498 = vld [vmem:[#allocation2 + $0xa3c] sm:$0xff]
    %v499 = vld [vmem:[#allocation2 + $0xa44] sm:$0xf]
    %v500 = vld [vmem:[#allocation2 + $0xa48] sm:$0xff]
    %v501 = vld [vmem:[#allocation2 + $0xa50] sm:$0xff]
    %v502 = vld [vmem:[#allocation2 + $0xa58] sm:$0xff]
    %v503 = vld [vmem:[#allocation2 + $0xa60] sm:$0xf]
    %v504 = vld [vmem:[#allocation2 + $0xa64] sm:$0xff]
    %v505 = vld [vmem:[#allocation2 + $0xa6c] sm:$0xff]
    %v506 = vld [vmem:[#allocation2 + $0xa74] sm:$0xff]
    %v507 = vld [vmem:[#allocation2 + $0xa7c] sm:$0xf]
    %v508 = vld [vmem:[#allocation2 + $0xa80] sm:$0xff]
    %v509 = vld [vmem:[#allocation2 + $0xa88] sm:$0xff]
    %v510 = vld [vmem:[#allocation2 + $0xa90] sm:$0xff]
    %v511 = vld [vmem:[#allocation2 + $0xa98] sm:$0xf]
    %v512 = vld [vmem:[#allocation2 + $0xa9c] sm:$0xff]
    %v513 = vld [vmem:[#allocation2 + $0xaa4] sm:$0xff]
    %v514 = vld [vmem:[#allocation2 + $0xaac] sm:$0xff]
    %v515 = vld [vmem:[#allocation2 + $0xab4] sm:$0xf]
    %v516 = vld [vmem:[#allocation5] sm:$0xff]
    %v518 = vlaneseq
    %v519 = vshrl.u32 %v518, 7
    %v520 = vsub.s32 0, %v519
    %v521 = vrot.slane %v516, %v520
    %v522 = vlaneseq
    %v523 = vshrl.u32 %v522, 7
    %v524 = vsub.s32 1, %v523
    %v525 = vrot.slane %v516, %v524
    %v526 = vlaneseq
    %v527 = vshrl.u32 %v526, 7
    %v528 = vsub.s32 2, %v527
    %v529 = vrot.slane %v516, %v528
    %v530 = vlaneseq
    %v531 = vshrl.u32 %v530, 7
    %v532 = vsub.s32 3, %v531
    %v533 = vrot.slane %v516, %v532
    %v534 = vlaneseq
    %v535 = vshrl.u32 %v534, 7
    %v536 = vsub.s32 4, %v535
    %v537 = vrot.slane %v516, %v536
    %v538 = vlaneseq
    %v539 = vshrl.u32 %v538, 7
    %v540 = vsub.s32 5, %v539
    %v541 = vrot.slane %v516, %v540
    %v542 = vlaneseq
    %v543 = vshrl.u32 %v542, 7
    %v544 = vsub.s32 6, %v543
    %v545 = vrot.slane %v516, %v544
    %v945 = vunpack.c.l.b16 %v124
    %v946 = vunpack.c.h.b16 %v124
    %v947 = vunpack.c.l.b16 %v125
    %v948 = vunpack.c.h.b16 %v125
    %v949 = vunpack.c.l.b16 %v126
    %v950 = vunpack.c.h.b16 %v126
    %v951 = vunpack.c.l.b16 %v127
    %v952 = vunpack.c.l.b16 %v128
    %v953 = vunpack.c.h.b16 %v128
    %v954 = vunpack.c.l.b16 %v129
    %v955 = vunpack.c.h.b16 %v129
    %v956 = vunpack.c.l.b16 %v130
    %v957 = vunpack.c.h.b16 %v130
    %v958 = vunpack.c.l.b16 %v131
    %v959 = vunpack.c.l.b16 %v132
    %v960 = vunpack.c.h.b16 %v132
    %v961 = vunpack.c.l.b16 %v133
    %v962 = vunpack.c.h.b16 %v133
    %v963 = vunpack.c.l.b16 %v134
    %v964 = vunpack.c.h.b16 %v134
    %v965 = vunpack.c.l.b16 %v135
    %v966 = vunpack.c.l.b16 %v136
    %v967 = vunpack.c.h.b16 %v136
    %v968 = vunpack.c.l.b16 %v137
    %v969 = vunpack.c.h.b16 %v137
    %v970 = vunpack.c.l.b16 %v138
    %v971 = vunpack.c.h.b16 %v138
    %v972 = vunpack.c.l.b16 %v139
    %v973 = vunpack.c.l.b16 %v140
    %v974 = vunpack.c.h.b16 %v140
    %v975 = vunpack.c.l.b16 %v141
    %v976 = vunpack.c.h.b16 %v141
    %v977 = vunpack.c.l.b16 %v142
    %v978 = vunpack.c.h.b16 %v142
    %v979 = vunpack.c.l.b16 %v143
    %v980 = vunpack.c.l.b16 %v144
    %v981 = vunpack.c.h.b16 %v144
    %v982 = vunpack.c.l.b16 %v145
    %v983 = vunpack.c.h.b16 %v145
    %v984 = vunpack.c.l.b16 %v146
    %v985 = vunpack.c.h.b16 %v146
    %v986 = vunpack.c.l.b16 %v147
    %v987 = vunpack.c.l.b16 %v148
    %v988 = vunpack.c.h.b16 %v148
    %v989 = vunpack.c.l.b16 %v149
    %v990 = vunpack.c.h.b16 %v149
    %v991 = vunpack.c.l.b16 %v150
    %v992 = vunpack.c.h.b16 %v150
    %v993 = vunpack.c.l.b16 %v151
    %v994 = vunpack.c.l.b16 %v152
    %v995 = vunpack.c.h.b16 %v152
    %v996 = vunpack.c.l.b16 %v153
    %v997 = vunpack.c.h.b16 %v153
    %v998 = vunpack.c.l.b16 %v154
    %v999 = vunpack.c.h.b16 %v154
    %v1000 = vunpack.c.l.b16 %v155
    %v1001 = vunpack.c.l.b16 %v156
    %v1002 = vunpack.c.h.b16 %v156
    %v1003 = vunpack.c.l.b16 %v157
    %v1004 = vunpack.c.h.b16 %v157
    %v1005 = vunpack.c.l.b16 %v158
    %v1006 = vunpack.c.h.b16 %v158
    %v1007 = vunpack.c.l.b16 %v159
    %v1008 = vunpack.c.l.b16 %v160
    %v1009 = vunpack.c.h.b16 %v160
    %v1010 = vunpack.c.l.b16 %v161
    %v1011 = vunpack.c.h.b16 %v161
    %v1012 = vunpack.c.l.b16 %v162
    %v1013 = vunpack.c.h.b16 %v162
    %v1014 = vunpack.c.l.b16 %v163
    %v1015 = vunpack.c.l.b16 %v164
    %v1016 = vunpack.c.h.b16 %v164
    %v1017 = vunpack.c.l.b16 %v165
    %v1018 = vunpack.c.h.b16 %v165
    %v1019 = vunpack.c.l.b16 %v166
    %v1020 = vunpack.c.h.b16 %v166
    %v1021 = vunpack.c.l.b16 %v167
    %v1022 = vunpack.c.l.b16 %v168
    %v1023 = vunpack.c.h.b16 %v168
    %v1024 = vunpack.c.l.b16 %v169
    %v1025 = vunpack.c.h.b16 %v169
    %v1026 = vunpack.c.l.b16 %v170
    %v1027 = vunpack.c.h.b16 %v170
    %v1028 = vunpack.c.l.b16 %v171
    %v1029 = vunpack.c.l.b16 %v172
    %v1030 = vunpack.c.h.b16 %v172
    %v1031 = vunpack.c.l.b16 %v173
    %v1032 = vunpack.c.h.b16 %v173
    %v1033 = vunpack.c.l.b16 %v174
    %v1034 = vunpack.c.h.b16 %v174
    %v1035 = vunpack.c.l.b16 %v175
    %v1036 = vunpack.c.l.b16 %v176
    %v1037 = vunpack.c.h.b16 %v176
    %v1038 = vunpack.c.l.b16 %v177
    %v1039 = vunpack.c.h.b16 %v177
    %v1040 = vunpack.c.l.b16 %v178
    %v1041 = vunpack.c.h.b16 %v178
    %v1042 = vunpack.c.l.b16 %v179
    %v1043 = vunpack.c.l.b16 %v180
    %v1044 = vunpack.c.h.b16 %v180
    %v1045 = vunpack.c.l.b16 %v181
    %v1046 = vunpack.c.h.b16 %v181
    %v1047 = vunpack.c.l.b16 %v182
    %v1048 = vunpack.c.h.b16 %v182
    %v1049 = vunpack.c.l.b16 %v183
    %v1050 = vunpack.c.l.b16 %v184
    %v1051 = vunpack.c.h.b16 %v184
    %v1052 = vunpack.c.l.b16 %v185
    %v1053 = vunpack.c.h.b16 %v185
    %v1054 = vunpack.c.l.b16 %v186
    %v1055 = vunpack.c.h.b16 %v186
    %v1056 = vunpack.c.l.b16 %v187
    %v1057 = vunpack.c.l.b16 %v188
    %v1058 = vunpack.c.h.b16 %v188
    %v1059 = vunpack.c.l.b16 %v189
    %v1060 = vunpack.c.h.b16 %v189
    %v1061 = vunpack.c.l.b16 %v190
    %v1062 = vunpack.c.h.b16 %v190
    %v1063 = vunpack.c.l.b16 %v191
    %v1064 = vunpack.c.l.b16 %v192
    %v1065 = vunpack.c.h.b16 %v192
    %v1066 = vunpack.c.l.b16 %v193
    %v1067 = vunpack.c.h.b16 %v193
    %v1068 = vunpack.c.l.b16 %v194
    %v1069 = vunpack.c.h.b16 %v194
    %v1070 = vunpack.c.l.b16 %v195
    %v1071 = vunpack.c.l.b16 %v196
    %v1072 = vunpack.c.h.b16 %v196
    %v1073 = vunpack.c.l.b16 %v197
    %v1074 = vunpack.c.h.b16 %v197
    %v1075 = vunpack.c.l.b16 %v198
    %v1076 = vunpack.c.h.b16 %v198
    %v1077 = vunpack.c.l.b16 %v199
    %v1078 = vunpack.c.l.b16 %v200
    %v1079 = vunpack.c.h.b16 %v200
    %v1080 = vunpack.c.l.b16 %v201
    %v1081 = vunpack.c.h.b16 %v201
    %v1082 = vunpack.c.l.b16 %v202
    %v1083 = vunpack.c.h.b16 %v202
    %v1084 = vunpack.c.l.b16 %v203
    %v1085 = vunpack.c.l.b16 %v204
    %v1086 = vunpack.c.h.b16 %v204
    %v1087 = vunpack.c.l.b16 %v205
    %v1088 = vunpack.c.h.b16 %v205
    %v1089 = vunpack.c.l.b16 %v206
    %v1090 = vunpack.c.h.b16 %v206
    %v1091 = vunpack.c.l.b16 %v207
    %v1092 = vunpack.c.l.b16 %v208
    %v1093 = vunpack.c.h.b16 %v208
    %v1094 = vunpack.c.l.b16 %v209
    %v1095 = vunpack.c.h.b16 %v209
    %v1096 = vunpack.c.l.b16 %v210
    %v1097 = vunpack.c.h.b16 %v210
    %v1098 = vunpack.c.l.b16 %v211
    %v1099 = vunpack.c.l.b16 %v212
    %v1100 = vunpack.c.h.b16 %v212
    %v1101 = vunpack.c.l.b16 %v213
    %v1102 = vunpack.c.h.b16 %v213
    %v1103 = vunpack.c.l.b16 %v214
    %v1104 = vunpack.c.h.b16 %v214
    %v1105 = vunpack.c.l.b16 %v215
    %v1106 = vunpack.c.l.b16 %v216
    %v1107 = vunpack.c.h.b16 %v216
    %v1108 = vunpack.c.l.b16 %v217
    %v1109 = vunpack.c.h.b16 %v217
    %v1110 = vunpack.c.l.b16 %v218
    %v1111 = vunpack.c.h.b16 %v218
    %v1112 = vunpack.c.l.b16 %v219
    %v1113 = vunpack.c.l.b16 %v220
    %v1114 = vunpack.c.h.b16 %v220
    %v1115 = vunpack.c.l.b16 %v221
    %v1116 = vunpack.c.h.b16 %v221
    %v1117 = vunpack.c.l.b16 %v222
    %v1118 = vunpack.c.h.b16 %v222
    %v1119 = vunpack.c.l.b16 %v223
    %v1120 = vunpack.c.l.b16 %v224
    %v1121 = vunpack.c.h.b16 %v224
    %v1122 = vunpack.c.l.b16 %v225
    %v1123 = vunpack.c.h.b16 %v225
    %v1124 = vunpack.c.l.b16 %v226
    %v1125 = vunpack.c.h.b16 %v226
    %v1126 = vunpack.c.l.b16 %v227
    %v1127 = vunpack.c.l.b16 %v228
    %v1128 = vunpack.c.h.b16 %v228
    %v1129 = vunpack.c.l.b16 %v229
    %v1130 = vunpack.c.h.b16 %v229
    %v1131 = vunpack.c.l.b16 %v230
    %v1132 = vunpack.c.h.b16 %v230
    %v1133 = vunpack.c.l.b16 %v231
    %v1134 = vunpack.c.l.b16 %v232
    %v1135 = vunpack.c.h.b16 %v232
    %v1136 = vunpack.c.l.b16 %v233
    %v1137 = vunpack.c.h.b16 %v233
    %v1138 = vunpack.c.l.b16 %v234
    %v1139 = vunpack.c.h.b16 %v234
    %v1140 = vunpack.c.l.b16 %v235
    %v1141 = vunpack.c.l.b16 %v236
    %v1142 = vunpack.c.h.b16 %v236
    %v1143 = vunpack.c.l.b16 %v237
    %v1144 = vunpack.c.h.b16 %v237
    %v1145 = vunpack.c.l.b16 %v238
    %v1146 = vunpack.c.h.b16 %v238
    %v1147 = vunpack.c.l.b16 %v239
    %v1148 = vunpack.c.l.b16 %v240
    %v1149 = vunpack.c.h.b16 %v240
    %v1150 = vunpack.c.l.b16 %v241
    %v1151 = vunpack.c.h.b16 %v241
    %v1152 = vunpack.c.l.b16 %v242
    %v1153 = vunpack.c.h.b16 %v242
    %v1154 = vunpack.c.l.b16 %v243
    %v1155 = vunpack.c.l.b16 %v244
    %v1156 = vunpack.c.h.b16 %v244
    %v1157 = vunpack.c.l.b16 %v245
    %v1158 = vunpack.c.h.b16 %v245
    %v1159 = vunpack.c.l.b16 %v246
    %v1160 = vunpack.c.h.b16 %v246
    %v1161 = vunpack.c.l.b16 %v247
    %v1162 = vunpack.c.l.b16 %v248
    %v1163 = vunpack.c.h.b16 %v248
    %v1164 = vunpack.c.l.b16 %v249
    %v1165 = vunpack.c.h.b16 %v249
    %v1166 = vunpack.c.l.b16 %v250
    %v1167 = vunpack.c.h.b16 %v250
    %v1168 = vunpack.c.l.b16 %v251
    %v1169 = vunpack.c.l.b16 %v252
    %v1170 = vunpack.c.h.b16 %v252
    %v1171 = vunpack.c.l.b16 %v253
    %v1172 = vunpack.c.h.b16 %v253
    %v1173 = vunpack.c.l.b16 %v254
    %v1174 = vunpack.c.h.b16 %v254
    %v1175 = vunpack.c.l.b16 %v255
    %v1176 = vunpack.c.l.b16 %v256
    %v1177 = vunpack.c.h.b16 %v256
    %v1178 = vunpack.c.l.b16 %v257
    %v1179 = vunpack.c.h.b16 %v257
    %v1180 = vunpack.c.l.b16 %v258
    %v1181 = vunpack.c.h.b16 %v258
    %v1182 = vunpack.c.l.b16 %v259
    %v1183 = vunpack.c.l.b16 %v260
    %v1184 = vunpack.c.h.b16 %v260
    %v1185 = vunpack.c.l.b16 %v261
    %v1186 = vunpack.c.h.b16 %v261
    %v1187 = vunpack.c.l.b16 %v262
    %v1188 = vunpack.c.h.b16 %v262
    %v1189 = vunpack.c.l.b16 %v263
    %v1190 = vunpack.c.l.b16 %v264
    %v1191 = vunpack.c.h.b16 %v264
    %v1192 = vunpack.c.l.b16 %v265
    %v1193 = vunpack.c.h.b16 %v265
    %v1194 = vunpack.c.l.b16 %v266
    %v1195 = vunpack.c.h.b16 %v266
    %v1196 = vunpack.c.l.b16 %v267
    %v1197 = vunpack.c.l.b16 %v268
    %v1198 = vunpack.c.h.b16 %v268
    %v1199 = vunpack.c.l.b16 %v269
    %v1200 = vunpack.c.h.b16 %v269
    %v1201 = vunpack.c.l.b16 %v270
    %v1202 = vunpack.c.h.b16 %v270
    %v1203 = vunpack.c.l.b16 %v271
    %v1204 = vunpack.c.l.b16 %v272
    %v1205 = vunpack.c.h.b16 %v272
    %v1206 = vunpack.c.l.b16 %v273
    %v1207 = vunpack.c.h.b16 %v273
    %v1208 = vunpack.c.l.b16 %v274
    %v1209 = vunpack.c.h.b16 %v274
    %v1210 = vunpack.c.l.b16 %v275
    %v1211 = vunpack.c.l.b16 %v276
    %v1212 = vunpack.c.h.b16 %v276
    %v1213 = vunpack.c.l.b16 %v277
    %v1214 = vunpack.c.h.b16 %v277
    %v1215 = vunpack.c.l.b16 %v278
    %v1216 = vunpack.c.h.b16 %v278
    %v1217 = vunpack.c.l.b16 %v279
    %v1218 = vunpack.c.l.b16 %v280
    %v1219 = vunpack.c.h.b16 %v280
    %v1220 = vunpack.c.l.b16 %v281
    %v1221 = vunpack.c.h.b16 %v281
    %v1222 = vunpack.c.l.b16 %v282
    %v1223 = vunpack.c.h.b16 %v282
    %v1224 = vunpack.c.l.b16 %v283
    %v1225 = vunpack.c.l.b16 %v284
    %v1226 = vunpack.c.h.b16 %v284
    %v1227 = vunpack.c.l.b16 %v285
    %v1228 = vunpack.c.h.b16 %v285
    %v1229 = vunpack.c.l.b16 %v286
    %v1230 = vunpack.c.h.b16 %v286
    %v1231 = vunpack.c.l.b16 %v287
    %v1232 = vunpack.c.l.b16 %v288
    %v1233 = vunpack.c.h.b16 %v288
    %v1234 = vunpack.c.l.b16 %v289
    %v1235 = vunpack.c.h.b16 %v289
    %v1236 = vunpack.c.l.b16 %v290
    %v1237 = vunpack.c.h.b16 %v290
    %v1238 = vunpack.c.l.b16 %v291
    %v1239 = vunpack.c.l.b16 %v292
    %v1240 = vunpack.c.h.b16 %v292
    %v1241 = vunpack.c.l.b16 %v293
    %v1242 = vunpack.c.h.b16 %v293
    %v1243 = vunpack.c.l.b16 %v294
    %v1244 = vunpack.c.h.b16 %v294
    %v1245 = vunpack.c.l.b16 %v295
    %v1246 = vunpack.c.l.b16 %v296
    %v1247 = vunpack.c.h.b16 %v296
    %v1248 = vunpack.c.l.b16 %v297
    %v1249 = vunpack.c.h.b16 %v297
    %v1250 = vunpack.c.l.b16 %v298
    %v1251 = vunpack.c.h.b16 %v298
    %v1252 = vunpack.c.l.b16 %v299
    %v1253 = vunpack.c.l.b16 %v300
    %v1254 = vunpack.c.h.b16 %v300
    %v1255 = vunpack.c.l.b16 %v301
    %v1256 = vunpack.c.h.b16 %v301
    %v1257 = vunpack.c.l.b16 %v302
    %v1258 = vunpack.c.h.b16 %v302
    %v1259 = vunpack.c.l.b16 %v303
    %v1260 = vunpack.c.l.b16 %v304
    %v1261 = vunpack.c.h.b16 %v304
    %v1262 = vunpack.c.l.b16 %v305
    %v1263 = vunpack.c.h.b16 %v305
    %v1264 = vunpack.c.l.b16 %v306
    %v1265 = vunpack.c.h.b16 %v306
    %v1266 = vunpack.c.l.b16 %v307
    %v1267 = vunpack.c.l.b16 %v308
    %v1268 = vunpack.c.h.b16 %v308
    %v1269 = vunpack.c.l.b16 %v309
    %v1270 = vunpack.c.h.b16 %v309
    %v1271 = vunpack.c.l.b16 %v310
    %v1272 = vunpack.c.h.b16 %v310
    %v1273 = vunpack.c.l.b16 %v311
    %v1274 = vunpack.c.l.b16 %v312
    %v1275 = vunpack.c.h.b16 %v312
    %v1276 = vunpack.c.l.b16 %v313
    %v1277 = vunpack.c.h.b16 %v313
    %v1278 = vunpack.c.l.b16 %v314
    %v1279 = vunpack.c.h.b16 %v314
    %v1280 = vunpack.c.l.b16 %v315
    %v1281 = vunpack.c.l.b16 %v316
    %v1282 = vunpack.c.h.b16 %v316
    %v1283 = vunpack.c.l.b16 %v317
    %v1284 = vunpack.c.h.b16 %v317
    %v1285 = vunpack.c.l.b16 %v318
    %v1286 = vunpack.c.h.b16 %v318
    %v1287 = vunpack.c.l.b16 %v319
    %v1288 = vunpack.c.l.b16 %v320
    %v1289 = vunpack.c.h.b16 %v320
    %v1290 = vunpack.c.l.b16 %v321
    %v1291 = vunpack.c.h.b16 %v321
    %v1292 = vunpack.c.l.b16 %v322
    %v1293 = vunpack.c.h.b16 %v322
    %v1294 = vunpack.c.l.b16 %v323
    %v1295 = vunpack.c.l.b16 %v324
    %v1296 = vunpack.c.h.b16 %v324
    %v1297 = vunpack.c.l.b16 %v325
    %v1298 = vunpack.c.h.b16 %v325
    %v1299 = vunpack.c.l.b16 %v326
    %v1300 = vunpack.c.h.b16 %v326
    %v1301 = vunpack.c.l.b16 %v327
    %v1302 = vunpack.c.l.b16 %v328
    %v1303 = vunpack.c.h.b16 %v328
    %v1304 = vunpack.c.l.b16 %v329
    %v1305 = vunpack.c.h.b16 %v329
    %v1306 = vunpack.c.l.b16 %v330
    %v1307 = vunpack.c.h.b16 %v330
    %v1308 = vunpack.c.l.b16 %v331
    %v1309 = vunpack.c.l.b16 %v332
    %v1310 = vunpack.c.h.b16 %v332
    %v1311 = vunpack.c.l.b16 %v333
    %v1312 = vunpack.c.h.b16 %v333
    %v1313 = vunpack.c.l.b16 %v334
    %v1314 = vunpack.c.h.b16 %v334
    %v1315 = vunpack.c.l.b16 %v335
    %v1316 = vunpack.c.l.b16 %v336
    %v1317 = vunpack.c.h.b16 %v336
    %v1318 = vunpack.c.l.b16 %v337
    %v1319 = vunpack.c.h.b16 %v337
    %v1320 = vunpack.c.l.b16 %v338
    %v1321 = vunpack.c.h.b16 %v338
    %v1322 = vunpack.c.l.b16 %v339
    %v1323 = vunpack.c.l.b16 %v340
    %v1324 = vunpack.c.h.b16 %v340
    %v1325 = vunpack.c.l.b16 %v341
    %v1326 = vunpack.c.h.b16 %v341
    %v1327 = vunpack.c.l.b16 %v342
    %v1328 = vunpack.c.h.b16 %v342
    %v1329 = vunpack.c.l.b16 %v343
    %v1330 = vunpack.c.l.b16 %v344
    %v1331 = vunpack.c.h.b16 %v344
    %v1332 = vunpack.c.l.b16 %v345
    %v1333 = vunpack.c.h.b16 %v345
    %v1334 = vunpack.c.l.b16 %v346
    %v1335 = vunpack.c.h.b16 %v346
    %v1336 = vunpack.c.l.b16 %v347
    %v1337 = vunpack.c.l.b16 %v348
    %v1338 = vunpack.c.h.b16 %v348
    %v1339 = vunpack.c.l.b16 %v349
    %v1340 = vunpack.c.h.b16 %v349
    %v1341 = vunpack.c.l.b16 %v350
    %v1342 = vunpack.c.h.b16 %v350
    %v1343 = vunpack.c.l.b16 %v351
    %v1344 = vunpack.c.l.b16 %v352
    %v1345 = vunpack.c.h.b16 %v352
    %v1346 = vunpack.c.l.b16 %v353
    %v1347 = vunpack.c.h.b16 %v353
    %v1348 = vunpack.c.l.b16 %v354
    %v1349 = vunpack.c.h.b16 %v354
    %v1350 = vunpack.c.l.b16 %v355
    %v1351 = vunpack.c.l.b16 %v356
    %v1352 = vunpack.c.h.b16 %v356
    %v1353 = vunpack.c.l.b16 %v357
    %v1354 = vunpack.c.h.b16 %v357
    %v1355 = vunpack.c.l.b16 %v358
    %v1356 = vunpack.c.h.b16 %v358
    %v1357 = vunpack.c.l.b16 %v359
    %v1358 = vunpack.c.l.b16 %v360
    %v1359 = vunpack.c.h.b16 %v360
    %v1360 = vunpack.c.l.b16 %v361
    %v1361 = vunpack.c.h.b16 %v361
    %v1362 = vunpack.c.l.b16 %v362
    %v1363 = vunpack.c.h.b16 %v362
    %v1364 = vunpack.c.l.b16 %v363
    %v1365 = vunpack.c.l.b16 %v364
    %v1366 = vunpack.c.h.b16 %v364
    %v1367 = vunpack.c.l.b16 %v365
    %v1368 = vunpack.c.h.b16 %v365
    %v1369 = vunpack.c.l.b16 %v366
    %v1370 = vunpack.c.h.b16 %v366
    %v1371 = vunpack.c.l.b16 %v367
    %v1372 = vunpack.c.l.b16 %v368
    %v1373 = vunpack.c.h.b16 %v368
    %v1374 = vunpack.c.l.b16 %v369
    %v1375 = vunpack.c.h.b16 %v369
    %v1376 = vunpack.c.l.b16 %v370
    %v1377 = vunpack.c.h.b16 %v370
    %v1378 = vunpack.c.l.b16 %v371
    %v1379 = vunpack.c.l.b16 %v372
    %v1380 = vunpack.c.h.b16 %v372
    %v1381 = vunpack.c.l.b16 %v373
    %v1382 = vunpack.c.h.b16 %v373
    %v1383 = vunpack.c.l.b16 %v374
    %v1384 = vunpack.c.h.b16 %v374
    %v1385 = vunpack.c.l.b16 %v375
    %v1386 = vunpack.c.l.b16 %v376
    %v1387 = vunpack.c.h.b16 %v376
    %v1388 = vunpack.c.l.b16 %v377
    %v1389 = vunpack.c.h.b16 %v377
    %v1390 = vunpack.c.l.b16 %v378
    %v1391 = vunpack.c.h.b16 %v378
    %v1392 = vunpack.c.l.b16 %v379
    %v1393 = vunpack.c.l.b16 %v380
    %v1394 = vunpack.c.h.b16 %v380
    %v1395 = vunpack.c.l.b16 %v381
    %v1396 = vunpack.c.h.b16 %v381
    %v1397 = vunpack.c.l.b16 %v382
    %v1398 = vunpack.c.h.b16 %v382
    %v1399 = vunpack.c.l.b16 %v383
    %v1400 = vunpack.c.l.b16 %v384
    %v1401 = vunpack.c.h.b16 %v384
    %v1402 = vunpack.c.l.b16 %v385
    %v1403 = vunpack.c.h.b16 %v385
    %v1404 = vunpack.c.l.b16 %v386
    %v1405 = vunpack.c.h.b16 %v386
    %v1406 = vunpack.c.l.b16 %v387
    %v1407 = vunpack.c.l.b16 %v388
    %v1408 = vunpack.c.h.b16 %v388
    %v1409 = vunpack.c.l.b16 %v389
    %v1410 = vunpack.c.h.b16 %v389
    %v1411 = vunpack.c.l.b16 %v390
    %v1412 = vunpack.c.h.b16 %v390
    %v1413 = vunpack.c.l.b16 %v391
    %v1414 = vunpack.c.l.b16 %v392
    %v1415 = vunpack.c.h.b16 %v392
    %v1416 = vunpack.c.l.b16 %v393
    %v1417 = vunpack.c.h.b16 %v393
    %v1418 = vunpack.c.l.b16 %v394
    %v1419 = vunpack.c.h.b16 %v394
    %v1420 = vunpack.c.l.b16 %v395
    %v1421 = vunpack.c.l.b16 %v396
    %v1422 = vunpack.c.h.b16 %v396
    %v1423 = vunpack.c.l.b16 %v397
    %v1424 = vunpack.c.h.b16 %v397
    %v1425 = vunpack.c.l.b16 %v398
    %v1426 = vunpack.c.h.b16 %v398
    %v1427 = vunpack.c.l.b16 %v399
    %v1428 = vunpack.c.l.b16 %v400
    %v1429 = vunpack.c.h.b16 %v400
    %v1430 = vunpack.c.l.b16 %v401
    %v1431 = vunpack.c.h.b16 %v401
    %v1432 = vunpack.c.l.b16 %v402
    %v1433 = vunpack.c.h.b16 %v402
    %v1434 = vunpack.c.l.b16 %v403
    %v1435 = vunpack.c.l.b16 %v404
    %v1436 = vunpack.c.h.b16 %v404
    %v1437 = vunpack.c.l.b16 %v405
    %v1438 = vunpack.c.h.b16 %v405
    %v1439 = vunpack.c.l.b16 %v406
    %v1440 = vunpack.c.h.b16 %v406
    %v1441 = vunpack.c.l.b16 %v407
    %v1442 = vunpack.c.l.b16 %v408
    %v1443 = vunpack.c.h.b16 %v408
    %v1444 = vunpack.c.l.b16 %v409
    %v1445 = vunpack.c.h.b16 %v409
    %v1446 = vunpack.c.l.b16 %v410
    %v1447 = vunpack.c.h.b16 %v410
    %v1448 = vunpack.c.l.b16 %v411
    %v1449 = vunpack.c.l.b16 %v412
    %v1450 = vunpack.c.h.b16 %v412
    %v1451 = vunpack.c.l.b16 %v413
    %v1452 = vunpack.c.h.b16 %v413
    %v1453 = vunpack.c.l.b16 %v414
    %v1454 = vunpack.c.h.b16 %v414
    %v1455 = vunpack.c.l.b16 %v415
    %v1456 = vunpack.c.l.b16 %v416
    %v1457 = vunpack.c.h.b16 %v416
    %v1458 = vunpack.c.l.b16 %v417
    %v1459 = vunpack.c.h.b16 %v417
    %v1460 = vunpack.c.l.b16 %v418
    %v1461 = vunpack.c.h.b16 %v418
    %v1462 = vunpack.c.l.b16 %v419
    %v1463 = vunpack.c.l.b16 %v420
    %v1464 = vunpack.c.h.b16 %v420
    %v1465 = vunpack.c.l.b16 %v421
    %v1466 = vunpack.c.h.b16 %v421
    %v1467 = vunpack.c.l.b16 %v422
    %v1468 = vunpack.c.h.b16 %v422
    %v1469 = vunpack.c.l.b16 %v423
    %v1470 = vunpack.c.l.b16 %v424
    %v1471 = vunpack.c.h.b16 %v424
    %v1472 = vunpack.c.l.b16 %v425
    %v1473 = vunpack.c.h.b16 %v425
    %v1474 = vunpack.c.l.b16 %v426
    %v1475 = vunpack.c.h.b16 %v426
    %v1476 = vunpack.c.l.b16 %v427
    %v1477 = vunpack.c.l.b16 %v428
    %v1478 = vunpack.c.h.b16 %v428
    %v1479 = vunpack.c.l.b16 %v429
    %v1480 = vunpack.c.h.b16 %v429
    %v1481 = vunpack.c.l.b16 %v430
    %v1482 = vunpack.c.h.b16 %v430
    %v1483 = vunpack.c.l.b16 %v431
    %v1484 = vunpack.c.l.b16 %v432
    %v1485 = vunpack.c.h.b16 %v432
    %v1486 = vunpack.c.l.b16 %v433
    %v1487 = vunpack.c.h.b16 %v433
    %v1488 = vunpack.c.l.b16 %v434
    %v1489 = vunpack.c.h.b16 %v434
    %v1490 = vunpack.c.l.b16 %v435
    %v1491 = vunpack.c.l.b16 %v436
    %v1492 = vunpack.c.h.b16 %v436
    %v1493 = vunpack.c.l.b16 %v437
    %v1494 = vunpack.c.h.b16 %v437
    %v1495 = vunpack.c.l.b16 %v438
    %v1496 = vunpack.c.h.b16 %v438
    %v1497 = vunpack.c.l.b16 %v439
    %v1498 = vunpack.c.l.b16 %v440
    %v1499 = vunpack.c.h.b16 %v440
    %v1500 = vunpack.c.l.b16 %v441
    %v1501 = vunpack.c.h.b16 %v441
    %v1502 = vunpack.c.l.b16 %v442
    %v1503 = vunpack.c.h.b16 %v442
    %v1504 = vunpack.c.l.b16 %v443
    %v1505 = vunpack.c.l.b16 %v444
    %v1506 = vunpack.c.h.b16 %v444
    %v1507 = vunpack.c.l.b16 %v445
    %v1508 = vunpack.c.h.b16 %v445
    %v1509 = vunpack.c.l.b16 %v446
    %v1510 = vunpack.c.h.b16 %v446
    %v1511 = vunpack.c.l.b16 %v447
    %v1512 = vunpack.c.l.b16 %v448
    %v1513 = vunpack.c.h.b16 %v448
    %v1514 = vunpack.c.l.b16 %v449
    %v1515 = vunpack.c.h.b16 %v449
    %v1516 = vunpack.c.l.b16 %v450
    %v1517 = vunpack.c.h.b16 %v450
    %v1518 = vunpack.c.l.b16 %v451
    %v1519 = vunpack.c.l.b16 %v452
    %v1520 = vunpack.c.h.b16 %v452
    %v1521 = vunpack.c.l.b16 %v453
    %v1522 = vunpack.c.h.b16 %v453
    %v1523 = vunpack.c.l.b16 %v454
    %v1524 = vunpack.c.h.b16 %v454
    %v1525 = vunpack.c.l.b16 %v455
    %v1526 = vunpack.c.l.b16 %v456
    %v1527 = vunpack.c.h.b16 %v456
    %v1528 = vunpack.c.l.b16 %v457
    %v1529 = vunpack.c.h.b16 %v457
    %v1530 = vunpack.c.l.b16 %v458
    %v1531 = vunpack.c.h.b16 %v458
    %v1532 = vunpack.c.l.b16 %v459
    %v1533 = vunpack.c.l.b16 %v460
    %v1534 = vunpack.c.h.b16 %v460
    %v1535 = vunpack.c.l.b16 %v461
    %v1536 = vunpack.c.h.b16 %v461
    %v1537 = vunpack.c.l.b16 %v462
    %v1538 = vunpack.c.h.b16 %v462
    %v1539 = vunpack.c.l.b16 %v463
    %v1540 = vunpack.c.l.b16 %v464
    %v1541 = vunpack.c.h.b16 %v464
    %v1542 = vunpack.c.l.b16 %v465
    %v1543 = vunpack.c.h.b16 %v465
    %v1544 = vunpack.c.l.b16 %v466
    %v1545 = vunpack.c.h.b16 %v466
    %v1546 = vunpack.c.l.b16 %v467
    %v1547 = vunpack.c.l.b16 %v468
    %v1548 = vunpack.c.h.b16 %v468
    %v1549 = vunpack.c.l.b16 %v469
    %v1550 = vunpack.c.h.b16 %v469
    %v1551 = vunpack.c.l.b16 %v470
    %v1552 = vunpack.c.h.b16 %v470
    %v1553 = vunpack.c.l.b16 %v471
    %v1554 = vunpack.c.l.b16 %v472
    %v1555 = vunpack.c.h.b16 %v472
    %v1556 = vunpack.c.l.b16 %v473
    %v1557 = vunpack.c.h.b16 %v473
    %v1558 = vunpack.c.l.b16 %v474
    %v1559 = vunpack.c.h.b16 %v474
    %v1560 = vunpack.c.l.b16 %v475
    %v1561 = vunpack.c.l.b16 %v476
    %v1562 = vunpack.c.h.b16 %v476
    %v1563 = vunpack.c.l.b16 %v477
    %v1564 = vunpack.c.h.b16 %v477
    %v1565 = vunpack.c.l.b16 %v478
    %v1566 = vunpack.c.h.b16 %v478
    %v1567 = vunpack.c.l.b16 %v479
    %v1568 = vunpack.c.l.b16 %v480
    %v1569 = vunpack.c.h.b16 %v480
    %v1570 = vunpack.c.l.b16 %v481
    %v1571 = vunpack.c.h.b16 %v481
    %v1572 = vunpack.c.l.b16 %v482
    %v1573 = vunpack.c.h.b16 %v482
    %v1574 = vunpack.c.l.b16 %v483
    %v1575 = vunpack.c.l.b16 %v484
    %v1576 = vunpack.c.h.b16 %v484
    %v1577 = vunpack.c.l.b16 %v485
    %v1578 = vunpack.c.h.b16 %v485
    %v1579 = vunpack.c.l.b16 %v486
    %v1580 = vunpack.c.h.b16 %v486
    %v1581 = vunpack.c.l.b16 %v487
    %v1582 = vunpack.c.l.b16 %v488
    %v1583 = vunpack.c.h.b16 %v488
    %v1584 = vunpack.c.l.b16 %v489
    %v1585 = vunpack.c.h.b16 %v489
    %v1586 = vunpack.c.l.b16 %v490
    %v1587 = vunpack.c.h.b16 %v490
    %v1588 = vunpack.c.l.b16 %v491
    %v1589 = vunpack.c.l.b16 %v492
    %v1590 = vunpack.c.h.b16 %v492
    %v1591 = vunpack.c.l.b16 %v493
    %v1592 = vunpack.c.h.b16 %v493
    %v1593 = vunpack.c.l.b16 %v494
    %v1594 = vunpack.c.h.b16 %v494
    %v1595 = vunpack.c.l.b16 %v495
    %v1596 = vunpack.c.l.b16 %v496
    %v1597 = vunpack.c.h.b16 %v496
    %v1598 = vunpack.c.l.b16 %v497
    %v1599 = vunpack.c.h.b16 %v497
    %v1600 = vunpack.c.l.b16 %v498
    %v1601 = vunpack.c.h.b16 %v498
    %v1602 = vunpack.c.l.b16 %v499
    %v1603 = vunpack.c.l.b16 %v500
    %v1604 = vunpack.c.h.b16 %v500
    %v1605 = vunpack.c.l.b16 %v501
    %v1606 = vunpack.c.h.b16 %v501
    %v1607 = vunpack.c.l.b16 %v502
    %v1608 = vunpack.c.h.b16 %v502
    %v1609 = vunpack.c.l.b16 %v503
    %v1610 = vunpack.c.l.b16 %v504
    %v1611 = vunpack.c.h.b16 %v504
    %v1612 = vunpack.c.l.b16 %v505
    %v1613 = vunpack.c.h.b16 %v505
    %v1614 = vunpack.c.l.b16 %v506
    %v1615 = vunpack.c.h.b16 %v506
    %v1616 = vunpack.c.l.b16 %v507
    %v1617 = vunpack.c.l.b16 %v508
    %v1618 = vunpack.c.h.b16 %v508
    %v1619 = vunpack.c.l.b16 %v509
    %v1620 = vunpack.c.h.b16 %v509
    %v1621 = vunpack.c.l.b16 %v510
    %v1622 = vunpack.c.h.b16 %v510
    %v1623 = vunpack.c.l.b16 %v511
    %v1624 = vunpack.c.l.b16 %v512
    %v1625 = vunpack.c.h.b16 %v512
    %v1626 = vunpack.c.l.b16 %v513
    %v1627 = vunpack.c.h.b16 %v513
    %v1628 = vunpack.c.l.b16 %v514
    %v1629 = vunpack.c.h.b16 %v514
    %v1630 = vunpack.c.l.b16 %v515
    %v1631 = vpack.c.b16 %v952, %v945
    %v1632 = vpack.c.b16 %v953, %v946
    %v1633 = vpack.c.b16 %v954, %v947
    %v1634 = vpack.c.b16 %v955, %v948
    %v1635 = vpack.c.b16 %v956, %v949
    %v1636 = vpack.c.b16 %v957, %v950
    %v1637 = vpack.c.b16 %v958, %v951
    %v1638 = vpack.c.b16 %v966, %v959
    %v1639 = vpack.c.b16 %v967, %v960
    %v1640 = vpack.c.b16 %v968, %v961
    %v1641 = vpack.c.b16 %v969, %v962
    %v1642 = vpack.c.b16 %v970, %v963
    %v1643 = vpack.c.b16 %v971, %v964
    %v1644 = vpack.c.b16 %v972, %v965
    %v1645 = vpack.c.b16 %v980, %v973
    %v1646 = vpack.c.b16 %v981, %v974
    %v1647 = vpack.c.b16 %v982, %v975
    %v1648 = vpack.c.b16 %v983, %v976
    %v1649 = vpack.c.b16 %v984, %v977
    %v1650 = vpack.c.b16 %v985, %v978
    %v1651 = vpack.c.b16 %v986, %v979
    %v1652 = vpack.c.b16 %v994, %v987
    %v1653 = vpack.c.b16 %v995, %v988
    %v1654 = vpack.c.b16 %v996, %v989
    %v1655 = vpack.c.b16 %v997, %v990
    %v1656 = vpack.c.b16 %v998, %v991
    %v1657 = vpack.c.b16 %v999, %v992
    %v1658 = vpack.c.b16 %v1000, %v993
    %v1659 = vpack.c.b16 %v1008, %v1001
    %v1660 = vpack.c.b16 %v1009, %v1002
    %v1661 = vpack.c.b16 %v1010, %v1003
    %v1662 = vpack.c.b16 %v1011, %v1004
    %v1663 = vpack.c.b16 %v1012, %v1005
    %v1664 = vpack.c.b16 %v1013, %v1006
    %v1665 = vpack.c.b16 %v1014, %v1007
    %v1666 = vpack.c.b16 %v1022, %v1015
    %v1667 = vpack.c.b16 %v1023, %v1016
    %v1668 = vpack.c.b16 %v1024, %v1017
    %v1669 = vpack.c.b16 %v1025, %v1018
    %v1670 = vpack.c.b16 %v1026, %v1019
    %v1671 = vpack.c.b16 %v1027, %v1020
    %v1672 = vpack.c.b16 %v1028, %v1021
    %v1673 = vpack.c.b16 %v1036, %v1029
    %v1674 = vpack.c.b16 %v1037, %v1030
    %v1675 = vpack.c.b16 %v1038, %v1031
    %v1676 = vpack.c.b16 %v1039, %v1032
    %v1677 = vpack.c.b16 %v1040, %v1033
    %v1678 = vpack.c.b16 %v1041, %v1034
    %v1679 = vpack.c.b16 %v1042, %v1035
    %v1680 = vpack.c.b16 %v1050, %v1043
    %v1681 = vpack.c.b16 %v1051, %v1044
    %v1682 = vpack.c.b16 %v1052, %v1045
    %v1683 = vpack.c.b16 %v1053, %v1046
    %v1684 = vpack.c.b16 %v1054, %v1047
    %v1685 = vpack.c.b16 %v1055, %v1048
    %v1686 = vpack.c.b16 %v1056, %v1049
    %v1687 = vpack.c.b16 %v1064, %v1057
    %v1688 = vpack.c.b16 %v1065, %v1058
    %v1689 = vpack.c.b16 %v1066, %v1059
    %v1690 = vpack.c.b16 %v1067, %v1060
    %v1691 = vpack.c.b16 %v1068, %v1061
    %v1692 = vpack.c.b16 %v1069, %v1062
    %v1693 = vpack.c.b16 %v1070, %v1063
    %v1694 = vpack.c.b16 %v1078, %v1071
    %v1695 = vpack.c.b16 %v1079, %v1072
    %v1696 = vpack.c.b16 %v1080, %v1073
    %v1697 = vpack.c.b16 %v1081, %v1074
    %v1698 = vpack.c.b16 %v1082, %v1075
    %v1699 = vpack.c.b16 %v1083, %v1076
    %v1700 = vpack.c.b16 %v1084, %v1077
    %v1701 = vpack.c.b16 %v1092, %v1085
    %v1702 = vpack.c.b16 %v1093, %v1086
    %v1703 = vpack.c.b16 %v1094, %v1087
    %v1704 = vpack.c.b16 %v1095, %v1088
    %v1705 = vpack.c.b16 %v1096, %v1089
    %v1706 = vpack.c.b16 %v1097, %v1090
    %v1707 = vpack.c.b16 %v1098, %v1091
    %v1708 = vpack.c.b16 %v1106, %v1099
    %v1709 = vpack.c.b16 %v1107, %v1100
    %v1710 = vpack.c.b16 %v1108, %v1101
    %v1711 = vpack.c.b16 %v1109, %v1102
    %v1712 = vpack.c.b16 %v1110, %v1103
    %v1713 = vpack.c.b16 %v1111, %v1104
    %v1714 = vpack.c.b16 %v1112, %v1105
    %v1715 = vpack.c.b16 %v1120, %v1113
    %v1716 = vpack.c.b16 %v1121, %v1114
    %v1717 = vpack.c.b16 %v1122, %v1115
    %v1718 = vpack.c.b16 %v1123, %v1116
    %v1719 = vpack.c.b16 %v1124, %v1117
    %v1720 = vpack.c.b16 %v1125, %v1118
    %v1721 = vpack.c.b16 %v1126, %v1119
    %v1722 = vpack.c.b16 %v1134, %v1127
    %v1723 = vpack.c.b16 %v1135, %v1128
    %v1724 = vpack.c.b16 %v1136, %v1129
    %v1725 = vpack.c.b16 %v1137, %v1130
    %v1726 = vpack.c.b16 %v1138, %v1131
    %v1727 = vpack.c.b16 %v1139, %v1132
    %v1728 = vpack.c.b16 %v1140, %v1133
    %v1729 = vpack.c.b16 %v1148, %v1141
    %v1730 = vpack.c.b16 %v1149, %v1142
    %v1731 = vpack.c.b16 %v1150, %v1143
    %v1732 = vpack.c.b16 %v1151, %v1144
    %v1733 = vpack.c.b16 %v1152, %v1145
    %v1734 = vpack.c.b16 %v1153, %v1146
    %v1735 = vpack.c.b16 %v1154, %v1147
    %v1736 = vpack.c.b16 %v1162, %v1155
    %v1737 = vpack.c.b16 %v1163, %v1156
    %v1738 = vpack.c.b16 %v1164, %v1157
    %v1739 = vpack.c.b16 %v1165, %v1158
    %v1740 = vpack.c.b16 %v1166, %v1159
    %v1741 = vpack.c.b16 %v1167, %v1160
    %v1742 = vpack.c.b16 %v1168, %v1161
    %v1743 = vpack.c.b16 %v1176, %v1169
    %v1744 = vpack.c.b16 %v1177, %v1170
    %v1745 = vpack.c.b16 %v1178, %v1171
    %v1746 = vpack.c.b16 %v1179, %v1172
    %v1747 = vpack.c.b16 %v1180, %v1173
    %v1748 = vpack.c.b16 %v1181, %v1174
    %v1749 = vpack.c.b16 %v1182, %v1175
    %v1750 = vpack.c.b16 %v1190, %v1183
    %v1751 = vpack.c.b16 %v1191, %v1184
    %v1752 = vpack.c.b16 %v1192, %v1185
    %v1753 = vpack.c.b16 %v1193, %v1186
    %v1754 = vpack.c.b16 %v1194, %v1187
    %v1755 = vpack.c.b16 %v1195, %v1188
    %v1756 = vpack.c.b16 %v1196, %v1189
    %v1757 = vpack.c.b16 %v1204, %v1197
    %v1758 = vpack.c.b16 %v1205, %v1198
    %v1759 = vpack.c.b16 %v1206, %v1199
    %v1760 = vpack.c.b16 %v1207, %v1200
    %v1761 = vpack.c.b16 %v1208, %v1201
    %v1762 = vpack.c.b16 %v1209, %v1202
    %v1763 = vpack.c.b16 %v1210, %v1203
    %v1764 = vpack.c.b16 %v1218, %v1211
    %v1765 = vpack.c.b16 %v1219, %v1212
    %v1766 = vpack.c.b16 %v1220, %v1213
    %v1767 = vpack.c.b16 %v1221, %v1214
    %v1768 = vpack.c.b16 %v1222, %v1215
    %v1769 = vpack.c.b16 %v1223, %v1216
    %v1770 = vpack.c.b16 %v1224, %v1217
    %v1771 = vpack.c.b16 %v1232, %v1225
    %v1772 = vpack.c.b16 %v1233, %v1226
    %v1773 = vpack.c.b16 %v1234, %v1227
    %v1774 = vpack.c.b16 %v1235, %v1228
    %v1775 = vpack.c.b16 %v1236, %v1229
    %v1776 = vpack.c.b16 %v1237, %v1230
    %v1777 = vpack.c.b16 %v1238, %v1231
    %v1778 = vpack.c.b16 %v1246, %v1239
    %v1779 = vpack.c.b16 %v1247, %v1240
    %v1780 = vpack.c.b16 %v1248, %v1241
    %v1781 = vpack.c.b16 %v1249, %v1242
    %v1782 = vpack.c.b16 %v1250, %v1243
    %v1783 = vpack.c.b16 %v1251, %v1244
    %v1784 = vpack.c.b16 %v1252, %v1245
    %v1785 = vpack.c.b16 %v1260, %v1253
    %v1786 = vpack.c.b16 %v1261, %v1254
    %v1787 = vpack.c.b16 %v1262, %v1255
    %v1788 = vpack.c.b16 %v1263, %v1256
    %v1789 = vpack.c.b16 %v1264, %v1257
    %v1790 = vpack.c.b16 %v1265, %v1258
    %v1791 = vpack.c.b16 %v1266, %v1259
    %v1792 = vpack.c.b16 %v1274, %v1267
    %v1793 = vpack.c.b16 %v1275, %v1268
    %v1794 = vpack.c.b16 %v1276, %v1269
    %v1795 = vpack.c.b16 %v1277, %v1270
    %v1796 = vpack.c.b16 %v1278, %v1271
    %v1797 = vpack.c.b16 %v1279, %v1272
    %v1798 = vpack.c.b16 %v1280, %v1273
    %v1799 = vpack.c.b16 %v1288, %v1281
    %v1800 = vpack.c.b16 %v1289, %v1282
    %v1801 = vpack.c.b16 %v1290, %v1283
    %v1802 = vpack.c.b16 %v1291, %v1284
    %v1803 = vpack.c.b16 %v1292, %v1285
    %v1804 = vpack.c.b16 %v1293, %v1286
    %v1805 = vpack.c.b16 %v1294, %v1287
    %v1806 = vpack.c.b16 %v1302, %v1295
    %v1807 = vpack.c.b16 %v1303, %v1296
    %v1808 = vpack.c.b16 %v1304, %v1297
    %v1809 = vpack.c.b16 %v1305, %v1298
    %v1810 = vpack.c.b16 %v1306, %v1299
    %v1811 = vpack.c.b16 %v1307, %v1300
    %v1812 = vpack.c.b16 %v1308, %v1301
    %v1813 = vpack.c.b16 %v1316, %v1309
    %v1814 = vpack.c.b16 %v1317, %v1310
    %v1815 = vpack.c.b16 %v1318, %v1311
    %v1816 = vpack.c.b16 %v1319, %v1312
    %v1817 = vpack.c.b16 %v1320, %v1313
    %v1818 = vpack.c.b16 %v1321, %v1314
    %v1819 = vpack.c.b16 %v1322, %v1315
    %v1820 = vpack.c.b16 %v1330, %v1323
    %v1821 = vpack.c.b16 %v1331, %v1324
    %v1822 = vpack.c.b16 %v1332, %v1325
    %v1823 = vpack.c.b16 %v1333, %v1326
    %v1824 = vpack.c.b16 %v1334, %v1327
    %v1825 = vpack.c.b16 %v1335, %v1328
    %v1826 = vpack.c.b16 %v1336, %v1329
    %v1827 = vpack.c.b16 %v1344, %v1337
    %v1828 = vpack.c.b16 %v1345, %v1338
    %v1829 = vpack.c.b16 %v1346, %v1339
    %v1830 = vpack.c.b16 %v1347, %v1340
    %v1831 = vpack.c.b16 %v1348, %v1341
    %v1832 = vpack.c.b16 %v1349, %v1342
    %v1833 = vpack.c.b16 %v1350, %v1343
    %v1834 = vpack.c.b16 %v1358, %v1351
    %v1835 = vpack.c.b16 %v1359, %v1352
    %v1836 = vpack.c.b16 %v1360, %v1353
    %v1837 = vpack.c.b16 %v1361, %v1354
    %v1838 = vpack.c.b16 %v1362, %v1355
    %v1839 = vpack.c.b16 %v1363, %v1356
    %v1840 = vpack.c.b16 %v1364, %v1357
    %v1841 = vpack.c.b16 %v1372, %v1365
    %v1842 = vpack.c.b16 %v1373, %v1366
    %v1843 = vpack.c.b16 %v1374, %v1367
    %v1844 = vpack.c.b16 %v1375, %v1368
    %v1845 = vpack.c.b16 %v1376, %v1369
    %v1846 = vpack.c.b16 %v1377, %v1370
    %v1847 = vpack.c.b16 %v1378, %v1371
    %v1848 = vpack.c.b16 %v1386, %v1379
    %v1849 = vpack.c.b16 %v1387, %v1380
    %v1850 = vpack.c.b16 %v1388, %v1381
    %v1851 = vpack.c.b16 %v1389, %v1382
    %v1852 = vpack.c.b16 %v1390, %v1383
    %v1853 = vpack.c.b16 %v1391, %v1384
    %v1854 = vpack.c.b16 %v1392, %v1385
    %v1855 = vpack.c.b16 %v1400, %v1393
    %v1856 = vpack.c.b16 %v1401, %v1394
    %v1857 = vpack.c.b16 %v1402, %v1395
    %v1858 = vpack.c.b16 %v1403, %v1396
    %v1859 = vpack.c.b16 %v1404, %v1397
    %v1860 = vpack.c.b16 %v1405, %v1398
    %v1861 = vpack.c.b16 %v1406, %v1399
    %v1862 = vpack.c.b16 %v1414, %v1407
    %v1863 = vpack.c.b16 %v1415, %v1408
    %v1864 = vpack.c.b16 %v1416, %v1409
    %v1865 = vpack.c.b16 %v1417, %v1410
    %v1866 = vpack.c.b16 %v1418, %v1411
    %v1867 = vpack.c.b16 %v1419, %v1412
    %v1868 = vpack.c.b16 %v1420, %v1413
    %v1869 = vpack.c.b16 %v1428, %v1421
    %v1870 = vpack.c.b16 %v1429, %v1422
    %v1871 = vpack.c.b16 %v1430, %v1423
    %v1872 = vpack.c.b16 %v1431, %v1424
    %v1873 = vpack.c.b16 %v1432, %v1425
    %v1874 = vpack.c.b16 %v1433, %v1426
    %v1875 = vpack.c.b16 %v1434, %v1427
    %v1876 = vpack.c.b16 %v1442, %v1435
    %v1877 = vpack.c.b16 %v1443, %v1436
    %v1878 = vpack.c.b16 %v1444, %v1437
    %v1879 = vpack.c.b16 %v1445, %v1438
    %v1880 = vpack.c.b16 %v1446, %v1439
    %v1881 = vpack.c.b16 %v1447, %v1440
    %v1882 = vpack.c.b16 %v1448, %v1441
    %v1883 = vpack.c.b16 %v1456, %v1449
    %v1884 = vpack.c.b16 %v1457, %v1450
    %v1885 = vpack.c.b16 %v1458, %v1451
    %v1886 = vpack.c.b16 %v1459, %v1452
    %v1887 = vpack.c.b16 %v1460, %v1453
    %v1888 = vpack.c.b16 %v1461, %v1454
    %v1889 = vpack.c.b16 %v1462, %v1455
    %v1890 = vpack.c.b16 %v1470, %v1463
    %v1891 = vpack.c.b16 %v1471, %v1464
    %v1892 = vpack.c.b16 %v1472, %v1465
    %v1893 = vpack.c.b16 %v1473, %v1466
    %v1894 = vpack.c.b16 %v1474, %v1467
    %v1895 = vpack.c.b16 %v1475, %v1468
    %v1896 = vpack.c.b16 %v1476, %v1469
    %v1897 = vpack.c.b16 %v1484, %v1477
    %v1898 = vpack.c.b16 %v1485, %v1478
    %v1899 = vpack.c.b16 %v1486, %v1479
    %v1900 = vpack.c.b16 %v1487, %v1480
    %v1901 = vpack.c.b16 %v1488, %v1481
    %v1902 = vpack.c.b16 %v1489, %v1482
    %v1903 = vpack.c.b16 %v1490, %v1483
    %v1904 = vpack.c.b16 %v1498, %v1491
    %v1905 = vpack.c.b16 %v1499, %v1492
    %v1906 = vpack.c.b16 %v1500, %v1493
    %v1907 = vpack.c.b16 %v1501, %v1494
    %v1908 = vpack.c.b16 %v1502, %v1495
    %v1909 = vpack.c.b16 %v1503, %v1496
    %v1910 = vpack.c.b16 %v1504, %v1497
    %v1911 = vpack.c.b16 %v1512, %v1505
    %v1912 = vpack.c.b16 %v1513, %v1506
    %v1913 = vpack.c.b16 %v1514, %v1507
    %v1914 = vpack.c.b16 %v1515, %v1508
    %v1915 = vpack.c.b16 %v1516, %v1509
    %v1916 = vpack.c.b16 %v1517, %v1510
    %v1917 = vpack.c.b16 %v1518, %v1511
    %v1918 = vpack.c.b16 %v1526, %v1519
    %v1919 = vpack.c.b16 %v1527, %v1520
    %v1920 = vpack.c.b16 %v1528, %v1521
    %v1921 = vpack.c.b16 %v1529, %v1522
    %v1922 = vpack.c.b16 %v1530, %v1523
    %v1923 = vpack.c.b16 %v1531, %v1524
    %v1924 = vpack.c.b16 %v1532, %v1525
    %v1925 = vpack.c.b16 %v1540, %v1533
    %v1926 = vpack.c.b16 %v1541, %v1534
    %v1927 = vpack.c.b16 %v1542, %v1535
    %v1928 = vpack.c.b16 %v1543, %v1536
    %v1929 = vpack.c.b16 %v1544, %v1537
    %v1930 = vpack.c.b16 %v1545, %v1538
    %v1931 = vpack.c.b16 %v1546, %v1539
    %v1932 = vpack.c.b16 %v1554, %v1547
    %v1933 = vpack.c.b16 %v1555, %v1548
    %v1934 = vpack.c.b16 %v1556, %v1549
    %v1935 = vpack.c.b16 %v1557, %v1550
    %v1936 = vpack.c.b16 %v1558, %v1551
    %v1937 = vpack.c.b16 %v1559, %v1552
    %v1938 = vpack.c.b16 %v1560, %v1553
    %v1939 = vpack.c.b16 %v1568, %v1561
    %v1940 = vpack.c.b16 %v1569, %v1562
    %v1941 = vpack.c.b16 %v1570, %v1563
    %v1942 = vpack.c.b16 %v1571, %v1564
    %v1943 = vpack.c.b16 %v1572, %v1565
    %v1944 = vpack.c.b16 %v1573, %v1566
    %v1945 = vpack.c.b16 %v1574, %v1567
    %v1946 = vpack.c.b16 %v1582, %v1575
    %v1947 = vpack.c.b16 %v1583, %v1576
    %v1948 = vpack.c.b16 %v1584, %v1577
    %v1949 = vpack.c.b16 %v1585, %v1578
    %v1950 = vpack.c.b16 %v1586, %v1579
    %v1951 = vpack.c.b16 %v1587, %v1580
    %v1952 = vpack.c.b16 %v1588, %v1581
    %v1953 = vpack.c.b16 %v1596, %v1589
    %v1954 = vpack.c.b16 %v1597, %v1590
    %v1955 = vpack.c.b16 %v1598, %v1591
    %v1956 = vpack.c.b16 %v1599, %v1592
    %v1957 = vpack.c.b16 %v1600, %v1593
    %v1958 = vpack.c.b16 %v1601, %v1594
    %v1959 = vpack.c.b16 %v1602, %v1595
    %v1960 = vpack.c.b16 %v1610, %v1603
    %v1961 = vpack.c.b16 %v1611, %v1604
    %v1962 = vpack.c.b16 %v1612, %v1605
    %v1963 = vpack.c.b16 %v1613, %v1606
    %v1964 = vpack.c.b16 %v1614, %v1607
    %v1965 = vpack.c.b16 %v1615, %v1608
    %v1966 = vpack.c.b16 %v1616, %v1609
    %v1967 = vpack.c.b16 %v1624, %v1617
    %v1968 = vpack.c.b16 %v1625, %v1618
    %v1969 = vpack.c.b16 %v1626, %v1619
    %v1970 = vpack.c.b16 %v1627, %v1620
    %v1971 = vpack.c.b16 %v1628, %v1621
    %v1972 = vpack.c.b16 %v1629, %v1622
    %v1973 = vpack.c.b16 %v1630, %v1623
    %vm2317 = vcmask 130048
    %v2319 = vsel %vm2317, %v123, 0
    %2321 = vmatprep.subr.bf16.mxu0 %v1632
    %2322 = vmatpush1.bf16.msra.mxu0 %v1631
    %2323 = vmatprep.subr.bf16.mxu0 %v1639
    %2324 = vmatpush1.bf16.msra.mxu0 %v1638
    %2325 = vmatprep.subr.bf16.mxu0 %v1646
    %2326 = vmatpush1.bf16.msra.mxu0 %v1645
    %2327 = vmatprep.subr.bf16.mxu0 %v1653
    %2328 = vmatpush1.bf16.msra.mxu0 %v1652
    %2329 = vmatprep.subr.bf16.mxu0 %v1660
    %2330 = vmatpush1.bf16.msra.mxu0 %v1659
    %2331 = vmatprep.subr.bf16.mxu0 %v1667
    %2332 = vmatpush1.bf16.msra.mxu0 %v1666
    %2333 = vmatprep.subr.bf16.mxu0 %v1674
    %2334 = vmatpush1.bf16.msra.mxu0 %v1673
    %2335 = vmatprep.subr.bf16.mxu0 %v1681
    %2336 = vmatpush1.bf16.msra.mxu0 %v1680
    %2337 = vmatprep.subr.bf16.mxu0 %v1688
    %2338 = vmatpush1.bf16.msra.mxu0 %v1687
    %2339 = vmatprep.subr.bf16.mxu0 %v1695
    %2340 = vmatpush1.bf16.msra.mxu0 %v1694
    %2341 = vmatprep.subr.bf16.mxu0 %v1702
    %2342 = vmatpush1.bf16.msra.mxu0 %v1701
    %2343 = vmatprep.subr.bf16.mxu0 %v1709
    %2344 = vmatpush1.bf16.msra.mxu0 %v1708
    %2345 = vmatprep.subr.bf16.mxu0 %v1716
    %2346 = vmatpush1.bf16.msra.mxu0 %v1715
    %2347 = vmatprep.subr.bf16.mxu0 %v1723
    %2348 = vmatpush1.bf16.msra.mxu0 %v1722
    %2349 = vmatprep.subr.bf16.mxu0 %v1730
    %2350 = vmatpush1.bf16.msra.mxu0 %v1729
    %2351 = vmatprep.subr.bf16.mxu0 %v1737
    %2352 = vmatpush1.bf16.msra.mxu0 %v1736
    %2353 = vmatprep.mubr.bf16.mxu0 %v118
    %2354 = vmatmul.mubr.bf16.gmra.mrb[0].mxu0 %v117
    %v2355 = vpop.f32.mrb[0].mxu0
    %v2356 = vadd.f32 %v521, %v2355
    %v2357 = vpop.f32.mrb[0].mxu0
    %v2358 = vadd.f32 %v525, %v2357
    %v2359 = vpop.f32.mrb[0].mxu0
    %v2360 = vpop.f32.mrb[0].mxu0
    %2361 = vdwg.mxu0
    %2362 = vmatprep.subr.bf16.mxu0 %v1744
    %2363 = vmatpush1.bf16.msra.mxu0 %v1743
    %2364 = vmatprep.subr.bf16.mxu0 %v1751
    %2365 = vmatpush1.bf16.msra.mxu0 %v1750
    %2366 = vmatprep.subr.bf16.mxu0 %v1758
    %2367 = vmatpush1.bf16.msra.mxu0 %v1757
    %2368 = vmatprep.subr.bf16.mxu0 %v1765
    %2369 = vmatpush1.bf16.msra.mxu0 %v1764
    %2370 = vmatprep.subr.bf16.mxu0 %v1772
    %2371 = vmatpush1.bf16.msra.mxu0 %v1771
    %2372 = vmatprep.subr.bf16.mxu0 %v1779
    %2373 = vmatpush1.bf16.msra.mxu0 %v1778
    %2374 = vmatprep.subr.bf16.mxu0 %v1786
    %2375 = vmatpush1.bf16.msra.mxu0 %v1785
    %2376 = vmatprep.subr.bf16.mxu0 %v1793
    %2377 = vmatpush1.bf16.msra.mxu0 %v1792
    %2378 = vmatprep.subr.bf16.mxu0 %v1800
    %2379 = vmatpush1.bf16.msra.mxu0 %v1799
    %2380 = vmatprep.subr.bf16.mxu0 %v1807
    %2381 = vmatpush1.bf16.msra.mxu0 %v1806
    %2382 = vmatprep.subr.bf16.mxu0 %v1814
    %2383 = vmatpush1.bf16.msra.mxu0 %v1813
    %2384 = vmatprep.subr.bf16.mxu0 %v1821
    %2385 = vmatpush1.bf16.msra.mxu0 %v1820
    %2386 = vmatprep.subr.bf16.mxu0 %v1828
    %2387 = vmatpush1.bf16.msra.mxu0 %v1827
    %2388 = vmatprep.subr.bf16.mxu0 %v1835
    %2389 = vmatpush1.bf16.msra.mxu0 %v1834
    %2390 = vmatprep.subr.bf16.mxu0 %v1842
    %2391 = vmatpush1.bf16.msra.mxu0 %v1841
    %2392 = vmatprep.subr.bf16.mxu0 %v1849
    %2393 = vmatpush1.bf16.msra.mxu0 %v1848
    %2394 = vmatprep.mubr.bf16.mxu0 %v120
    %2395 = vmatmul.mubr.bf16.gmra.mrb[0].mxu0 %v119
    %v2396 = vpop.f32.mrb[0].mxu0
    %v2397 = vadd.f32 %v2356, %v2396
    %v2398 = vpop.f32.mrb[0].mxu0
    %v2399 = vadd.f32 %v2358, %v2398
    %v2400 = vpop.f32.mrb[0].mxu0
    %v2401 = vpop.f32.mrb[0].mxu0
    %2402 = vdwg.mxu0
    %2403 = vmatprep.subr.bf16.mxu0 %v1856
    %2404 = vmatpush1.bf16.msra.mxu0 %v1855
    %2405 = vmatprep.subr.bf16.mxu0 %v1863
    %2406 = vmatpush1.bf16.msra.mxu0 %v1862
    %2407 = vmatprep.subr.bf16.mxu0 %v1870
    %2408 = vmatpush1.bf16.msra.mxu0 %v1869
    %2409 = vmatprep.subr.bf16.mxu0 %v1877
    %2410 = vmatpush1.bf16.msra.mxu0 %v1876
    %2411 = vmatprep.subr.bf16.mxu0 %v1884
    %2412 = vmatpush1.bf16.msra.mxu0 %v1883
    %2413 = vmatprep.subr.bf16.mxu0 %v1891
    %2414 = vmatpush1.bf16.msra.mxu0 %v1890
    %2415 = vmatprep.subr.bf16.mxu0 %v1898
    %2416 = vmatpush1.bf16.msra.mxu0 %v1897
    %2417 = vmatprep.subr.bf16.mxu0 %v1905
    %2418 = vmatpush1.bf16.msra.mxu0 %v1904
    %2419 = vmatprep.subr.bf16.mxu0 %v1912
    %2420 = vmatpush1.bf16.msra.mxu0 %v1911
    %2421 = vmatprep.subr.bf16.mxu0 %v1919
    %2422 = vmatpush1.bf16.msra.mxu0 %v1918
    %2423 = vmatprep.subr.bf16.mxu0 %v1926
    %2424 = vmatpush1.bf16.msra.mxu0 %v1925
    %2425 = vmatprep.subr.bf16.mxu0 %v1933
    %2426 = vmatpush1.bf16.msra.mxu0 %v1932
    %2427 = vmatprep.subr.bf16.mxu0 %v1940
    %2428 = vmatpush1.bf16.msra.mxu0 %v1939
    %2429 = vmatprep.subr.bf16.mxu0 %v1947
    %2430 = vmatpush1.bf16.msra.mxu0 %v1946
    %2431 = vmatprep.subr.bf16.mxu0 %v1954
    %2432 = vmatpush1.bf16.msra.mxu0 %v1953
    %2433 = vmatprep.subr.bf16.mxu0 %v1961
    %2434 = vmatpush1.bf16.msra.mxu0 %v1960
    %2435 = vmatprep.mubr.bf16.mxu0 %v122
    %2436 = vmatmul.mubr.bf16.gmra.mrb[0].mxu0 %v121
    %v2437 = vpop.f32.mrb[0].mxu0
    %v2438 = vadd.f32 %v2397, %v2437
    %v2439 = vpop.f32.mrb[0].mxu0
    %v2440 = vadd.f32 %v2399, %v2439
    %v2441 = vpop.f32.mrb[0].mxu0
    %v2442 = vpop.f32.mrb[0].mxu0
    %2443 = vdwg.mxu0
    %2444 = vmatprep.subr.bf16.mxu0 %v1968
    %2445 = vmatpush1.bf16.msra.mxu0 %v1967
    %2446 = vmatprep.subr.bf16.mxu0 0
    %2447 = vmatpush1.bf16.msra.mxu0 0
    %2448 = vmatprep.subr.bf16.mxu0 0
    %2449 = vmatpush1.bf16.msra.mxu0 0
    %2450 = vmatprep.subr.bf16.mxu0 0
    %2451 = vmatpush1.bf16.msra.mxu0 0
    %2452 = vmatprep.subr.bf16.mxu0 0
    %2453 = vmatpush1.bf16.msra.mxu0 0
    %2454 = vmatprep.subr.bf16.mxu0 0
    %2455 = vmatpush1.bf16.msra.mxu0 0
    %2456 = vmatprep.subr.bf16.mxu0 0
    %2457 = vmatpush1.bf16.msra.mxu0 0
    %2458 = vmatprep.subr.bf16.mxu0 0
    %2459 = vmatpush1.bf16.msra.mxu0 0
    %2460 = vmatprep.subr.bf16.mxu0 0
    %2461 = vmatpush1.bf16.msra.mxu0 0
    %2462 = vmatprep.subr.bf16.mxu0 0
    %2463 = vmatpush1.bf16.msra.mxu0 0
    %2464 = vmatprep.subr.bf16.mxu0 0
    %2465 = vmatpush1.bf16.msra.mxu0 0
    %2466 = vmatprep.subr.bf16.mxu0 0
    %2467 = vmatpush1.bf16.msra.mxu0 0
    %2468 = vmatprep.subr.bf16.mxu0 0
    %2469 = vmatpush1.bf16.msra.mxu0 0
    %2470 = vmatprep.subr.bf16.mxu0 0
    %2471 = vmatpush1.bf16.msra.mxu0 0
    %2472 = vmatprep.subr.bf16.mxu0 0
    %2473 = vmatpush1.bf16.msra.mxu0 0
    %2474 = vmatprep.subr.bf16.mxu0 0
    %2475 = vmatpush1.bf16.msra.mxu0 0
    %2476 = vmatprep.mubr.bf16.mxu0 0
    %2477 = vmatmul.mubr.bf16.gmra.mrb[0].mxu0 %v2319
    %v2478 = vpop.f32.mrb[0].mxu0
    %v2479 = vadd.f32 %v2438, %v2478
    %v2480 = vpop.f32.mrb[0].mxu0
    %v2481 = vadd.f32 %v2440, %v2480
    %v2482 = vpop.f32.mrb[0].mxu0
    %v2483 = vpop.f32.mrb[0].mxu0
    %2484 = vdwg.mxu0
    %2485 = vmatprep.subr.bf16.mxu0 %v1634
    %2486 = vmatpush1.bf16.msra.mxu0 %v1633
    %2487 = vmatprep.subr.bf16.mxu0 %v1641
    %2488 = vmatpush1.bf16.msra.mxu0 %v1640
    %2489 = vmatprep.subr.bf16.mxu0 %v1648
    %2490 = vmatpush1.bf16.msra.mxu0 %v1647
    %2491 = vmatprep.subr.bf16.mxu0 %v1655
    %2492 = vmatpush1.bf16.msra.mxu0 %v1654
    %2493 = vmatprep.subr.bf16.mxu0 %v1662
    %2494 = vmatpush1.bf16.msra.mxu0 %v1661
    %2495 = vmatprep.subr.bf16.mxu0 %v1669
    %2496 = vmatpush1.bf16.msra.mxu0 %v1668
    %2497 = vmatprep.subr.bf16.mxu0 %v1676
    %2498 = vmatpush1.bf16.msra.mxu0 %v1675
    %2499 = vmatprep.subr.bf16.mxu0 %v1683
    %2500 = vmatpush1.bf16.msra.mxu0 %v1682
    %2501 = vmatprep.subr.bf16.mxu0 %v1690
    %2502 = vmatpush1.bf16.msra.mxu0 %v1689
    %2503 = vmatprep.subr.bf16.mxu0 %v1697
    %2504 = vmatpush1.bf16.msra.mxu0 %v1696
    %2505 = vmatprep.subr.bf16.mxu0 %v1704
    %2506 = vmatpush1.bf16.msra.mxu0 %v1703
    %2507 = vmatprep.subr.bf16.mxu0 %v1711
    %2508 = vmatpush1.bf16.msra.mxu0 %v1710
    %2509 = vmatprep.subr.bf16.mxu0 %v1718
    %2510 = vmatpush1.bf16.msra.mxu0 %v1717
    %2511 = vmatprep.subr.bf16.mxu0 %v1725
    %2512 = vmatpush1.bf16.msra.mxu0 %v1724
    %2513 = vmatprep.subr.bf16.mxu0 %v1732
    %2514 = vmatpush1.bf16.msra.mxu0 %v1731
    %2515 = vmatprep.subr.bf16.mxu0 %v1739
    %2516 = vmatpush1.bf16.msra.mxu0 %v1738
    %2517 = vmatprep.mubr.bf16.mxu0 %v118
    %2518 = vmatmul.mubr.bf16.gmra.mrb[0].mxu0 %v117
    %v2519 = vpop.f32.mrb[0].mxu0
    %v2520 = vadd.f32 %v529, %v2519
    %v2521 = vpop.f32.mrb[0].mxu0
    %v2522 = vadd.f32 %v533, %v2521
    %v2523 = vpop.f32.mrb[0].mxu0
    %v2524 = vpop.f32.mrb[0].mxu0
    %2525 = vdwg.mxu0
    %2526 = vmatprep.subr.bf16.mxu0 %v1746
    %2527 = vmatpush1.bf16.msra.mxu0 %v1745
    %2528 = vmatprep.subr.bf16.mxu0 %v1753
    %2529 = vmatpush1.bf16.msra.mxu0 %v1752
    %2530 = vmatprep.subr.bf16.mxu0 %v1760
    %2531 = vmatpush1.bf16.msra.mxu0 %v1759
    %2532 = vmatprep.subr.bf16.mxu0 %v1767
    %2533 = vmatpush1.bf16.msra.mxu0 %v1766
    %2534 = vmatprep.subr.bf16.mxu0 %v1774
    %2535 = vmatpush1.bf16.msra.mxu0 %v1773
    %2536 = vmatprep.subr.bf16.mxu0 %v1781
    %2537 = vmatpush1.bf16.msra.mxu0 %v1780
    %2538 = vmatprep.subr.bf16.mxu0 %v1788
    %2539 = vmatpush1.bf16.msra.mxu0 %v1787
    %2540 = vmatprep.subr.bf16.mxu0 %v1795
    %2541 = vmatpush1.bf16.msra.mxu0 %v1794
    %2542 = vmatprep.subr.bf16.mxu0 %v1802
    %2543 = vmatpush1.bf16.msra.mxu0 %v1801
    %2544 = vmatprep.subr.bf16.mxu0 %v1809
    %2545 = vmatpush1.bf16.msra.mxu0 %v1808
    %2546 = vmatprep.subr.bf16.mxu0 %v1816
    %2547 = vmatpush1.bf16.msra.mxu0 %v1815
    %2548 = vmatprep.subr.bf16.mxu0 %v1823
    %2549 = vmatpush1.bf16.msra.mxu0 %v1822
    %2550 = vmatprep.subr.bf16.mxu0 %v1830
    %2551 = vmatpush1.bf16.msra.mxu0 %v1829
    %2552 = vmatprep.subr.bf16.mxu0 %v1837
    %2553 = vmatpush1.bf16.msra.mxu0 %v1836
    %2554 = vmatprep.subr.bf16.mxu0 %v1844
    %2555 = vmatpush1.bf16.msra.mxu0 %v1843
    %2556 = vmatprep.subr.bf16.mxu0 %v1851
    %2557 = vmatpush1.bf16.msra.mxu0 %v1850
    %2558 = vmatprep.mubr.bf16.mxu0 %v120
    %2559 = vmatmul.mubr.bf16.gmra.mrb[0].mxu0 %v119
    %v2560 = vpop.f32.mrb[0].mxu0
    %v2561 = vadd.f32 %v2520, %v2560
    %v2562 = vpop.f32.mrb[0].mxu0
    %v2563 = vadd.f32 %v2522, %v2562
    %v2564 = vpop.f32.mrb[0].mxu0
    %v2565 = vpop.f32.mrb[0].mxu0
    %2566 = vdwg.mxu0
    %2567 = vmatprep.subr.bf16.mxu0 %v1858
    %2568 = vmatpush1.bf16.msra.mxu0 %v1857
    %2569 = vmatprep.subr.bf16.mxu0 %v1865
    %2570 = vmatpush1.bf16.msra.mxu0 %v1864
    %2571 = vmatprep.subr.bf16.mxu0 %v1872
    %2572 = vmatpush1.bf16.msra.mxu0 %v1871
    %2573 = vmatprep.subr.bf16.mxu0 %v1879
    %2574 = vmatpush1.bf16.msra.mxu0 %v1878
    %2575 = vmatprep.subr.bf16.mxu0 %v1886
    %2576 = vmatpush1.bf16.msra.mxu0 %v1885
    %2577 = vmatprep.subr.bf16.mxu0 %v1893
    %2578 = vmatpush1.bf16.msra.mxu0 %v1892
    %2579 = vmatprep.subr.bf16.mxu0 %v1900
    %2580 = vmatpush1.bf16.msra.mxu0 %v1899
    %2581 = vmatprep.subr.bf16.mxu0 %v1907
    %2582 = vmatpush1.bf16.msra.mxu0 %v1906
    %2583 = vmatprep.subr.bf16.mxu0 %v1914
    %2584 = vmatpush1.bf16.msra.mxu0 %v1913
    %2585 = vmatprep.subr.bf16.mxu0 %v1921
    %2586 = vmatpush1.bf16.msra.mxu0 %v1920
    %2587 = vmatprep.subr.bf16.mxu0 %v1928
    %2588 = vmatpush1.bf16.msra.mxu0 %v1927
    %2589 = vmatprep.subr.bf16.mxu0 %v1935
    %2590 = vmatpush1.bf16.msra.mxu0 %v1934
    %2591 = vmatprep.subr.bf16.mxu0 %v1942
    %2592 = vmatpush1.bf16.msra.mxu0 %v1941
    %2593 = vmatprep.subr.bf16.mxu0 %v1949
    %2594 = vmatpush1.bf16.msra.mxu0 %v1948
    %2595 = vmatprep.subr.bf16.mxu0 %v1956
    %2596 = vmatpush1.bf16.msra.mxu0 %v1955
    %2597 = vmatprep.subr.bf16.mxu0 %v1963
    %2598 = vmatpush1.bf16.msra.mxu0 %v1962
    %2599 = vmatprep.mubr.bf16.mxu0 %v122
    %2600 = vmatmul.mubr.bf16.gmra.mrb[0].mxu0 %v121
    %v2601 = vpop.f32.mrb[0].mxu0
    %v2602 = vadd.f32 %v2561, %v2601
    %v2603 = vpop.f32.mrb[0].mxu0
    %v2604 = vadd.f32 %v2563, %v2603
    %v2605 = vpop.f32.mrb[0].mxu0
    %v2606 = vpop.f32.mrb[0].mxu0
    %2607 = vdwg.mxu0
    %2608 = vmatprep.subr.bf16.mxu0 %v1970
    %2609 = vmatpush1.bf16.msra.mxu0 %v1969
    %2610 = vmatprep.subr.bf16.mxu0 0
    %2611 = vmatpush1.bf16.msra.mxu0 0
    %2612 = vmatprep.subr.bf16.mxu0 0
    %2613 = vmatpush1.bf16.msra.mxu0 0
    %2614 = vmatprep.subr.bf16.mxu0 0
    %2615 = vmatpush1.bf16.msra.mxu0 0
    %2616 = vmatprep.subr.bf16.mxu0 0
    %2617 = vmatpush1.bf16.msra.mxu0 0
    %2618 = vmatprep.subr.bf16.mxu0 0
    %2619 = vmatpush1.bf16.msra.mxu0 0
    %2620 = vmatprep.subr.bf16.mxu0 0
    %2621 = vmatpush1.bf16.msra.mxu0 0
    %2622 = vmatprep.subr.bf16.mxu0 0
    %2623 = vmatpush1.bf16.msra.mxu0 0
    %2624 = vmatprep.subr.bf16.mxu0 0
    %2625 = vmatpush1.bf16.msra.mxu0 0
    %2626 = vmatprep.subr.bf16.mxu0 0
    %2627 = vmatpush1.bf16.msra.mxu0 0
    %2628 = vmatprep.subr.bf16.mxu0 0
    %2629 = vmatpush1.bf16.msra.mxu0 0
    %2630 = vmatprep.subr.bf16.mxu0 0
    %2631 = vmatpush1.bf16.msra.mxu0 0
    %2632 = vmatprep.subr.bf16.mxu0 0
    %2633 = vmatpush1.bf16.msra.mxu0 0
    %2634 = vmatprep.subr.bf16.mxu0 0
    %2635 = vmatpush1.bf16.msra.mxu0 0
    %2636 = vmatprep.subr.bf16.mxu0 0
    %2637 = vmatpush1.bf16.msra.mxu0 0
    %2638 = vmatprep.subr.bf16.mxu0 0
    %2639 = vmatpush1.bf16.msra.mxu0 0
    %2640 = vmatprep.mubr.bf16.mxu0 0
    %2641 = vmatmul.mubr.bf16.gmra.mrb[0].mxu0 %v2319
    %v2642 = vpop.f32.mrb[0].mxu0
    %v2643 = vadd.f32 %v2602, %v2642
    %v2644 = vpop.f32.mrb[0].mxu0
    %v2645 = vadd.f32 %v2604, %v2644
    %v2646 = vpop.f32.mrb[0].mxu0
    %v2647 = vpop.f32.mrb[0].mxu0
    %2648 = vdwg.mxu0
    %2649 = vmatprep.subr.bf16.mxu0 %v1636
    %2650 = vmatpush1.bf16.msra.mxu0 %v1635
    %2651 = vmatprep.subr.bf16.mxu0 %v1643
    %2652 = vmatpush1.bf16.msra.mxu0 %v1642
    %2653 = vmatprep.subr.bf16.mxu0 %v1650
    %2654 = vmatpush1.bf16.msra.mxu0 %v1649
    %2655 = vmatprep.subr.bf16.mxu0 %v1657
    %2656 = vmatpush1.bf16.msra.mxu0 %v1656
    %2657 = vmatprep.subr.bf16.mxu0 %v1664
    %2658 = vmatpush1.bf16.msra.mxu0 %v1663
    %2659 = vmatprep.subr.bf16.mxu0 %v1671
    %2660 = vmatpush1.bf16.msra.mxu0 %v1670
    %2661 = vmatprep.subr.bf16.mxu0 %v1678
    %2662 = vmatpush1.bf16.msra.mxu0 %v1677
    %2663 = vmatprep.subr.bf16.mxu0 %v1685
    %2664 = vmatpush1.bf16.msra.mxu0 %v1684
    %2665 = vmatprep.subr.bf16.mxu0 %v1692
    %2666 = vmatpush1.bf16.msra.mxu0 %v1691
    %2667 = vmatprep.subr.bf16.mxu0 %v1699
    %2668 = vmatpush1.bf16.msra.mxu0 %v1698
    %2669 = vmatprep.subr.bf16.mxu0 %v1706
    %2670 = vmatpush1.bf16.msra.mxu0 %v1705
    %2671 = vmatprep.subr.bf16.mxu0 %v1713
    %2672 = vmatpush1.bf16.msra.mxu0 %v1712
    %2673 = vmatprep.subr.bf16.mxu0 %v1720
    %2674 = vmatpush1.bf16.msra.mxu0 %v1719
    %2675 = vmatprep.subr.bf16.mxu0 %v1727
    %2676 = vmatpush1.bf16.msra.mxu0 %v1726
    %2677 = vmatprep.subr.bf16.mxu0 %v1734
    %2678 = vmatpush1.bf16.msra.mxu0 %v1733
    %2679 = vmatprep.subr.bf16.mxu0 %v1741
    %2680 = vmatpush1.bf16.msra.mxu0 %v1740
    %2681 = vmatprep.mubr.bf16.mxu0 %v118
    %2682 = vmatmul.mubr.bf16.gmra.mrb[0].mxu0 %v117
    %v2683 = vpop.f32.mrb[0].mxu0
    %v2684 = vadd.f32 %v537, %v2683
    %v2685 = vpop.f32.mrb[0].mxu0
    %v2686 = vadd.f32 %v541, %v2685
    %v2687 = vpop.f32.mrb[0].mxu0
    %v2688 = vpop.f32.mrb[0].mxu0
    %2689 = vdwg.mxu0
    %2690 = vmatprep.subr.bf16.mxu0 %v1748
    %2691 = vmatpush1.bf16.msra.mxu0 %v1747
    %2692 = vmatprep.subr.bf16.mxu0 %v1755
    %2693 = vmatpush1.bf16.msra.mxu0 %v1754
    %2694 = vmatprep.subr.bf16.mxu0 %v1762
    %2695 = vmatpush1.bf16.msra.mxu0 %v1761
    %2696 = vmatprep.subr.bf16.mxu0 %v1769
    %2697 = vmatpush1.bf16.msra.mxu0 %v1768
    %2698 = vmatprep.subr.bf16.mxu0 %v1776
    %2699 = vmatpush1.bf16.msra.mxu0 %v1775
    %2700 = vmatprep.subr.bf16.mxu0 %v1783
    %2701 = vmatpush1.bf16.msra.mxu0 %v1782
    %2702 = vmatprep.subr.bf16.mxu0 %v1790
    %2703 = vmatpush1.bf16.msra.mxu0 %v1789
    %2704 = vmatprep.subr.bf16.mxu0 %v1797
    %2705 = vmatpush1.bf16.msra.mxu0 %v1796
    %2706 = vmatprep.subr.bf16.mxu0 %v1804
    %2707 = vmatpush1.bf16.msra.mxu0 %v1803
    %2708 = vmatprep.subr.bf16.mxu0 %v1811
    %2709 = vmatpush1.bf16.msra.mxu0 %v1810
    %2710 = vmatprep.subr.bf16.mxu0 %v1818
    %2711 = vmatpush1.bf16.msra.mxu0 %v1817
    %2712 = vmatprep.subr.bf16.mxu0 %v1825
    %2713 = vmatpush1.bf16.msra.mxu0 %v1824
    %2714 = vmatprep.subr.bf16.mxu0 %v1832
    %2715 = vmatpush1.bf16.msra.mxu0 %v1831
    %2716 = vmatprep.subr.bf16.mxu0 %v1839
    %2717 = vmatpush1.bf16.msra.mxu0 %v1838
    %2718 = vmatprep.subr.bf16.mxu0 %v1846
    %2719 = vmatpush1.bf16.msra.mxu0 %v1845
    %2720 = vmatprep.subr.bf16.mxu0 %v1853
    %2721 = vmatpush1.bf16.msra.mxu0 %v1852
    %2722 = vmatprep.mubr.bf16.mxu0 %v120
    %2723 = vmatmul.mubr.bf16.gmra.mrb[0].mxu0 %v119
    %v2724 = vpop.f32.mrb[0].mxu0
    %v2725 = vadd.f32 %v2684, %v2724
    %v2726 = vpop.f32.mrb[0].mxu0
    %v2727 = vadd.f32 %v2686, %v2726
    %v2728 = vpop.f32.mrb[0].mxu0
    %v2729 = vpop.f32.mrb[0].mxu0
    %2730 = vdwg.mxu0
    %2731 = vmatprep.subr.bf16.mxu0 %v1860
    %2732 = vmatpush1.bf16.msra.mxu0 %v1859
    %2733 = vmatprep.subr.bf16.mxu0 %v1867
    %2734 = vmatpush1.bf16.msra.mxu0 %v1866
    %2735 = vmatprep.subr.bf16.mxu0 %v1874
    %2736 = vmatpush1.bf16.msra.mxu0 %v1873
    %2737 = vmatprep.subr.bf16.mxu0 %v1881
    %2738 = vmatpush1.bf16.msra.mxu0 %v1880
    %2739 = vmatprep.subr.bf16.mxu0 %v1888
    %2740 = vmatpush1.bf16.msra.mxu0 %v1887
    %2741 = vmatprep.subr.bf16.mxu0 %v1895
    %2742 = vmatpush1.bf16.msra.mxu0 %v1894
    %2743 = vmatprep.subr.bf16.mxu0 %v1902
    %2744 = vmatpush1.bf16.msra.mxu0 %v1901
    %2745 = vmatprep.subr.bf16.mxu0 %v1909
    %2746 = vmatpush1.bf16.msra.mxu0 %v1908
    %2747 = vmatprep.subr.bf16.mxu0 %v1916
    %2748 = vmatpush1.bf16.msra.mxu0 %v1915
    %2749 = vmatprep.subr.bf16.mxu0 %v1923
    %2750 = vmatpush1.bf16.msra.mxu0 %v1922
    %2751 = vmatprep.subr.bf16.mxu0 %v1930
    %2752 = vmatpush1.bf16.msra.mxu0 %v1929
    %2753 = vmatprep.subr.bf16.mxu0 %v1937
    %2754 = vmatpush1.bf16.msra.mxu0 %v1936
    %2755 = vmatprep.subr.bf16.mxu0 %v1944
    %2756 = vmatpush1.bf16.msra.mxu0 %v1943
    %2757 = vmatprep.subr.bf16.mxu0 %v1951
    %2758 = vmatpush1.bf16.msra.mxu0 %v1950
    %2759 = vmatprep.subr.bf16.mxu0 %v1958
    %2760 = vmatpush1.bf16.msra.mxu0 %v1957
    %2761 = vmatprep.subr.bf16.mxu0 %v1965
    %2762 = vmatpush1.bf16.msra.mxu0 %v1964
    %2763 = vmatprep.mubr.bf16.mxu0 %v122
    %2764 = vmatmul.mubr.bf16.gmra.mrb[0].mxu0 %v121
    %v2765 = vpop.f32.mrb[0].mxu0
    %v2766 = vadd.f32 %v2725, %v2765
    %v2767 = vpop.f32.mrb[0].mxu0
    %v2768 = vadd.f32 %v2727, %v2767
    %v2769 = vpop.f32.mrb[0].mxu0
    %v2770 = vpop.f32.mrb[0].mxu0
    %2771 = vdwg.mxu0
    %2772 = vmatprep.subr.bf16.mxu0 %v1972
    %2773 = vmatpush1.bf16.msra.mxu0 %v1971
    %2774 = vmatprep.subr.bf16.mxu0 0
    %2775 = vmatpush1.bf16.msra.mxu0 0
    %2776 = vmatprep.subr.bf16.mxu0 0
    %2777 = vmatpush1.bf16.msra.mxu0 0
    %2778 = vmatprep.subr.bf16.mxu0 0
    %2779 = vmatpush1.bf16.msra.mxu0 0
    %2780 = vmatprep.subr.bf16.mxu0 0
    %2781 = vmatpush1.bf16.msra.mxu0 0
    %2782 = vmatprep.subr.bf16.mxu0 0
    %2783 = vmatpush1.bf16.msra.mxu0 0
    %2784 = vmatprep.subr.bf16.mxu0 0
    %2785 = vmatpush1.bf16.msra.mxu0 0
    %2786 = vmatprep.subr.bf16.mxu0 0
    %2787 = vmatpush1.bf16.msra.mxu0 0
    %2788 = vmatprep.subr.bf16.mxu0 0
    %2789 = vmatpush1.bf16.msra.mxu0 0
    %2790 = vmatprep.subr.bf16.mxu0 0
    %2791 = vmatpush1.bf16.msra.mxu0 0
    %2792 = vmatprep.subr.bf16.mxu0 0
    %2793 = vmatpush1.bf16.msra.mxu0 0
    %2794 = vmatprep.subr.bf16.mxu0 0
    %2795 = vmatpush1.bf16.msra.mxu0 0
    %2796 = vmatprep.subr.bf16.mxu0 0
    %2797 = vmatpush1.bf16.msra.mxu0 0
    %2798 = vmatprep.subr.bf16.mxu0 0
    %2799 = vmatpush1.bf16.msra.mxu0 0
    %2800 = vmatprep.subr.bf16.mxu0 0
    %2801 = vmatpush1.bf16.msra.mxu0 0
    %2802 = vmatprep.subr.bf16.mxu0 0
    %2803 = vmatpush1.bf16.msra.mxu0 0
    %2804 = vmatprep.mubr.bf16.mxu0 0
    %2805 = vmatmul.mubr.bf16.gmra.mrb[0].mxu0 %v2319
    %v2806 = vpop.f32.mrb[0].mxu0
    %v2807 = vadd.f32 %v2766, %v2806
    %v2808 = vpop.f32.mrb[0].mxu0
    %v2809 = vadd.f32 %v2768, %v2808
    %v2810 = vpop.f32.mrb[0].mxu0
    %v2811 = vpop.f32.mrb[0].mxu0
    %2812 = vdwg.mxu0
    %2813 = vmatprep.subr.bf16.mxu0 0
    %2814 = vmatpush1.bf16.msra.mxu0 %v1637
    %2815 = vmatprep.subr.bf16.mxu0 0
    %2816 = vmatpush1.bf16.msra.mxu0 %v1644
    %2817 = vmatprep.subr.bf16.mxu0 0
    %2818 = vmatpush1.bf16.msra.mxu0 %v1651
    %2819 = vmatprep.subr.bf16.mxu0 0
    %2820 = vmatpush1.bf16.msra.mxu0 %v1658
    %2821 = vmatprep.subr.bf16.mxu0 0
    %2822 = vmatpush1.bf16.msra.mxu0 %v1665
    %2823 = vmatprep.subr.bf16.mxu0 0
    %2824 = vmatpush1.bf16.msra.mxu0 %v1672
    %2825 = vmatprep.subr.bf16.mxu0 0
    %2826 = vmatpush1.bf16.msra.mxu0 %v1679
    %2827 = vmatprep.subr.bf16.mxu0 0
    %2828 = vmatpush1.bf16.msra.mxu0 %v1686
    %2829 = vmatprep.subr.bf16.mxu0 0
    %2830 = vmatpush1.bf16.msra.mxu0 %v1693
    %2831 = vmatprep.subr.bf16.mxu0 0
    %2832 = vmatpush1.bf16.msra.mxu0 %v1700
    %2833 = vmatprep.subr.bf16.mxu0 0
    %2834 = vmatpush1.bf16.msra.mxu0 %v1707
    %2835 = vmatprep.subr.bf16.mxu0 0
    %2836 = vmatpush1.bf16.msra.mxu0 %v1714
    %2837 = vmatprep.subr.bf16.mxu0 0
    %2838 = vmatpush1.bf16.msra.mxu0 %v1721
    %2839 = vmatprep.subr.bf16.mxu0 0
    %2840 = vmatpush1.bf16.msra.mxu0 %v1728
    %2841 = vmatprep.subr.bf16.mxu0 0
    %2842 = vmatpush1.bf16.msra.mxu0 %v1735
    %2843 = vmatprep.subr.bf16.mxu0 0
    %2844 = vmatpush1.bf16.msra.mxu0 %v1742
    %2845 = vmatprep.mubr.bf16.mxu0 %v118
    %2846 = vmatmul.mubr.bf16.gmra.mrb[0].mxu0 %v117
    %v2847 = vpop.f32.mrb[0].mxu0
    %v2848 = vadd.f32 %v545, %v2847
    %v2849 = vpop.f32.mrb[0].mxu0
    %v2850 = vpop.f32.mrb[0].mxu0
    %v2851 = vpop.f32.mrb[0].mxu0
    %2852 = vdwg.mxu0
    %2853 = vmatprep.subr.bf16.mxu0 0
    %2854 = vmatpush1.bf16.msra.mxu0 %v1749
    %2855 = vmatprep.subr.bf16.mxu0 0
    %2856 = vmatpush1.bf16.msra.mxu0 %v1756
    %2857 = vmatprep.subr.bf16.mxu0 0
    %2858 = vmatpush1.bf16.msra.mxu0 %v1763
    %2859 = vmatprep.subr.bf16.mxu0 0
    %2860 = vmatpush1.bf16.msra.mxu0 %v1770
    %2861 = vmatprep.subr.bf16.mxu0 0
    %2862 = vmatpush1.bf16.msra.mxu0 %v1777
    %2863 = vmatprep.subr.bf16.mxu0 0
    %2864 = vmatpush1.bf16.msra.mxu0 %v1784
    %2865 = vmatprep.subr.bf16.mxu0 0
    %2866 = vmatpush1.bf16.msra.mxu0 %v1791
    %2867 = vmatprep.subr.bf16.mxu0 0
    %2868 = vmatpush1.bf16.msra.mxu0 %v1798
    %2869 = vmatprep.subr.bf16.mxu0 0
    %2870 = vmatpush1.bf16.msra.mxu0 %v1805
    %2871 = vmatprep.subr.bf16.mxu0 0
    %2872 = vmatpush1.bf16.msra.mxu0 %v1812
    %2873 = vmatprep.subr.bf16.mxu0 0
    %2874 = vmatpush1.bf16.msra.mxu0 %v1819
    %2875 = vmatprep.subr.bf16.mxu0 0
    %2876 = vmatpush1.bf16.msra.mxu0 %v1826
    %2877 = vmatprep.subr.bf16.mxu0 0
    %2878 = vmatpush1.bf16.msra.mxu0 %v1833
    %2879 = vmatprep.subr.bf16.mxu0 0
    %2880 = vmatpush1.bf16.msra.mxu0 %v1840
    %2881 = vmatprep.subr.bf16.mxu0 0
    %2882 = vmatpush1.bf16.msra.mxu0 %v1847
    %2883 = vmatprep.subr.bf16.mxu0 0
    %2884 = vmatpush1.bf16.msra.mxu0 %v1854
    %2885 = vmatprep.mubr.bf16.mxu0 %v120
    %2886 = vmatmul.mubr.bf16.gmra.mrb[0].mxu0 %v119
    %v2887 = vpop.f32.mrb[0].mxu0
    %v2888 = vadd.f32 %v2848, %v2887
    %v2889 = vpop.f32.mrb[0].mxu0
    %v2890 = vpop.f32.mrb[0].mxu0
    %v2891 = vpop.f32.mrb[0].mxu0
    %2892 = vdwg.mxu0
    %2893 = vmatprep.subr.bf16.mxu0 0
    %2894 = vmatpush1.bf16.msra.mxu0 %v1861
    %2895 = vmatprep.subr.bf16.mxu0 0
    %2896 = vmatpush1.bf16.msra.mxu0 %v1868
    %2897 = vmatprep.subr.bf16.mxu0 0
    %2898 = vmatpush1.bf16.msra.mxu0 %v1875
    %2899 = vmatprep.subr.bf16.mxu0 0
    %2900 = vmatpush1.bf16.msra.mxu0 %v1882
    %2901 = vmatprep.subr.bf16.mxu0 0
    %2902 = vmatpush1.bf16.msra.mxu0 %v1889
    %2903 = vmatprep.subr.bf16.mxu0 0
    %2904 = vmatpush1.bf16.msra.mxu0 %v1896
    %2905 = vmatprep.subr.bf16.mxu0 0
    %2906 = vmatpush1.bf16.msra.mxu0 %v1903
    %2907 = vmatprep.subr.bf16.mxu0 0
    %2908 = vmatpush1.bf16.msra.mxu0 %v1910
    %2909 = vmatprep.subr.bf16.mxu0 0
    %2910 = vmatpush1.bf16.msra.mxu0 %v1917
    %2911 = vmatprep.subr.bf16.mxu0 0
    %2912 = vmatpush1.bf16.msra.mxu0 %v1924
    %2913 = vmatprep.subr.bf16.mxu0 0
    %2914 = vmatpush1.bf16.msra.mxu0 %v1931
    %2915 = vmatprep.subr.bf16.mxu0 0
    %2916 = vmatpush1.bf16.msra.mxu0 %v1938
    %2917 = vmatprep.subr.bf16.mxu0 0
    %2918 = vmatpush1.bf16.msra.mxu0 %v1945
    %2919 = vmatprep.subr.bf16.mxu0 0
    %2920 = vmatpush1.bf16.msra.mxu0 %v1952
    %2921 = vmatprep.subr.bf16.mxu0 0
    %2922 = vmatpush1.bf16.msra.mxu0 %v1959
    %2923 = vmatprep.subr.bf16.mxu0 0
    %2924 = vmatpush1.bf16.msra.mxu0 %v1966
    %2925 = vmatprep.mubr.bf16.mxu0 %v122
    %2926 = vmatmul.mubr.bf16.gmra.mrb[0].mxu0 %v121
    %v2927 = vpop.f32.mrb[0].mxu0
    %v2928 = vadd.f32 %v2888, %v2927
    %v2929 = vpop.f32.mrb[0].mxu0
    %v2930 = vpop.f32.mrb[0].mxu0
    %v2931 = vpop.f32.mrb[0].mxu0
    %2932 = vdwg.mxu0
    %2933 = vmatprep.subr.bf16.mxu0 0
    %2934 = vmatpush1.bf16.msra.mxu0 %v1973
    %2935 = vmatprep.subr.bf16.mxu0 0
    %2936 = vmatpush1.bf16.msra.mxu0 0
    %2937 = vmatprep.subr.bf16.mxu0 0
    %2938 = vmatpush1.bf16.msra.mxu0 0
    %2939 = vmatprep.subr.bf16.mxu0 0
    %2940 = vmatpush1.bf16.msra.mxu0 0
    %2941 = vmatprep.subr.bf16.mxu0 0
    %2942 = vmatpush1.bf16.msra.mxu0 0
    %2943 = vmatprep.subr.bf16.mxu0 0
    %2944 = vmatpush1.bf16.msra.mxu0 0
    %2945 = vmatprep.subr.bf16.mxu0 0
    %2946 = vmatpush1.bf16.msra.mxu0 0
    %2947 = vmatprep.subr.bf16.mxu0 0
    %2948 = vmatpush1.bf16.msra.mxu0 0
    %2949 = vmatprep.subr.bf16.mxu0 0
    %2950 = vmatpush1.bf16.msra.mxu0 0
    %2951 = vmatprep.subr.bf16.mxu0 0
    %2952 = vmatpush1.bf16.msra.mxu0 0
    %2953 = vmatprep.subr.bf16.mxu0 0
    %2954 = vmatpush1.bf16.msra.mxu0 0
    %2955 = vmatprep.subr.bf16.mxu0 0
    %2956 = vmatpush1.bf16.msra.mxu0 0
    %2957 = vmatprep.subr.bf16.mxu0 0
    %2958 = vmatpush1.bf16.msra.mxu0 0
    %2959 = vmatprep.subr.bf16.mxu0 0
    %2960 = vmatpush1.bf16.msra.mxu0 0
    %2961 = vmatprep.subr.bf16.mxu0 0
    %2962 = vmatpush1.bf16.msra.mxu0 0
    %2963 = vmatprep.subr.bf16.mxu0 0
    %2964 = vmatpush1.bf16.msra.mxu0 0
    %2965 = vmatprep.mubr.bf16.mxu0 0
    %2966 = vmatmul.mubr.bf16.gmra.mrb[0].mxu0 %v2319
    %v2967 = vpop.f32.mrb[0].mxu0
    %v2968 = vadd.f32 %v2928, %v2967
    %v2969 = vpop.f32.mrb[0].mxu0
    %v2970 = vpop.f32.mrb[0].mxu0
    %v2971 = vpop.f32.mrb[0].mxu0
    %2972 = vdwg.mxu0
    %v2973 = vmax.f32 %v2479, 0.0
    %v2974 = vmax.f32 %v2481, 0.0
    %v2975 = vmax.f32 %v2643, 0.0
    %v2976 = vmax.f32 %v2645, 0.0
    %v2977 = vmax.f32 %v2807, 0.0
    %v2978 = vmax.f32 %v2809, 0.0
    %v2979 = vmax.f32 %v2968, 0.0
    %v2980 = vpack.c.bf16 %v2973, %v2973
    %v2981 = vpack.c.bf16 %v2974, %v2974
    %v2982 = vpack.c.bf16 %v2975, %v2975
    %v2983 = vpack.c.bf16 %v2976, %v2976
    %v2984 = vpack.c.bf16 %v2977, %v2977
    %v2985 = vpack.c.bf16 %v2978, %v2978
    %v2986 = vpack.c.bf16 %v2979, %v2979
    %v2987 = vld [vmem:[#allocation7] sm:$0xff]
    %v2988 = vld [vmem:[#allocation7 + $0x8] sm:$0xff]
    %v2989 = vld [vmem:[#allocation7 + $0x10] sm:$0xff]
    %v2990 = vld [vmem:[#allocation7 + $0x18] sm:$0xf]
    %v2991 = vld [vmem:[#allocation7 + $0x1c] sm:$0xff]
    %v2992 = vld [vmem:[#allocation7 + $0x24] sm:$0xff]
    %v2993 = vld [vmem:[#allocation7 + $0x2c] sm:$0xff]
    %v2994 = vld [vmem:[#allocation7 + $0x34] sm:$0xf]
    %v2995 = vld [vmem:[#allocation7 + $0x38] sm:$0xff]
    %v2996 = vld [vmem:[#allocation7 + $0x40] sm:$0xff]
    %v2997 = vld [vmem:[#allocation7 + $0x48] sm:$0xff]
    %v2998 = vld [vmem:[#allocation7 + $0x50] sm:$0xf]
    %v2999 = vld [vmem:[#allocation7 + $0x54] sm:$0xff]
    %v3000 = vld [vmem:[#allocation7 + $0x5c] sm:$0xff]
    %v3001 = vld [vmem:[#allocation7 + $0x64] sm:$0xff]
    %v3002 = vld [vmem:[#allocation7 + $0x6c] sm:$0xf]
    %v3003 = vld [vmem:[#allocation7 + $0x70] sm:$0xff]
    %v3004 = vld [vmem:[#allocation7 + $0x78] sm:$0xff]
    %v3005 = vld [vmem:[#allocation7 + $0x80] sm:$0xff]
    %v3006 = vld [vmem:[#allocation7 + $0x88] sm:$0xf]
    %v3007 = vld [vmem:[#allocation7 + $0x8c] sm:$0xff]
    %v3008 = vld [vmem:[#allocation7 + $0x94] sm:$0xff]
    %v3009 = vld [vmem:[#allocation7 + $0x9c] sm:$0xff]
    %v3010 = vld [vmem:[#allocation7 + $0xa4] sm:$0xf]
    %v3011 = vld [vmem:[#allocation7 + $0xa8] sm:$0xff]
    %v3012 = vld [vmem:[#allocation7 + $0xb0] sm:$0xff]
    %v3013 = vld [vmem:[#allocation7 + $0xb8] sm:$0xff]
    %v3014 = vld [vmem:[#allocation7 + $0xc0] sm:$0xf]
    %v3015 = vld [vmem:[#allocation7 + $0xc4] sm:$0xff]
    %v3016 = vld [vmem:[#allocation7 + $0xcc] sm:$0xff]
    %v3017 = vld [vmem:[#allocation7 + $0xd4] sm:$0xff]
    %v3018 = vld [vmem:[#allocation7 + $0xdc] sm:$0xf]
    %v3019 = vld [vmem:[#allocation7 + $0xe0] sm:$0xff]
    %v3020 = vld [vmem:[#allocation7 + $0xe8] sm:$0xff]
    %v3021 = vld [vmem:[#allocation7 + $0xf0] sm:$0xff]
    %v3022 = vld [vmem:[#allocation7 + $0xf8] sm:$0xf]
    %v3023 = vld [vmem:[#allocation7 + $0xfc] sm:$0xff]
    %v3024 = vld [vmem:[#allocation7 + $0x104] sm:$0xff]
    %v3025 = vld [vmem:[#allocation7 + $0x10c] sm:$0xff]
    %v3026 = vld [vmem:[#allocation7 + $0x114] sm:$0xf]
    %v3027 = vld [vmem:[#allocation7 + $0x118] sm:$0xff]
    %v3028 = vld [vmem:[#allocation7 + $0x120] sm:$0xff]
    %v3029 = vld [vmem:[#allocation7 + $0x128] sm:$0xff]
    %v3030 = vld [vmem:[#allocation7 + $0x130] sm:$0xf]
    %v3031 = vld [vmem:[#allocation7 + $0x134] sm:$0xff]
    %v3032 = vld [vmem:[#allocation7 + $0x13c] sm:$0xff]
    %v3033 = vld [vmem:[#allocation7 + $0x144] sm:$0xff]
    %v3034 = vld [vmem:[#allocation7 + $0x14c] sm:$0xf]
    %v3035 = vld [vmem:[#allocation7 + $0x150] sm:$0xff]
    %v3036 = vld [vmem:[#allocation7 + $0x158] sm:$0xff]
    %v3037 = vld [vmem:[#allocation7 + $0x160] sm:$0xff]
    %v3038 = vld [vmem:[#allocation7 + $0x168] sm:$0xf]
    %v3039 = vld [vmem:[#allocation7 + $0x16c] sm:$0xff]
    %v3040 = vld [vmem:[#allocation7 + $0x174] sm:$0xff]
    %v3041 = vld [vmem:[#allocation7 + $0x17c] sm:$0xff]
    %v3042 = vld [vmem:[#allocation7 + $0x184] sm:$0xf]
    %v3043 = vld [vmem:[#allocation7 + $0x188] sm:$0xff]
    %v3044 = vld [vmem:[#allocation7 + $0x190] sm:$0xff]
    %v3045 = vld [vmem:[#allocation7 + $0x198] sm:$0xff]
    %v3046 = vld [vmem:[#allocation7 + $0x1a0] sm:$0xf]
    %v3047 = vld [vmem:[#allocation7 + $0x1a4] sm:$0xff]
    %v3048 = vld [vmem:[#allocation7 + $0x1ac] sm:$0xff]
    %v3049 = vld [vmem:[#allocation7 + $0x1b4] sm:$0xff]
    %v3050 = vld [vmem:[#allocation7 + $0x1bc] sm:$0xf]
    %v3051 = vld [vmem:[#allocation7 + $0x1c0] sm:$0xff]
    %v3052 = vld [vmem:[#allocation7 + $0x1c8] sm:$0xff]
    %v3053 = vld [vmem:[#allocation7 + $0x1d0] sm:$0xff]
    %v3054 = vld [vmem:[#allocation7 + $0x1d8] sm:$0xf]
    %v3055 = vld [vmem:[#allocation7 + $0x1dc] sm:$0xff]
    %v3056 = vld [vmem:[#allocation7 + $0x1e4] sm:$0xff]
    %v3057 = vld [vmem:[#allocation7 + $0x1ec] sm:$0xff]
    %v3058 = vld [vmem:[#allocation7 + $0x1f4] sm:$0xf]
    %v3059 = vld [vmem:[#allocation7 + $0x1f8] sm:$0xff]
    %v3060 = vld [vmem:[#allocation7 + $0x200] sm:$0xff]
    %v3061 = vld [vmem:[#allocation7 + $0x208] sm:$0xff]
    %v3062 = vld [vmem:[#allocation7 + $0x210] sm:$0xf]
    %v3063 = vld [vmem:[#allocation7 + $0x214] sm:$0xff]
    %v3064 = vld [vmem:[#allocation7 + $0x21c] sm:$0xff]
    %v3065 = vld [vmem:[#allocation7 + $0x224] sm:$0xff]
    %v3066 = vld [vmem:[#allocation7 + $0x22c] sm:$0xf]
    %v3067 = vld [vmem:[#allocation7 + $0x230] sm:$0xff]
    %v3068 = vld [vmem:[#allocation7 + $0x238] sm:$0xff]
    %v3069 = vld [vmem:[#allocation7 + $0x240] sm:$0xff]
    %v3070 = vld [vmem:[#allocation7 + $0x248] sm:$0xf]
    %v3071 = vld [vmem:[#allocation7 + $0x24c] sm:$0xff]
    %v3072 = vld [vmem:[#allocation7 + $0x254] sm:$0xff]
    %v3073 = vld [vmem:[#allocation7 + $0x25c] sm:$0xff]
    %v3074 = vld [vmem:[#allocation7 + $0x264] sm:$0xf]
    %v3075 = vld [vmem:[#allocation7 + $0x268] sm:$0xff]
    %v3076 = vld [vmem:[#allocation7 + $0x270] sm:$0xff]
    %v3077 = vld [vmem:[#allocation7 + $0x278] sm:$0xff]
    %v3078 = vld [vmem:[#allocation7 + $0x280] sm:$0xf]
    %v3079 = vld [vmem:[#allocation7 + $0x284] sm:$0xff]
    %v3080 = vld [vmem:[#allocation7 + $0x28c] sm:$0xff]
    %v3081 = vld [vmem:[#allocation7 + $0x294] sm:$0xff]
    %v3082 = vld [vmem:[#allocation7 + $0x29c] sm:$0xf]
    %v3083 = vld [vmem:[#allocation7 + $0x2a0] sm:$0xff]
    %v3084 = vld [vmem:[#allocation7 + $0x2a8] sm:$0xff]
    %v3085 = vld [vmem:[#allocation7 + $0x2b0] sm:$0xff]
    %v3086 = vld [vmem:[#allocation7 + $0x2b8] sm:$0xf]
    %v3087 = vld [vmem:[#allocation7 + $0x2bc] sm:$0xff]
    %v3088 = vld [vmem:[#allocation7 + $0x2c4] sm:$0xff]
    %v3089 = vld [vmem:[#allocation7 + $0x2cc] sm:$0xff]
    %v3090 = vld [vmem:[#allocation7 + $0x2d4] sm:$0xf]
    %v3091 = vld [vmem:[#allocation7 + $0x2d8] sm:$0xff]
    %v3092 = vld [vmem:[#allocation7 + $0x2e0] sm:$0xff]
    %v3093 = vld [vmem:[#allocation7 + $0x2e8] sm:$0xff]
    %v3094 = vld [vmem:[#allocation7 + $0x2f0] sm:$0xf]
    %v3095 = vld [vmem:[#allocation7 + $0x2f4] sm:$0xff]
    %v3096 = vld [vmem:[#allocation7 + $0x2fc] sm:$0xff]
    %v3097 = vld [vmem:[#allocation7 + $0x304] sm:$0xff]
    %v3098 = vld [vmem:[#allocation7 + $0x30c] sm:$0xf]
    %v3099 = vld [vmem:[#allocation7 + $0x310] sm:$0xff]
    %v3100 = vld [vmem:[#allocation7 + $0x318] sm:$0xff]
    %v3101 = vld [vmem:[#allocation7 + $0x320] sm:$0xff]
    %v3102 = vld [vmem:[#allocation7 + $0x328] sm:$0xf]
    %v3103 = vld [vmem:[#allocation7 + $0x32c] sm:$0xff]
    %v3104 = vld [vmem:[#allocation7 + $0x334] sm:$0xff]
    %v3105 = vld [vmem:[#allocation7 + $0x33c] sm:$0xff]
    %v3106 = vld [vmem:[#allocation7 + $0x344] sm:$0xf]
    %v3107 = vld [vmem:[#allocation7 + $0x348] sm:$0xff]
    %v3108 = vld [vmem:[#allocation7 + $0x350] sm:$0xff]
    %v3109 = vld [vmem:[#allocation7 + $0x358] sm:$0xff]
    %v3110 = vld [vmem:[#allocation7 + $0x360] sm:$0xf]
    %v3111 = vld [vmem:[#allocation7 + $0x364] sm:$0xff]
    %v3112 = vld [vmem:[#allocation7 + $0x36c] sm:$0xff]
    %v3113 = vld [vmem:[#allocation7 + $0x374] sm:$0xff]
    %v3114 = vld [vmem:[#allocation7 + $0x37c] sm:$0xf]
    %v3115 = vld [vmem:[#allocation7 + $0x380] sm:$0xff]
    %v3116 = vld [vmem:[#allocation7 + $0x388] sm:$0xff]
    %v3117 = vld [vmem:[#allocation7 + $0x390] sm:$0xff]
    %v3118 = vld [vmem:[#allocation7 + $0x398] sm:$0xf]
    %v3119 = vld [vmem:[#allocation7 + $0x39c] sm:$0xff]
    %v3120 = vld [vmem:[#allocation7 + $0x3a4] sm:$0xff]
    %v3121 = vld [vmem:[#allocation7 + $0x3ac] sm:$0xff]
    %v3122 = vld [vmem:[#allocation7 + $0x3b4] sm:$0xf]
    %v3123 = vld [vmem:[#allocation7 + $0x3b8] sm:$0xff]
    %v3124 = vld [vmem:[#allocation7 + $0x3c0] sm:$0xff]
    %v3125 = vld [vmem:[#allocation7 + $0x3c8] sm:$0xff]
    %v3126 = vld [vmem:[#allocation7 + $0x3d0] sm:$0xf]
    %v3127 = vld [vmem:[#allocation7 + $0x3d4] sm:$0xff]
    %v3128 = vld [vmem:[#allocation7 + $0x3dc] sm:$0xff]
    %v3129 = vld [vmem:[#allocation7 + $0x3e4] sm:$0xff]
    %v3130 = vld [vmem:[#allocation7 + $0x3ec] sm:$0xf]
    %v3131 = vld [vmem:[#allocation7 + $0x3f0] sm:$0xff]
    %v3132 = vld [vmem:[#allocation7 + $0x3f8] sm:$0xff]
    %v3133 = vld [vmem:[#allocation7 + $0x400] sm:$0xff]
    %v3134 = vld [vmem:[#allocation7 + $0x408] sm:$0xf]
    %v3135 = vld [vmem:[#allocation7 + $0x40c] sm:$0xff]
    %v3136 = vld [vmem:[#allocation7 + $0x414] sm:$0xff]
    %v3137 = vld [vmem:[#allocation7 + $0x41c] sm:$0xff]
    %v3138 = vld [vmem:[#allocation7 + $0x424] sm:$0xf]
    %v3139 = vld [vmem:[#allocation7 + $0x428] sm:$0xff]
    %v3140 = vld [vmem:[#allocation7 + $0x430] sm:$0xff]
    %v3141 = vld [vmem:[#allocation7 + $0x438] sm:$0xff]
    %v3142 = vld [vmem:[#allocation7 + $0x440] sm:$0xf]
    %v3143 = vld [vmem:[#allocation7 + $0x444] sm:$0xff]
    %v3144 = vld [vmem:[#allocation7 + $0x44c] sm:$0xff]
    %v3145 = vld [vmem:[#allocation7 + $0x454] sm:$0xff]
    %v3146 = vld [vmem:[#allocation7 + $0x45c] sm:$0xf]
    %v3147 = vld [vmem:[#allocation7 + $0x460] sm:$0xff]
    %v3148 = vld [vmem:[#allocation7 + $0x468] sm:$0xff]
    %v3149 = vld [vmem:[#allocation7 + $0x470] sm:$0xff]
    %v3150 = vld [vmem:[#allocation7 + $0x478] sm:$0xf]
    %v3151 = vld [vmem:[#allocation7 + $0x47c] sm:$0xff]
    %v3152 = vld [vmem:[#allocation7 + $0x484] sm:$0xff]
    %v3153 = vld [vmem:[#allocation7 + $0x48c] sm:$0xff]
    %v3154 = vld [vmem:[#allocation7 + $0x494] sm:$0xf]
    %v3155 = vld [vmem:[#allocation7 + $0x498] sm:$0xff]
    %v3156 = vld [vmem:[#allocation7 + $0x4a0] sm:$0xff]
    %v3157 = vld [vmem:[#allocation7 + $0x4a8] sm:$0xff]
    %v3158 = vld [vmem:[#allocation7 + $0x4b0] sm:$0xf]
    %v3159 = vld [vmem:[#allocation7 + $0x4b4] sm:$0xff]
    %v3160 = vld [vmem:[#allocation7 + $0x4bc] sm:$0xff]
    %v3161 = vld [vmem:[#allocation7 + $0x4c4] sm:$0xff]
    %v3162 = vld [vmem:[#allocation7 + $0x4cc] sm:$0xf]
    %v3163 = vld [vmem:[#allocation7 + $0x4d0] sm:$0xff]
    %v3164 = vld [vmem:[#allocation7 + $0x4d8] sm:$0xff]
    %v3165 = vld [vmem:[#allocation7 + $0x4e0] sm:$0xff]
    %v3166 = vld [vmem:[#allocation7 + $0x4e8] sm:$0xf]
    %v3167 = vld [vmem:[#allocation7 + $0x4ec] sm:$0xff]
    %v3168 = vld [vmem:[#allocation7 + $0x4f4] sm:$0xff]
    %v3169 = vld [vmem:[#allocation7 + $0x4fc] sm:$0xff]
    %v3170 = vld [vmem:[#allocation7 + $0x504] sm:$0xf]
    %v3171 = vld [vmem:[#allocation7 + $0x508] sm:$0xff]
    %v3172 = vld [vmem:[#allocation7 + $0x510] sm:$0xff]
    %v3173 = vld [vmem:[#allocation7 + $0x518] sm:$0xff]
    %v3174 = vld [vmem:[#allocation7 + $0x520] sm:$0xf]
    %v3175 = vld [vmem:[#allocation7 + $0x524] sm:$0xff]
    %v3176 = vld [vmem:[#allocation7 + $0x52c] sm:$0xff]
    %v3177 = vld [vmem:[#allocation7 + $0x534] sm:$0xff]
    %v3178 = vld [vmem:[#allocation7 + $0x53c] sm:$0xf]
    %v3179 = vld [vmem:[#allocation7 + $0x540] sm:$0xff]
    %v3180 = vld [vmem:[#allocation7 + $0x548] sm:$0xff]
    %v3181 = vld [vmem:[#allocation7 + $0x550] sm:$0xff]
    %v3182 = vld [vmem:[#allocation7 + $0x558] sm:$0xf]
    %v3183 = vld [vmem:[#allocation7 + $0x55c] sm:$0xff]
    %v3184 = vld [vmem:[#allocation7 + $0x564] sm:$0xff]
    %v3185 = vld [vmem:[#allocation7 + $0x56c] sm:$0xff]
    %v3186 = vld [vmem:[#allocation7 + $0x574] sm:$0xf]
    %v3187 = vld [vmem:[#allocation7 + $0x578] sm:$0xff]
    %v3188 = vld [vmem:[#allocation7 + $0x580] sm:$0xff]
    %v3189 = vld [vmem:[#allocation7 + $0x588] sm:$0xff]
    %v3190 = vld [vmem:[#allocation7 + $0x590] sm:$0xf]
    %v3191 = vld [vmem:[#allocation7 + $0x594] sm:$0xff]
    %v3192 = vld [vmem:[#allocation7 + $0x59c] sm:$0xff]
    %v3193 = vld [vmem:[#allocation7 + $0x5a4] sm:$0xff]
    %v3194 = vld [vmem:[#allocation7 + $0x5ac] sm:$0xf]
    %v3195 = vld [vmem:[#allocation7 + $0x5b0] sm:$0xff]
    %v3196 = vld [vmem:[#allocation7 + $0x5b8] sm:$0xff]
    %v3197 = vld [vmem:[#allocation7 + $0x5c0] sm:$0xff]
    %v3198 = vld [vmem:[#allocation7 + $0x5c8] sm:$0xf]
    %v3199 = vld [vmem:[#allocation7 + $0x5cc] sm:$0xff]
    %v3200 = vld [vmem:[#allocation7 + $0x5d4] sm:$0xff]
    %v3201 = vld [vmem:[#allocation7 + $0x5dc] sm:$0xff]
    %v3202 = vld [vmem:[#allocation7 + $0x5e4] sm:$0xf]
    %v3203 = vld [vmem:[#allocation7 + $0x5e8] sm:$0xff]
    %v3204 = vld [vmem:[#allocation7 + $0x5f0] sm:$0xff]
    %v3205 = vld [vmem:[#allocation7 + $0x5f8] sm:$0xff]
    %v3206 = vld [vmem:[#allocation7 + $0x600] sm:$0xf]
    %v3207 = vld [vmem:[#allocation7 + $0x604] sm:$0xff]
    %v3208 = vld [vmem:[#allocation7 + $0x60c] sm:$0xff]
    %v3209 = vld [vmem:[#allocation7 + $0x614] sm:$0xff]
    %v3210 = vld [vmem:[#allocation7 + $0x61c] sm:$0xf]
    %v3211 = vld [vmem:[#allocation7 + $0x620] sm:$0xff]
    %v3212 = vld [vmem:[#allocation7 + $0x628] sm:$0xff]
    %v3213 = vld [vmem:[#allocation7 + $0x630] sm:$0xff]
    %v3214 = vld [vmem:[#allocation7 + $0x638] sm:$0xf]
    %v3215 = vld [vmem:[#allocation7 + $0x63c] sm:$0xff]
    %v3216 = vld [vmem:[#allocation7 + $0x644] sm:$0xff]
    %v3217 = vld [vmem:[#allocation7 + $0x64c] sm:$0xff]
    %v3218 = vld [vmem:[#allocation7 + $0x654] sm:$0xf]
    %v3219 = vld [vmem:[#allocation7 + $0x658] sm:$0xff]
    %v3220 = vld [vmem:[#allocation7 + $0x660] sm:$0xff]
    %v3221 = vld [vmem:[#allocation7 + $0x668] sm:$0xff]
    %v3222 = vld [vmem:[#allocation7 + $0x670] sm:$0xf]
    %v3223 = vld [vmem:[#allocation7 + $0x674] sm:$0xff]
    %v3224 = vld [vmem:[#allocation7 + $0x67c] sm:$0xff]
    %v3225 = vld [vmem:[#allocation7 + $0x684] sm:$0xff]
    %v3226 = vld [vmem:[#allocation7 + $0x68c] sm:$0xf]
    %v3227 = vld [vmem:[#allocation7 + $0x690] sm:$0xff]
    %v3228 = vld [vmem:[#allocation7 + $0x698] sm:$0xff]
    %v3229 = vld [vmem:[#allocation7 + $0x6a0] sm:$0xff]
    %v3230 = vld [vmem:[#allocation7 + $0x6a8] sm:$0xf]
    %v3231 = vld [vmem:[#allocation7 + $0x6ac] sm:$0xff]
    %v3232 = vld [vmem:[#allocation7 + $0x6b4] sm:$0xff]
    %v3233 = vld [vmem:[#allocation7 + $0x6bc] sm:$0xff]
    %v3234 = vld [vmem:[#allocation7 + $0x6c4] sm:$0xf]
    %v3235 = vld [vmem:[#allocation7 + $0x6c8] sm:$0xff]
    %v3236 = vld [vmem:[#allocation7 + $0x6d0] sm:$0xff]
    %v3237 = vld [vmem:[#allocation7 + $0x6d8] sm:$0xff]
    %v3238 = vld [vmem:[#allocation7 + $0x6e0] sm:$0xf]
    %v3239 = vld [vmem:[#allocation7 + $0x6e4] sm:$0xff]
    %v3240 = vld [vmem:[#allocation7 + $0x6ec] sm:$0xff]
    %v3241 = vld [vmem:[#allocation7 + $0x6f4] sm:$0xff]
    %v3242 = vld [vmem:[#allocation7 + $0x6fc] sm:$0xf]
    %v3243 = vld [vmem:[#allocation7 + $0x700] sm:$0xff]
    %v3244 = vld [vmem:[#allocation7 + $0x708] sm:$0xff]
    %v3245 = vld [vmem:[#allocation7 + $0x710] sm:$0xff]
    %v3246 = vld [vmem:[#allocation7 + $0x718] sm:$0xf]
    %v3247 = vld [vmem:[#allocation7 + $0x71c] sm:$0xff]
    %v3248 = vld [vmem:[#allocation7 + $0x724] sm:$0xff]
    %v3249 = vld [vmem:[#allocation7 + $0x72c] sm:$0xff]
    %v3250 = vld [vmem:[#allocation7 + $0x734] sm:$0xf]
    %v3251 = vld [vmem:[#allocation7 + $0x738] sm:$0xff]
    %v3252 = vld [vmem:[#allocation7 + $0x740] sm:$0xff]
    %v3253 = vld [vmem:[#allocation7 + $0x748] sm:$0xff]
    %v3254 = vld [vmem:[#allocation7 + $0x750] sm:$0xf]
    %v3255 = vld [vmem:[#allocation7 + $0x754] sm:$0xff]
    %v3256 = vld [vmem:[#allocation7 + $0x75c] sm:$0xff]
    %v3257 = vld [vmem:[#allocation7 + $0x764] sm:$0xff]
    %v3258 = vld [vmem:[#allocation7 + $0x76c] sm:$0xf]
    %v3259 = vld [vmem:[#allocation7 + $0x770] sm:$0xff]
    %v3260 = vld [vmem:[#allocation7 + $0x778] sm:$0xff]
    %v3261 = vld [vmem:[#allocation7 + $0x780] sm:$0xff]
    %v3262 = vld [vmem:[#allocation7 + $0x788] sm:$0xf]
    %v3263 = vld [vmem:[#allocation7 + $0x78c] sm:$0xff]
    %v3264 = vld [vmem:[#allocation7 + $0x794] sm:$0xff]
    %v3265 = vld [vmem:[#allocation7 + $0x79c] sm:$0xff]
    %v3266 = vld [vmem:[#allocation7 + $0x7a4] sm:$0xf]
    %v3267 = vld [vmem:[#allocation7 + $0x7a8] sm:$0xff]
    %v3268 = vld [vmem:[#allocation7 + $0x7b0] sm:$0xff]
    %v3269 = vld [vmem:[#allocation7 + $0x7b8] sm:$0xff]
    %v3270 = vld [vmem:[#allocation7 + $0x7c0] sm:$0xf]
    %v3271 = vld [vmem:[#allocation7 + $0x7c4] sm:$0xff]
    %v3272 = vld [vmem:[#allocation7 + $0x7cc] sm:$0xff]
    %v3273 = vld [vmem:[#allocation7 + $0x7d4] sm:$0xff]
    %v3274 = vld [vmem:[#allocation7 + $0x7dc] sm:$0xf]
    %v3275 = vld [vmem:[#allocation7 + $0x7e0] sm:$0xff]
    %v3276 = vld [vmem:[#allocation7 + $0x7e8] sm:$0xff]
    %v3277 = vld [vmem:[#allocation7 + $0x7f0] sm:$0xff]
    %v3278 = vld [vmem:[#allocation7 + $0x7f8] sm:$0xf]
    %v3279 = vld [vmem:[#allocation7 + $0x7fc] sm:$0xff]
    %v3280 = vld [vmem:[#allocation7 + $0x804] sm:$0xff]
    %v3281 = vld [vmem:[#allocation7 + $0x80c] sm:$0xff]
    %v3282 = vld [vmem:[#allocation7 + $0x814] sm:$0xf]
    %v3283 = vld [vmem:[#allocation7 + $0x818] sm:$0xff]
    %v3284 = vld [vmem:[#allocation7 + $0x820] sm:$0xff]
    %v3285 = vld [vmem:[#allocation7 + $0x828] sm:$0xff]
    %v3286 = vld [vmem:[#allocation7 + $0x830] sm:$0xf]
    %v3287 = vld [vmem:[#allocation7 + $0x834] sm:$0xff]
    %v3288 = vld [vmem:[#allocation7 + $0x83c] sm:$0xff]
    %v3289 = vld [vmem:[#allocation7 + $0x844] sm:$0xff]
    %v3290 = vld [vmem:[#allocation7 + $0x84c] sm:$0xf]
    %v3291 = vld [vmem:[#allocation7 + $0x850] sm:$0xff]
    %v3292 = vld [vmem:[#allocation7 + $0x858] sm:$0xff]
    %v3293 = vld [vmem:[#allocation7 + $0x860] sm:$0xff]
    %v3294 = vld [vmem:[#allocation7 + $0x868] sm:$0xf]
    %v3295 = vld [vmem:[#allocation7 + $0x86c] sm:$0xff]
    %v3296 = vld [vmem:[#allocation7 + $0x874] sm:$0xff]
    %v3297 = vld [vmem:[#allocation7 + $0x87c] sm:$0xff]
    %v3298 = vld [vmem:[#allocation7 + $0x884] sm:$0xf]
    %v3299 = vld [vmem:[#allocation7 + $0x888] sm:$0xff]
    %v3300 = vld [vmem:[#allocation7 + $0x890] sm:$0xff]
    %v3301 = vld [vmem:[#allocation7 + $0x898] sm:$0xff]
    %v3302 = vld [vmem:[#allocation7 + $0x8a0] sm:$0xf]
    %v3303 = vld [vmem:[#allocation7 + $0x8a4] sm:$0xff]
    %v3304 = vld [vmem:[#allocation7 + $0x8ac] sm:$0xff]
    %v3305 = vld [vmem:[#allocation7 + $0x8b4] sm:$0xff]
    %v3306 = vld [vmem:[#allocation7 + $0x8bc] sm:$0xf]
    %v3307 = vld [vmem:[#allocation7 + $0x8c0] sm:$0xff]
    %v3308 = vld [vmem:[#allocation7 + $0x8c8] sm:$0xff]
    %v3309 = vld [vmem:[#allocation7 + $0x8d0] sm:$0xff]
    %v3310 = vld [vmem:[#allocation7 + $0x8d8] sm:$0xf]
    %v3311 = vld [vmem:[#allocation7 + $0x8dc] sm:$0xff]
    %v3312 = vld [vmem:[#allocation7 + $0x8e4] sm:$0xff]
    %v3313 = vld [vmem:[#allocation7 + $0x8ec] sm:$0xff]
    %v3314 = vld [vmem:[#allocation7 + $0x8f4] sm:$0xf]
    %v3315 = vld [vmem:[#allocation7 + $0x8f8] sm:$0xff]
    %v3316 = vld [vmem:[#allocation7 + $0x900] sm:$0xff]
    %v3317 = vld [vmem:[#allocation7 + $0x908] sm:$0xff]
    %v3318 = vld [vmem:[#allocation7 + $0x910] sm:$0xf]
    %v3319 = vld [vmem:[#allocation7 + $0x914] sm:$0xff]
    %v3320 = vld [vmem:[#allocation7 + $0x91c] sm:$0xff]
    %v3321 = vld [vmem:[#allocation7 + $0x924] sm:$0xff]
    %v3322 = vld [vmem:[#allocation7 + $0x92c] sm:$0xf]
    %v3323 = vld [vmem:[#allocation7 + $0x930] sm:$0xff]
    %v3324 = vld [vmem:[#allocation7 + $0x938] sm:$0xff]
    %v3325 = vld [vmem:[#allocation7 + $0x940] sm:$0xff]
    %v3326 = vld [vmem:[#allocation7 + $0x948] sm:$0xf]
    %v3327 = vld [vmem:[#allocation7 + $0x94c] sm:$0xff]
    %v3328 = vld [vmem:[#allocation7 + $0x954] sm:$0xff]
    %v3329 = vld [vmem:[#allocation7 + $0x95c] sm:$0xff]
    %v3330 = vld [vmem:[#allocation7 + $0x964] sm:$0xf]
    %v3331 = vld [vmem:[#allocation7 + $0x968] sm:$0xff]
    %v3332 = vld [vmem:[#allocation7 + $0x970] sm:$0xff]
    %v3333 = vld [vmem:[#allocation7 + $0x978] sm:$0xff]
    %v3334 = vld [vmem:[#allocation7 + $0x980] sm:$0xf]
    %v3335 = vld [vmem:[#allocation7 + $0x984] sm:$0xff]
    %v3336 = vld [vmem:[#allocation7 + $0x98c] sm:$0xff]
    %v3337 = vld [vmem:[#allocation7 + $0x994] sm:$0xff]
    %v3338 = vld [vmem:[#allocation7 + $0x99c] sm:$0xf]
    %v3339 = vld [vmem:[#allocation7 + $0x9a0] sm:$0xff]
    %v3340 = vld [vmem:[#allocation7 + $0x9a8] sm:$0xff]
    %v3341 = vld [vmem:[#allocation7 + $0x9b0] sm:$0xff]
    %v3342 = vld [vmem:[#allocation7 + $0x9b8] sm:$0xf]
    %v3343 = vld [vmem:[#allocation7 + $0x9bc] sm:$0xff]
    %v3344 = vld [vmem:[#allocation7 + $0x9c4] sm:$0xff]
    %v3345 = vld [vmem:[#allocation7 + $0x9cc] sm:$0xff]
    %v3346 = vld [vmem:[#allocation7 + $0x9d4] sm:$0xf]
    %v3347 = vld [vmem:[#allocation7 + $0x9d8] sm:$0xff]
    %v3348 = vld [vmem:[#allocation7 + $0x9e0] sm:$0xff]
    %v3349 = vld [vmem:[#allocation7 + $0x9e8] sm:$0xff]
    %v3350 = vld [vmem:[#allocation7 + $0x9f0] sm:$0xf]
    %v3351 = vld [vmem:[#allocation7 + $0x9f4] sm:$0xff]
    %v3352 = vld [vmem:[#allocation7 + $0x9fc] sm:$0xff]
    %v3353 = vld [vmem:[#allocation7 + $0xa04] sm:$0xff]
    %v3354 = vld [vmem:[#allocation7 + $0xa0c] sm:$0xf]
    %v3355 = vld [vmem:[#allocation7 + $0xa10] sm:$0xff]
    %v3356 = vld [vmem:[#allocation7 + $0xa18] sm:$0xff]
    %v3357 = vld [vmem:[#allocation7 + $0xa20] sm:$0xff]
    %v3358 = vld [vmem:[#allocation7 + $0xa28] sm:$0xf]
    %v3359 = vld [vmem:[#allocation7 + $0xa2c] sm:$0xff]
    %v3360 = vld [vmem:[#allocation7 + $0xa34] sm:$0xff]
    %v3361 = vld [vmem:[#allocation7 + $0xa3c] sm:$0xff]
    %v3362 = vld [vmem:[#allocation7 + $0xa44] sm:$0xf]
    %v3363 = vld [vmem:[#allocation7 + $0xa48] sm:$0xff]
    %v3364 = vld [vmem:[#allocation7 + $0xa50] sm:$0xff]
    %v3365 = vld [vmem:[#allocation7 + $0xa58] sm:$0xff]
    %v3366 = vld [vmem:[#allocation7 + $0xa60] sm:$0xf]
    %v3367 = vld [vmem:[#allocation7 + $0xa64] sm:$0xff]
    %v3368 = vld [vmem:[#allocation7 + $0xa6c] sm:$0xff]
    %v3369 = vld [vmem:[#allocation7 + $0xa74] sm:$0xff]
    %v3370 = vld [vmem:[#allocation7 + $0xa7c] sm:$0xf]
    %v3371 = vld [vmem:[#allocation7 + $0xa80] sm:$0xff]
    %v3372 = vld [vmem:[#allocation7 + $0xa88] sm:$0xff]
    %v3373 = vld [vmem:[#allocation7 + $0xa90] sm:$0xff]
    %v3374 = vld [vmem:[#allocation7 + $0xa98] sm:$0xf]
    %v3375 = vld [vmem:[#allocation7 + $0xa9c] sm:$0xff]
    %v3376 = vld [vmem:[#allocation7 + $0xaa4] sm:$0xff]
    %v3377 = vld [vmem:[#allocation7 + $0xaac] sm:$0xff]
    %v3378 = vld [vmem:[#allocation7 + $0xab4] sm:$0xf]
    %v3379 = vld [vmem:[#allocation7 + $0xab8] sm:$0xff]
    %v3380 = vld [vmem:[#allocation7 + $0xac0] sm:$0xff]
    %v3381 = vld [vmem:[#allocation7 + $0xac8] sm:$0xff]
    %v3382 = vld [vmem:[#allocation7 + $0xad0] sm:$0xf]
    %v3383 = vld [vmem:[#allocation7 + $0xad4] sm:$0xff]
    %v3384 = vld [vmem:[#allocation7 + $0xadc] sm:$0xff]
    %v3385 = vld [vmem:[#allocation7 + $0xae4] sm:$0xff]
    %v3386 = vld [vmem:[#allocation7 + $0xaec] sm:$0xf]
    %v3387 = vld [vmem:[#allocation7 + $0xaf0] sm:$0xff]
    %v3388 = vld [vmem:[#allocation7 + $0xaf8] sm:$0xff]
    %v3389 = vld [vmem:[#allocation7 + $0xb00] sm:$0xff]
    %v3390 = vld [vmem:[#allocation7 + $0xb08] sm:$0xf]
    %v3391 = vld [vmem:[#allocation7 + $0xb0c] sm:$0xff]
    %v3392 = vld [vmem:[#allocation7 + $0xb14] sm:$0xff]
    %v3393 = vld [vmem:[#allocation7 + $0xb1c] sm:$0xff]
    %v3394 = vld [vmem:[#allocation7 + $0xb24] sm:$0xf]
    %v3395 = vld [vmem:[#allocation7 + $0xb28] sm:$0xff]
    %v3396 = vld [vmem:[#allocation7 + $0xb30] sm:$0xff]
    %v3397 = vld [vmem:[#allocation7 + $0xb38] sm:$0xff]
    %v3398 = vld [vmem:[#allocation7 + $0xb40] sm:$0xf]
    %v3399 = vld [vmem:[#allocation7 + $0xb44] sm:$0xff]
    %v3400 = vld [vmem:[#allocation7 + $0xb4c] sm:$0xff]
    %v3401 = vld [vmem:[#allocation7 + $0xb54] sm:$0xff]
    %v3402 = vld [vmem:[#allocation7 + $0xb5c] sm:$0xf]
    %v3403 = vld [vmem:[#allocation7 + $0xb60] sm:$0xff]
    %v3404 = vld [vmem:[#allocation7 + $0xb68] sm:$0xff]
    %v3405 = vld [vmem:[#allocation7 + $0xb70] sm:$0xff]
    %v3406 = vld [vmem:[#allocation7 + $0xb78] sm:$0xf]
    %v3407 = vld [vmem:[#allocation7 + $0xb7c] sm:$0xff]
    %v3408 = vld [vmem:[#allocation7 + $0xb84] sm:$0xff]
    %v3409 = vld [vmem:[#allocation7 + $0xb8c] sm:$0xff]
    %v3410 = vld [vmem:[#allocation7 + $0xb94] sm:$0xf]
    %v3411 = vld [vmem:[#allocation7 + $0xb98] sm:$0xff]
    %v3412 = vld [vmem:[#allocation7 + $0xba0] sm:$0xff]
    %v3413 = vld [vmem:[#allocation7 + $0xba8] sm:$0xff]
    %v3414 = vld [vmem:[#allocation7 + $0xbb0] sm:$0xf]
    %v3415 = vld [vmem:[#allocation7 + $0xbb4] sm:$0xff]
    %v3416 = vld [vmem:[#allocation7 + $0xbbc] sm:$0xff]
    %v3417 = vld [vmem:[#allocation7 + $0xbc4] sm:$0xff]
    %v3418 = vld [vmem:[#allocation7 + $0xbcc] sm:$0xf]
    %v3419 = vld [vmem:[#allocation7 + $0xbd0] sm:$0xff]
    %v3420 = vld [vmem:[#allocation7 + $0xbd8] sm:$0xff]
    %v3421 = vld [vmem:[#allocation7 + $0xbe0] sm:$0xff]
    %v3422 = vld [vmem:[#allocation7 + $0xbe8] sm:$0xf]
    %v3423 = vld [vmem:[#allocation7 + $0xbec] sm:$0xff]
    %v3424 = vld [vmem:[#allocation7 + $0xbf4] sm:$0xff]
    %v3425 = vld [vmem:[#allocation7 + $0xbfc] sm:$0xff]
    %v3426 = vld [vmem:[#allocation7 + $0xc04] sm:$0xf]
    %v3427 = vld [vmem:[#allocation7 + $0xc08] sm:$0xff]
    %v3428 = vld [vmem:[#allocation7 + $0xc10] sm:$0xff]
    %v3429 = vld [vmem:[#allocation7 + $0xc18] sm:$0xff]
    %v3430 = vld [vmem:[#allocation7 + $0xc20] sm:$0xf]
    %v3431 = vld [vmem:[#allocation7 + $0xc24] sm:$0xff]
    %v3432 = vld [vmem:[#allocation7 + $0xc2c] sm:$0xff]
    %v3433 = vld [vmem:[#allocation7 + $0xc34] sm:$0xff]
    %v3434 = vld [vmem:[#allocation7 + $0xc3c] sm:$0xf]
    %v3435 = vld [vmem:[#allocation8] sm:$0xff]
    %v3437 = vlaneseq
    %v3438 = vshrl.u32 %v3437, 7
    %v3439 = vsub.s32 0, %v3438
    %v3440 = vrot.slane %v3435, %v3439
    %v3441 = vlaneseq
    %v3442 = vshrl.u32 %v3441, 7
    %v3443 = vsub.s32 1, %v3442
    %v3444 = vrot.slane %v3435, %v3443
    %v3445 = vlaneseq
    %v3446 = vshrl.u32 %v3445, 7
    %v3447 = vsub.s32 2, %v3446
    %v3448 = vrot.slane %v3435, %v3447
    %v3449 = vlaneseq
    %v3450 = vshrl.u32 %v3449, 7
    %v3451 = vsub.s32 3, %v3450
    %v3452 = vrot.slane %v3435, %v3451
    %v3453 = vlaneseq
    %v3454 = vshrl.u32 %v3453, 7
    %v3455 = vsub.s32 4, %v3454
    %v3456 = vrot.slane %v3435, %v3455
    %v3457 = vlaneseq
    %v3458 = vshrl.u32 %v3457, 7
    %v3459 = vsub.s32 5, %v3458
    %v3460 = vrot.slane %v3435, %v3459
    %v3461 = vlaneseq
    %v3462 = vshrl.u32 %v3461, 7
    %v3463 = vsub.s32 6, %v3462
    %v3464 = vrot.slane %v3435, %v3463
    %v3920 = vunpack.c.l.b16 %v2987
    %v3921 = vunpack.c.h.b16 %v2987
    %v3922 = vunpack.c.l.b16 %v2988
    %v3923 = vunpack.c.h.b16 %v2988
    %v3924 = vunpack.c.l.b16 %v2989
    %v3925 = vunpack.c.h.b16 %v2989
    %v3926 = vunpack.c.l.b16 %v2990
    %v3927 = vunpack.c.l.b16 %v2991
    %v3928 = vunpack.c.h.b16 %v2991
    %v3929 = vunpack.c.l.b16 %v2992
    %v3930 = vunpack.c.h.b16 %v2992
    %v3931 = vunpack.c.l.b16 %v2993
    %v3932 = vunpack.c.h.b16 %v2993
    %v3933 = vunpack.c.l.b16 %v2994
    %v3934 = vunpack.c.l.b16 %v2995
    %v3935 = vunpack.c.h.b16 %v2995
    %v3936 = vunpack.c.l.b16 %v2996
    %v3937 = vunpack.c.h.b16 %v2996
    %v3938 = vunpack.c.l.b16 %v2997
    %v3939 = vunpack.c.h.b16 %v2997
    %v3940 = vunpack.c.l.b16 %v2998
    %v3941 = vunpack.c.l.b16 %v2999
    %v3942 = vunpack.c.h.b16 %v2999
    %v3943 = vunpack.c.l.b16 %v3000
    %v3944 = vunpack.c.h.b16 %v3000
    %v3945 = vunpack.c.l.b16 %v3001
    %v3946 = vunpack.c.h.b16 %v3001
    %v3947 = vunpack.c.l.b16 %v3002
    %v3948 = vunpack.c.l.b16 %v3003
    %v3949 = vunpack.c.h.b16 %v3003
    %v3950 = vunpack.c.l.b16 %v3004
    %v3951 = vunpack.c.h.b16 %v3004
    %v3952 = vunpack.c.l.b16 %v3005
    %v3953 = vunpack.c.h.b16 %v3005
    %v3954 = vunpack.c.l.b16 %v3006
    %v3955 = vunpack.c.l.b16 %v3007
    %v3956 = vunpack.c.h.b16 %v3007
    %v3957 = vunpack.c.l.b16 %v3008
    %v3958 = vunpack.c.h.b16 %v3008
    %v3959 = vunpack.c.l.b16 %v3009
    %v3960 = vunpack.c.h.b16 %v3009
    %v3961 = vunpack.c.l.b16 %v3010
    %v3962 = vunpack.c.l.b16 %v3011
    %v3963 = vunpack.c.h.b16 %v3011
    %v3964 = vunpack.c.l.b16 %v3012
    %v3965 = vunpack.c.h.b16 %v3012
    %v3966 = vunpack.c.l.b16 %v3013
    %v3967 = vunpack.c.h.b16 %v3013
    %v3968 = vunpack.c.l.b16 %v3014
    %v3969 = vunpack.c.l.b16 %v3015
    %v3970 = vunpack.c.h.b16 %v3015
    %v3971 = vunpack.c.l.b16 %v3016
    %v3972 = vunpack.c.h.b16 %v3016
    %v3973 = vunpack.c.l.b16 %v3017
    %v3974 = vunpack.c.h.b16 %v3017
    %v3975 = vunpack.c.l.b16 %v3018
    %v3976 = vunpack.c.l.b16 %v3019
    %v3977 = vunpack.c.h.b16 %v3019
    %v3978 = vunpack.c.l.b16 %v3020
    %v3979 = vunpack.c.h.b16 %v3020
    %v3980 = vunpack.c.l.b16 %v3021
    %v3981 = vunpack.c.h.b16 %v3021
    %v3982 = vunpack.c.l.b16 %v3022
    %v3983 = vunpack.c.l.b16 %v3023
    %v3984 = vunpack.c.h.b16 %v3023
    %v3985 = vunpack.c.l.b16 %v3024
    %v3986 = vunpack.c.h.b16 %v3024
    %v3987 = vunpack.c.l.b16 %v3025
    %v3988 = vunpack.c.h.b16 %v3025
    %v3989 = vunpack.c.l.b16 %v3026
    %v3990 = vunpack.c.l.b16 %v3027
    %v3991 = vunpack.c.h.b16 %v3027
    %v3992 = vunpack.c.l.b16 %v3028
    %v3993 = vunpack.c.h.b16 %v3028
    %v3994 = vunpack.c.l.b16 %v3029
    %v3995 = vunpack.c.h.b16 %v3029
    %v3996 = vunpack.c.l.b16 %v3030
    %v3997 = vunpack.c.l.b16 %v3031
    %v3998 = vunpack.c.h.b16 %v3031
    %v3999 = vunpack.c.l.b16 %v3032
    %v4000 = vunpack.c.h.b16 %v3032
    %v4001 = vunpack.c.l.b16 %v3033
    %v4002 = vunpack.c.h.b16 %v3033
    %v4003 = vunpack.c.l.b16 %v3034
    %v4004 = vunpack.c.l.b16 %v3035
    %v4005 = vunpack.c.h.b16 %v3035
    %v4006 = vunpack.c.l.b16 %v3036
    %v4007 = vunpack.c.h.b16 %v3036
    %v4008 = vunpack.c.l.b16 %v3037
    %v4009 = vunpack.c.h.b16 %v3037
    %v4010 = vunpack.c.l.b16 %v3038
    %v4011 = vunpack.c.l.b16 %v3039
    %v4012 = vunpack.c.h.b16 %v3039
    %v4013 = vunpack.c.l.b16 %v3040
    %v4014 = vunpack.c.h.b16 %v3040
    %v4015 = vunpack.c.l.b16 %v3041
    %v4016 = vunpack.c.h.b16 %v3041
    %v4017 = vunpack.c.l.b16 %v3042
    %v4018 = vunpack.c.l.b16 %v3043
    %v4019 = vunpack.c.h.b16 %v3043
    %v4020 = vunpack.c.l.b16 %v3044
    %v4021 = vunpack.c.h.b16 %v3044
    %v4022 = vunpack.c.l.b16 %v3045
    %v4023 = vunpack.c.h.b16 %v3045
    %v4024 = vunpack.c.l.b16 %v3046
    %v4025 = vunpack.c.l.b16 %v3047
    %v4026 = vunpack.c.h.b16 %v3047
    %v4027 = vunpack.c.l.b16 %v3048
    %v4028 = vunpack.c.h.b16 %v3048
    %v4029 = vunpack.c.l.b16 %v3049
    %v4030 = vunpack.c.h.b16 %v3049
    %v4031 = vunpack.c.l.b16 %v3050
    %v4032 = vunpack.c.l.b16 %v3051
    %v4033 = vunpack.c.h.b16 %v3051
    %v4034 = vunpack.c.l.b16 %v3052
    %v4035 = vunpack.c.h.b16 %v3052
    %v4036 = vunpack.c.l.b16 %v3053
    %v4037 = vunpack.c.h.b16 %v3053
    %v4038 = vunpack.c.l.b16 %v3054
    %v4039 = vunpack.c.l.b16 %v3055
    %v4040 = vunpack.c.h.b16 %v3055
    %v4041 = vunpack.c.l.b16 %v3056
    %v4042 = vunpack.c.h.b16 %v3056
    %v4043 = vunpack.c.l.b16 %v3057
    %v4044 = vunpack.c.h.b16 %v3057
    %v4045 = vunpack.c.l.b16 %v3058
    %v4046 = vunpack.c.l.b16 %v3059
    %v4047 = vunpack.c.h.b16 %v3059
    %v4048 = vunpack.c.l.b16 %v3060
    %v4049 = vunpack.c.h.b16 %v3060
    %v4050 = vunpack.c.l.b16 %v3061
    %v4051 = vunpack.c.h.b16 %v3061
    %v4052 = vunpack.c.l.b16 %v3062
    %v4053 = vunpack.c.l.b16 %v3063
    %v4054 = vunpack.c.h.b16 %v3063
    %v4055 = vunpack.c.l.b16 %v3064
    %v4056 = vunpack.c.h.b16 %v3064
    %v4057 = vunpack.c.l.b16 %v3065
    %v4058 = vunpack.c.h.b16 %v3065
    %v4059 = vunpack.c.l.b16 %v3066
    %v4060 = vunpack.c.l.b16 %v3067
    %v4061 = vunpack.c.h.b16 %v3067
    %v4062 = vunpack.c.l.b16 %v3068
    %v4063 = vunpack.c.h.b16 %v3068
    %v4064 = vunpack.c.l.b16 %v3069
    %v4065 = vunpack.c.h.b16 %v3069
    %v4066 = vunpack.c.l.b16 %v3070
    %v4067 = vunpack.c.l.b16 %v3071
    %v4068 = vunpack.c.h.b16 %v3071
    %v4069 = vunpack.c.l.b16 %v3072
    %v4070 = vunpack.c.h.b16 %v3072
    %v4071 = vunpack.c.l.b16 %v3073
    %v4072 = vunpack.c.h.b16 %v3073
    %v4073 = vunpack.c.l.b16 %v3074
    %v4074 = vunpack.c.l.b16 %v3075
    %v4075 = vunpack.c.h.b16 %v3075
    %v4076 = vunpack.c.l.b16 %v3076
    %v4077 = vunpack.c.h.b16 %v3076
    %v4078 = vunpack.c.l.b16 %v3077
    %v4079 = vunpack.c.h.b16 %v3077
    %v4080 = vunpack.c.l.b16 %v3078
    %v4081 = vunpack.c.l.b16 %v3079
    %v4082 = vunpack.c.h.b16 %v3079
    %v4083 = vunpack.c.l.b16 %v3080
    %v4084 = vunpack.c.h.b16 %v3080
    %v4085 = vunpack.c.l.b16 %v3081
    %v4086 = vunpack.c.h.b16 %v3081
    %v4087 = vunpack.c.l.b16 %v3082
    %v4088 = vunpack.c.l.b16 %v3083
    %v4089 = vunpack.c.h.b16 %v3083
    %v4090 = vunpack.c.l.b16 %v3084
    %v4091 = vunpack.c.h.b16 %v3084
    %v4092 = vunpack.c.l.b16 %v3085
    %v4093 = vunpack.c.h.b16 %v3085
    %v4094 = vunpack.c.l.b16 %v3086
    %v4095 = vunpack.c.l.b16 %v3087
    %v4096 = vunpack.c.h.b16 %v3087
    %v4097 = vunpack.c.l.b16 %v3088
    %v4098 = vunpack.c.h.b16 %v3088
    %v4099 = vunpack.c.l.b16 %v3089
    %v4100 = vunpack.c.h.b16 %v3089
    %v4101 = vunpack.c.l.b16 %v3090
    %v4102 = vunpack.c.l.b16 %v3091
    %v4103 = vunpack.c.h.b16 %v3091
    %v4104 = vunpack.c.l.b16 %v3092
    %v4105 = vunpack.c.h.b16 %v3092
    %v4106 = vunpack.c.l.b16 %v3093
    %v4107 = vunpack.c.h.b16 %v3093
    %v4108 = vunpack.c.l.b16 %v3094
    %v4109 = vunpack.c.l.b16 %v3095
    %v4110 = vunpack.c.h.b16 %v3095
    %v4111 = vunpack.c.l.b16 %v3096
    %v4112 = vunpack.c.h.b16 %v3096
    %v4113 = vunpack.c.l.b16 %v3097
    %v4114 = vunpack.c.h.b16 %v3097
    %v4115 = vunpack.c.l.b16 %v3098
    %v4116 = vunpack.c.l.b16 %v3099
    %v4117 = vunpack.c.h.b16 %v3099
    %v4118 = vunpack.c.l.b16 %v3100
    %v4119 = vunpack.c.h.b16 %v3100
    %v4120 = vunpack.c.l.b16 %v3101
    %v4121 = vunpack.c.h.b16 %v3101
    %v4122 = vunpack.c.l.b16 %v3102
    %v4123 = vunpack.c.l.b16 %v3103
    %v4124 = vunpack.c.h.b16 %v3103
    %v4125 = vunpack.c.l.b16 %v3104
    %v4126 = vunpack.c.h.b16 %v3104
    %v4127 = vunpack.c.l.b16 %v3105
    %v4128 = vunpack.c.h.b16 %v3105
    %v4129 = vunpack.c.l.b16 %v3106
    %v4130 = vunpack.c.l.b16 %v3107
    %v4131 = vunpack.c.h.b16 %v3107
    %v4132 = vunpack.c.l.b16 %v3108
    %v4133 = vunpack.c.h.b16 %v3108
    %v4134 = vunpack.c.l.b16 %v3109
    %v4135 = vunpack.c.h.b16 %v3109
    %v4136 = vunpack.c.l.b16 %v3110
    %v4137 = vunpack.c.l.b16 %v3111
    %v4138 = vunpack.c.h.b16 %v3111
    %v4139 = vunpack.c.l.b16 %v3112
    %v4140 = vunpack.c.h.b16 %v3112
    %v4141 = vunpack.c.l.b16 %v3113
    %v4142 = vunpack.c.h.b16 %v3113
    %v4143 = vunpack.c.l.b16 %v3114
    %v4144 = vunpack.c.l.b16 %v3115
    %v4145 = vunpack.c.h.b16 %v3115
    %v4146 = vunpack.c.l.b16 %v3116
    %v4147 = vunpack.c.h.b16 %v3116
    %v4148 = vunpack.c.l.b16 %v3117
    %v4149 = vunpack.c.h.b16 %v3117
    %v4150 = vunpack.c.l.b16 %v3118
    %v4151 = vunpack.c.l.b16 %v3119
    %v4152 = vunpack.c.h.b16 %v3119
    %v4153 = vunpack.c.l.b16 %v3120
    %v4154 = vunpack.c.h.b16 %v3120
    %v4155 = vunpack.c.l.b16 %v3121
    %v4156 = vunpack.c.h.b16 %v3121
    %v4157 = vunpack.c.l.b16 %v3122
    %v4158 = vunpack.c.l.b16 %v3123
    %v4159 = vunpack.c.h.b16 %v3123
    %v4160 = vunpack.c.l.b16 %v3124
    %v4161 = vunpack.c.h.b16 %v3124
    %v4162 = vunpack.c.l.b16 %v3125
    %v4163 = vunpack.c.h.b16 %v3125
    %v4164 = vunpack.c.l.b16 %v3126
    %v4165 = vunpack.c.l.b16 %v3127
    %v4166 = vunpack.c.h.b16 %v3127
    %v4167 = vunpack.c.l.b16 %v3128
    %v4168 = vunpack.c.h.b16 %v3128
    %v4169 = vunpack.c.l.b16 %v3129
    %v4170 = vunpack.c.h.b16 %v3129
    %v4171 = vunpack.c.l.b16 %v3130
    %v4172 = vunpack.c.l.b16 %v3131
    %v4173 = vunpack.c.h.b16 %v3131
    %v4174 = vunpack.c.l.b16 %v3132
    %v4175 = vunpack.c.h.b16 %v3132
    %v4176 = vunpack.c.l.b16 %v3133
    %v4177 = vunpack.c.h.b16 %v3133
    %v4178 = vunpack.c.l.b16 %v3134
    %v4179 = vunpack.c.l.b16 %v3135
    %v4180 = vunpack.c.h.b16 %v3135
    %v4181 = vunpack.c.l.b16 %v3136
    %v4182 = vunpack.c.h.b16 %v3136
    %v4183 = vunpack.c.l.b16 %v3137
    %v4184 = vunpack.c.h.b16 %v3137
    %v4185 = vunpack.c.l.b16 %v3138
    %v4186 = vunpack.c.l.b16 %v3139
    %v4187 = vunpack.c.h.b16 %v3139
    %v4188 = vunpack.c.l.b16 %v3140
    %v4189 = vunpack.c.h.b16 %v3140
    %v4190 = vunpack.c.l.b16 %v3141
    %v4191 = vunpack.c.h.b16 %v3141
    %v4192 = vunpack.c.l.b16 %v3142
    %v4193 = vunpack.c.l.b16 %v3143
    %v4194 = vunpack.c.h.b16 %v3143
    %v4195 = vunpack.c.l.b16 %v3144
    %v4196 = vunpack.c.h.b16 %v3144
    %v4197 = vunpack.c.l.b16 %v3145
    %v4198 = vunpack.c.h.b16 %v3145
    %v4199 = vunpack.c.l.b16 %v3146
    %v4200 = vunpack.c.l.b16 %v3147
    %v4201 = vunpack.c.h.b16 %v3147
    %v4202 = vunpack.c.l.b16 %v3148
    %v4203 = vunpack.c.h.b16 %v3148
    %v4204 = vunpack.c.l.b16 %v3149
    %v4205 = vunpack.c.h.b16 %v3149
    %v4206 = vunpack.c.l.b16 %v3150
    %v4207 = vunpack.c.l.b16 %v3151
    %v4208 = vunpack.c.h.b16 %v3151
    %v4209 = vunpack.c.l.b16 %v3152
    %v4210 = vunpack.c.h.b16 %v3152
    %v4211 = vunpack.c.l.b16 %v3153
    %v4212 = vunpack.c.h.b16 %v3153
    %v4213 = vunpack.c.l.b16 %v3154
    %v4214 = vunpack.c.l.b16 %v3155
    %v4215 = vunpack.c.h.b16 %v3155
    %v4216 = vunpack.c.l.b16 %v3156
    %v4217 = vunpack.c.h.b16 %v3156
    %v4218 = vunpack.c.l.b16 %v3157
    %v4219 = vunpack.c.h.b16 %v3157
    %v4220 = vunpack.c.l.b16 %v3158
    %v4221 = vunpack.c.l.b16 %v3159
    %v4222 = vunpack.c.h.b16 %v3159
    %v4223 = vunpack.c.l.b16 %v3160
    %v4224 = vunpack.c.h.b16 %v3160
    %v4225 = vunpack.c.l.b16 %v3161
    %v4226 = vunpack.c.h.b16 %v3161
    %v4227 = vunpack.c.l.b16 %v3162
    %v4228 = vunpack.c.l.b16 %v3163
    %v4229 = vunpack.c.h.b16 %v3163
    %v4230 = vunpack.c.l.b16 %v3164
    %v4231 = vunpack.c.h.b16 %v3164
    %v4232 = vunpack.c.l.b16 %v3165
    %v4233 = vunpack.c.h.b16 %v3165
    %v4234 = vunpack.c.l.b16 %v3166
    %v4235 = vunpack.c.l.b16 %v3167
    %v4236 = vunpack.c.h.b16 %v3167
    %v4237 = vunpack.c.l.b16 %v3168
    %v4238 = vunpack.c.h.b16 %v3168
    %v4239 = vunpack.c.l.b16 %v3169
    %v4240 = vunpack.c.h.b16 %v3169
    %v4241 = vunpack.c.l.b16 %v3170
    %v4242 = vunpack.c.l.b16 %v3171
    %v4243 = vunpack.c.h.b16 %v3171
    %v4244 = vunpack.c.l.b16 %v3172
    %v4245 = vunpack.c.h.b16 %v3172
    %v4246 = vunpack.c.l.b16 %v3173
    %v4247 = vunpack.c.h.b16 %v3173
    %v4248 = vunpack.c.l.b16 %v3174
    %v4249 = vunpack.c.l.b16 %v3175
    %v4250 = vunpack.c.h.b16 %v3175
    %v4251 = vunpack.c.l.b16 %v3176
    %v4252 = vunpack.c.h.b16 %v3176
    %v4253 = vunpack.c.l.b16 %v3177
    %v4254 = vunpack.c.h.b16 %v3177
    %v4255 = vunpack.c.l.b16 %v3178
    %v4256 = vunpack.c.l.b16 %v3179
    %v4257 = vunpack.c.h.b16 %v3179
    %v4258 = vunpack.c.l.b16 %v3180
    %v4259 = vunpack.c.h.b16 %v3180
    %v4260 = vunpack.c.l.b16 %v3181
    %v4261 = vunpack.c.h.b16 %v3181
    %v4262 = vunpack.c.l.b16 %v3182
    %v4263 = vunpack.c.l.b16 %v3183
    %v4264 = vunpack.c.h.b16 %v3183
    %v4265 = vunpack.c.l.b16 %v3184
    %v4266 = vunpack.c.h.b16 %v3184
    %v4267 = vunpack.c.l.b16 %v3185
    %v4268 = vunpack.c.h.b16 %v3185
    %v4269 = vunpack.c.l.b16 %v3186
    %v4270 = vunpack.c.l.b16 %v3187
    %v4271 = vunpack.c.h.b16 %v3187
    %v4272 = vunpack.c.l.b16 %v3188
    %v4273 = vunpack.c.h.b16 %v3188
    %v4274 = vunpack.c.l.b16 %v3189
    %v4275 = vunpack.c.h.b16 %v3189
    %v4276 = vunpack.c.l.b16 %v3190
    %v4277 = vunpack.c.l.b16 %v3191
    %v4278 = vunpack.c.h.b16 %v3191
    %v4279 = vunpack.c.l.b16 %v3192
    %v4280 = vunpack.c.h.b16 %v3192
    %v4281 = vunpack.c.l.b16 %v3193
    %v4282 = vunpack.c.h.b16 %v3193
    %v4283 = vunpack.c.l.b16 %v3194
    %v4284 = vunpack.c.l.b16 %v3195
    %v4285 = vunpack.c.h.b16 %v3195
    %v4286 = vunpack.c.l.b16 %v3196
    %v4287 = vunpack.c.h.b16 %v3196
    %v4288 = vunpack.c.l.b16 %v3197
    %v4289 = vunpack.c.h.b16 %v3197
    %v4290 = vunpack.c.l.b16 %v3198
    %v4291 = vunpack.c.l.b16 %v3199
    %v4292 = vunpack.c.h.b16 %v3199
    %v4293 = vunpack.c.l.b16 %v3200
    %v4294 = vunpack.c.h.b16 %v3200
    %v4295 = vunpack.c.l.b16 %v3201
    %v4296 = vunpack.c.h.b16 %v3201
    %v4297 = vunpack.c.l.b16 %v3202
    %v4298 = vunpack.c.l.b16 %v3203
    %v4299 = vunpack.c.h.b16 %v3203
    %v4300 = vunpack.c.l.b16 %v3204
    %v4301 = vunpack.c.h.b16 %v3204
    %v4302 = vunpack.c.l.b16 %v3205
    %v4303 = vunpack.c.h.b16 %v3205
    %v4304 = vunpack.c.l.b16 %v3206
    %v4305 = vunpack.c.l.b16 %v3207
    %v4306 = vunpack.c.h.b16 %v3207
    %v4307 = vunpack.c.l.b16 %v3208
    %v4308 = vunpack.c.h.b16 %v3208
    %v4309 = vunpack.c.l.b16 %v3209
    %v4310 = vunpack.c.h.b16 %v3209
    %v4311 = vunpack.c.l.b16 %v3210
    %v4312 = vunpack.c.l.b16 %v3211
    %v4313 = vunpack.c.h.b16 %v3211
    %v4314 = vunpack.c.l.b16 %v3212
    %v4315 = vunpack.c.h.b16 %v3212
    %v4316 = vunpack.c.l.b16 %v3213
    %v4317 = vunpack.c.h.b16 %v3213
    %v4318 = vunpack.c.l.b16 %v3214
    %v4319 = vunpack.c.l.b16 %v3215
    %v4320 = vunpack.c.h.b16 %v3215
    %v4321 = vunpack.c.l.b16 %v3216
    %v4322 = vunpack.c.h.b16 %v3216
    %v4323 = vunpack.c.l.b16 %v3217
    %v4324 = vunpack.c.h.b16 %v3217
    %v4325 = vunpack.c.l.b16 %v3218
    %v4326 = vunpack.c.l.b16 %v3219
    %v4327 = vunpack.c.h.b16 %v3219
    %v4328 = vunpack.c.l.b16 %v3220
    %v4329 = vunpack.c.h.b16 %v3220
    %v4330 = vunpack.c.l.b16 %v3221
    %v4331 = vunpack.c.h.b16 %v3221
    %v4332 = vunpack.c.l.b16 %v3222
    %v4333 = vunpack.c.l.b16 %v3223
    %v4334 = vunpack.c.h.b16 %v3223
    %v4335 = vunpack.c.l.b16 %v3224
    %v4336 = vunpack.c.h.b16 %v3224
    %v4337 = vunpack.c.l.b16 %v3225
    %v4338 = vunpack.c.h.b16 %v3225
    %v4339 = vunpack.c.l.b16 %v3226
    %v4340 = vunpack.c.l.b16 %v3227
    %v4341 = vunpack.c.h.b16 %v3227
    %v4342 = vunpack.c.l.b16 %v3228
    %v4343 = vunpack.c.h.b16 %v3228
    %v4344 = vunpack.c.l.b16 %v3229
    %v4345 = vunpack.c.h.b16 %v3229
    %v4346 = vunpack.c.l.b16 %v3230
    %v4347 = vunpack.c.l.b16 %v3231
    %v4348 = vunpack.c.h.b16 %v3231
    %v4349 = vunpack.c.l.b16 %v3232
    %v4350 = vunpack.c.h.b16 %v3232
    %v4351 = vunpack.c.l.b16 %v3233
    %v4352 = vunpack.c.h.b16 %v3233
    %v4353 = vunpack.c.l.b16 %v3234
    %v4354 = vunpack.c.l.b16 %v3235
    %v4355 = vunpack.c.h.b16 %v3235
    %v4356 = vunpack.c.l.b16 %v3236
    %v4357 = vunpack.c.h.b16 %v3236
    %v4358 = vunpack.c.l.b16 %v3237
    %v4359 = vunpack.c.h.b16 %v3237
    %v4360 = vunpack.c.l.b16 %v3238
    %v4361 = vunpack.c.l.b16 %v3239
    %v4362 = vunpack.c.h.b16 %v3239
    %v4363 = vunpack.c.l.b16 %v3240
    %v4364 = vunpack.c.h.b16 %v3240
    %v4365 = vunpack.c.l.b16 %v3241
    %v4366 = vunpack.c.h.b16 %v3241
    %v4367 = vunpack.c.l.b16 %v3242
    %v4368 = vunpack.c.l.b16 %v3243
    %v4369 = vunpack.c.h.b16 %v3243
    %v4370 = vunpack.c.l.b16 %v3244
    %v4371 = vunpack.c.h.b16 %v3244
    %v4372 = vunpack.c.l.b16 %v3245
    %v4373 = vunpack.c.h.b16 %v3245
    %v4374 = vunpack.c.l.b16 %v3246
    %v4375 = vunpack.c.l.b16 %v3247
    %v4376 = vunpack.c.h.b16 %v3247
    %v4377 = vunpack.c.l.b16 %v3248
    %v4378 = vunpack.c.h.b16 %v3248
    %v4379 = vunpack.c.l.b16 %v3249
    %v4380 = vunpack.c.h.b16 %v3249
    %v4381 = vunpack.c.l.b16 %v3250
    %v4382 = vunpack.c.l.b16 %v3251
    %v4383 = vunpack.c.h.b16 %v3251
    %v4384 = vunpack.c.l.b16 %v3252
    %v4385 = vunpack.c.h.b16 %v3252
    %v4386 = vunpack.c.l.b16 %v3253
    %v4387 = vunpack.c.h.b16 %v3253
    %v4388 = vunpack.c.l.b16 %v3254
    %v4389 = vunpack.c.l.b16 %v3255
    %v4390 = vunpack.c.h.b16 %v3255
    %v4391 = vunpack.c.l.b16 %v3256
    %v4392 = vunpack.c.h.b16 %v3256
    %v4393 = vunpack.c.l.b16 %v3257
    %v4394 = vunpack.c.h.b16 %v3257
    %v4395 = vunpack.c.l.b16 %v3258
    %v4396 = vunpack.c.l.b16 %v3259
    %v4397 = vunpack.c.h.b16 %v3259
    %v4398 = vunpack.c.l.b16 %v3260
    %v4399 = vunpack.c.h.b16 %v3260
    %v4400 = vunpack.c.l.b16 %v3261
    %v4401 = vunpack.c.h.b16 %v3261
    %v4402 = vunpack.c.l.b16 %v3262
    %v4403 = vunpack.c.l.b16 %v3263
    %v4404 = vunpack.c.h.b16 %v3263
    %v4405 = vunpack.c.l.b16 %v3264
    %v4406 = vunpack.c.h.b16 %v3264
    %v4407 = vunpack.c.l.b16 %v3265
    %v4408 = vunpack.c.h.b16 %v3265
    %v4409 = vunpack.c.l.b16 %v3266
    %v4410 = vunpack.c.l.b16 %v3267
    %v4411 = vunpack.c.h.b16 %v3267
    %v4412 = vunpack.c.l.b16 %v3268
    %v4413 = vunpack.c.h.b16 %v3268
    %v4414 = vunpack.c.l.b16 %v3269
    %v4415 = vunpack.c.h.b16 %v3269
    %v4416 = vunpack.c.l.b16 %v3270
    %v4417 = vunpack.c.l.b16 %v3271
    %v4418 = vunpack.c.h.b16 %v3271
    %v4419 = vunpack.c.l.b16 %v3272
    %v4420 = vunpack.c.h.b16 %v3272
    %v4421 = vunpack.c.l.b16 %v3273
    %v4422 = vunpack.c.h.b16 %v3273
    %v4423 = vunpack.c.l.b16 %v3274
    %v4424 = vunpack.c.l.b16 %v3275
    %v4425 = vunpack.c.h.b16 %v3275
    %v4426 = vunpack.c.l.b16 %v3276
    %v4427 = vunpack.c.h.b16 %v3276
    %v4428 = vunpack.c.l.b16 %v3277
    %v4429 = vunpack.c.h.b16 %v3277
    %v4430 = vunpack.c.l.b16 %v3278
    %v4431 = vunpack.c.l.b16 %v3279
    %v4432 = vunpack.c.h.b16 %v3279
    %v4433 = vunpack.c.l.b16 %v3280
    %v4434 = vunpack.c.h.b16 %v3280
    %v4435 = vunpack.c.l.b16 %v3281
    %v4436 = vunpack.c.h.b16 %v3281
    %v4437 = vunpack.c.l.b16 %v3282
    %v4438 = vunpack.c.l.b16 %v3283
    %v4439 = vunpack.c.h.b16 %v3283
    %v4440 = vunpack.c.l.b16 %v3284
    %v4441 = vunpack.c.h.b16 %v3284
    %v4442 = vunpack.c.l.b16 %v3285
    %v4443 = vunpack.c.h.b16 %v3285
    %v4444 = vunpack.c.l.b16 %v3286
    %v4445 = vunpack.c.l.b16 %v3287
    %v4446 = vunpack.c.h.b16 %v3287
    %v4447 = vunpack.c.l.b16 %v3288
    %v4448 = vunpack.c.h.b16 %v3288
    %v4449 = vunpack.c.l.b16 %v3289
    %v4450 = vunpack.c.h.b16 %v3289
    %v4451 = vunpack.c.l.b16 %v3290
    %v4452 = vunpack.c.l.b16 %v3291
    %v4453 = vunpack.c.h.b16 %v3291
    %v4454 = vunpack.c.l.b16 %v3292
    %v4455 = vunpack.c.h.b16 %v3292
    %v4456 = vunpack.c.l.b16 %v3293
    %v4457 = vunpack.c.h.b16 %v3293
    %v4458 = vunpack.c.l.b16 %v3294
    %v4459 = vunpack.c.l.b16 %v3295
    %v4460 = vunpack.c.h.b16 %v3295
    %v4461 = vunpack.c.l.b16 %v3296
    %v4462 = vunpack.c.h.b16 %v3296
    %v4463 = vunpack.c.l.b16 %v3297
    %v4464 = vunpack.c.h.b16 %v3297
    %v4465 = vunpack.c.l.b16 %v3298
    %v4466 = vunpack.c.l.b16 %v3299
    %v4467 = vunpack.c.h.b16 %v3299
    %v4468 = vunpack.c.l.b16 %v3300
    %v4469 = vunpack.c.h.b16 %v3300
    %v4470 = vunpack.c.l.b16 %v3301
    %v4471 = vunpack.c.h.b16 %v3301
    %v4472 = vunpack.c.l.b16 %v3302
    %v4473 = vunpack.c.l.b16 %v3303
    %v4474 = vunpack.c.h.b16 %v3303
    %v4475 = vunpack.c.l.b16 %v3304
    %v4476 = vunpack.c.h.b16 %v3304
    %v4477 = vunpack.c.l.b16 %v3305
    %v4478 = vunpack.c.h.b16 %v3305
    %v4479 = vunpack.c.l.b16 %v3306
    %v4480 = vunpack.c.l.b16 %v3307
    %v4481 = vunpack.c.h.b16 %v3307
    %v4482 = vunpack.c.l.b16 %v3308
    %v4483 = vunpack.c.h.b16 %v3308
    %v4484 = vunpack.c.l.b16 %v3309
    %v4485 = vunpack.c.h.b16 %v3309
    %v4486 = vunpack.c.l.b16 %v3310
    %v4487 = vunpack.c.l.b16 %v3311
    %v4488 = vunpack.c.h.b16 %v3311
    %v4489 = vunpack.c.l.b16 %v3312
    %v4490 = vunpack.c.h.b16 %v3312
    %v4491 = vunpack.c.l.b16 %v3313
    %v4492 = vunpack.c.h.b16 %v3313
    %v4493 = vunpack.c.l.b16 %v3314
    %v4494 = vunpack.c.l.b16 %v3315
    %v4495 = vunpack.c.h.b16 %v3315
    %v4496 = vunpack.c.l.b16 %v3316
    %v4497 = vunpack.c.h.b16 %v3316
    %v4498 = vunpack.c.l.b16 %v3317
    %v4499 = vunpack.c.h.b16 %v3317
    %v4500 = vunpack.c.l.b16 %v3318
    %v4501 = vunpack.c.l.b16 %v3319
    %v4502 = vunpack.c.h.b16 %v3319
    %v4503 = vunpack.c.l.b16 %v3320
    %v4504 = vunpack.c.h.b16 %v3320
    %v4505 = vunpack.c.l.b16 %v3321
    %v4506 = vunpack.c.h.b16 %v3321
    %v4507 = vunpack.c.l.b16 %v3322
    %v4508 = vunpack.c.l.b16 %v3323
    %v4509 = vunpack.c.h.b16 %v3323
    %v4510 = vunpack.c.l.b16 %v3324
    %v4511 = vunpack.c.h.b16 %v3324
    %v4512 = vunpack.c.l.b16 %v3325
    %v4513 = vunpack.c.h.b16 %v3325
    %v4514 = vunpack.c.l.b16 %v3326
    %v4515 = vunpack.c.l.b16 %v3327
    %v4516 = vunpack.c.h.b16 %v3327
    %v4517 = vunpack.c.l.b16 %v3328
    %v4518 = vunpack.c.h.b16 %v3328
    %v4519 = vunpack.c.l.b16 %v3329
    %v4520 = vunpack.c.h.b16 %v3329
    %v4521 = vunpack.c.l.b16 %v3330
    %v4522 = vunpack.c.l.b16 %v3331
    %v4523 = vunpack.c.h.b16 %v3331
    %v4524 = vunpack.c.l.b16 %v3332
    %v4525 = vunpack.c.h.b16 %v3332
    %v4526 = vunpack.c.l.b16 %v3333
    %v4527 = vunpack.c.h.b16 %v3333
    %v4528 = vunpack.c.l.b16 %v3334
    %v4529 = vunpack.c.l.b16 %v3335
    %v4530 = vunpack.c.h.b16 %v3335
    %v4531 = vunpack.c.l.b16 %v3336
    %v4532 = vunpack.c.h.b16 %v3336
    %v4533 = vunpack.c.l.b16 %v3337
    %v4534 = vunpack.c.h.b16 %v3337
    %v4535 = vunpack.c.l.b16 %v3338
    %v4536 = vunpack.c.l.b16 %v3339
    %v4537 = vunpack.c.h.b16 %v3339
    %v4538 = vunpack.c.l.b16 %v3340
    %v4539 = vunpack.c.h.b16 %v3340
    %v4540 = vunpack.c.l.b16 %v3341
    %v4541 = vunpack.c.h.b16 %v3341
    %v4542 = vunpack.c.l.b16 %v3342
    %v4543 = vunpack.c.l.b16 %v3343
    %v4544 = vunpack.c.h.b16 %v3343
    %v4545 = vunpack.c.l.b16 %v3344
    %v4546 = vunpack.c.h.b16 %v3344
    %v4547 = vunpack.c.l.b16 %v3345
    %v4548 = vunpack.c.h.b16 %v3345
    %v4549 = vunpack.c.l.b16 %v3346
    %v4550 = vunpack.c.l.b16 %v3347
    %v4551 = vunpack.c.h.b16 %v3347
    %v4552 = vunpack.c.l.b16 %v3348
    %v4553 = vunpack.c.h.b16 %v3348
    %v4554 = vunpack.c.l.b16 %v3349
    %v4555 = vunpack.c.h.b16 %v3349
    %v4556 = vunpack.c.l.b16 %v3350
    %v4557 = vunpack.c.l.b16 %v3351
    %v4558 = vunpack.c.h.b16 %v3351
    %v4559 = vunpack.c.l.b16 %v3352
    %v4560 = vunpack.c.h.b16 %v3352
    %v4561 = vunpack.c.l.b16 %v3353
    %v4562 = vunpack.c.h.b16 %v3353
    %v4563 = vunpack.c.l.b16 %v3354
    %v4564 = vunpack.c.l.b16 %v3355
    %v4565 = vunpack.c.h.b16 %v3355
    %v4566 = vunpack.c.l.b16 %v3356
    %v4567 = vunpack.c.h.b16 %v3356
    %v4568 = vunpack.c.l.b16 %v3357
    %v4569 = vunpack.c.h.b16 %v3357
    %v4570 = vunpack.c.l.b16 %v3358
    %v4571 = vunpack.c.l.b16 %v3359
    %v4572 = vunpack.c.h.b16 %v3359
    %v4573 = vunpack.c.l.b16 %v3360
    %v4574 = vunpack.c.h.b16 %v3360
    %v4575 = vunpack.c.l.b16 %v3361
    %v4576 = vunpack.c.h.b16 %v3361
    %v4577 = vunpack.c.l.b16 %v3362
    %v4578 = vunpack.c.l.b16 %v3363
    %v4579 = vunpack.c.h.b16 %v3363
    %v4580 = vunpack.c.l.b16 %v3364
    %v4581 = vunpack.c.h.b16 %v3364
    %v4582 = vunpack.c.l.b16 %v3365
    %v4583 = vunpack.c.h.b16 %v3365
    %v4584 = vunpack.c.l.b16 %v3366
    %v4585 = vunpack.c.l.b16 %v3367
    %v4586 = vunpack.c.h.b16 %v3367
    %v4587 = vunpack.c.l.b16 %v3368
    %v4588 = vunpack.c.h.b16 %v3368
    %v4589 = vunpack.c.l.b16 %v3369
    %v4590 = vunpack.c.h.b16 %v3369
    %v4591 = vunpack.c.l.b16 %v3370
    %v4592 = vunpack.c.l.b16 %v3371
    %v4593 = vunpack.c.h.b16 %v3371
    %v4594 = vunpack.c.l.b16 %v3372
    %v4595 = vunpack.c.h.b16 %v3372
    %v4596 = vunpack.c.l.b16 %v3373
    %v4597 = vunpack.c.h.b16 %v3373
    %v4598 = vunpack.c.l.b16 %v3374
    %v4599 = vunpack.c.l.b16 %v3375
    %v4600 = vunpack.c.h.b16 %v3375
    %v4601 = vunpack.c.l.b16 %v3376
    %v4602 = vunpack.c.h.b16 %v3376
    %v4603 = vunpack.c.l.b16 %v3377
    %v4604 = vunpack.c.h.b16 %v3377
    %v4605 = vunpack.c.l.b16 %v3378
    %v4606 = vunpack.c.l.b16 %v3379
    %v4607 = vunpack.c.h.b16 %v3379
    %v4608 = vunpack.c.l.b16 %v3380
    %v4609 = vunpack.c.h.b16 %v3380
    %v4610 = vunpack.c.l.b16 %v3381
    %v4611 = vunpack.c.h.b16 %v3381
    %v4612 = vunpack.c.l.b16 %v3382
    %v4613 = vunpack.c.l.b16 %v3383
    %v4614 = vunpack.c.h.b16 %v3383
    %v4615 = vunpack.c.l.b16 %v3384
    %v4616 = vunpack.c.h.b16 %v3384
    %v4617 = vunpack.c.l.b16 %v3385
    %v4618 = vunpack.c.h.b16 %v3385
    %v4619 = vunpack.c.l.b16 %v3386
    %v4620 = vunpack.c.l.b16 %v3387
    %v4621 = vunpack.c.h.b16 %v3387
    %v4622 = vunpack.c.l.b16 %v3388
    %v4623 = vunpack.c.h.b16 %v3388
    %v4624 = vunpack.c.l.b16 %v3389
    %v4625 = vunpack.c.h.b16 %v3389
    %v4626 = vunpack.c.l.b16 %v3390
    %v4627 = vunpack.c.l.b16 %v3391
    %v4628 = vunpack.c.h.b16 %v3391
    %v4629 = vunpack.c.l.b16 %v3392
    %v4630 = vunpack.c.h.b16 %v3392
    %v4631 = vunpack.c.l.b16 %v3393
    %v4632 = vunpack.c.h.b16 %v3393
    %v4633 = vunpack.c.l.b16 %v3394
    %v4634 = vunpack.c.l.b16 %v3395
    %v4635 = vunpack.c.h.b16 %v3395
    %v4636 = vunpack.c.l.b16 %v3396
    %v4637 = vunpack.c.h.b16 %v3396
    %v4638 = vunpack.c.l.b16 %v3397
    %v4639 = vunpack.c.h.b16 %v3397
    %v4640 = vunpack.c.l.b16 %v3398
    %v4641 = vunpack.c.l.b16 %v3399
    %v4642 = vunpack.c.h.b16 %v3399
    %v4643 = vunpack.c.l.b16 %v3400
    %v4644 = vunpack.c.h.b16 %v3400
    %v4645 = vunpack.c.l.b16 %v3401
    %v4646 = vunpack.c.h.b16 %v3401
    %v4647 = vunpack.c.l.b16 %v3402
    %v4648 = vunpack.c.l.b16 %v3403
    %v4649 = vunpack.c.h.b16 %v3403
    %v4650 = vunpack.c.l.b16 %v3404
    %v4651 = vunpack.c.h.b16 %v3404
    %v4652 = vunpack.c.l.b16 %v3405
    %v4653 = vunpack.c.h.b16 %v3405
    %v4654 = vunpack.c.l.b16 %v3406
    %v4655 = vunpack.c.l.b16 %v3407
    %v4656 = vunpack.c.h.b16 %v3407
    %v4657 = vunpack.c.l.b16 %v3408
    %v4658 = vunpack.c.h.b16 %v3408
    %v4659 = vunpack.c.l.b16 %v3409
    %v4660 = vunpack.c.h.b16 %v3409
    %v4661 = vunpack.c.l.b16 %v3410
    %v4662 = vunpack.c.l.b16 %v3411
    %v4663 = vunpack.c.h.b16 %v3411
    %v4664 = vunpack.c.l.b16 %v3412
    %v4665 = vunpack.c.h.b16 %v3412
    %v4666 = vunpack.c.l.b16 %v3413
    %v4667 = vunpack.c.h.b16 %v3413
    %v4668 = vunpack.c.l.b16 %v3414
    %v4669 = vunpack.c.l.b16 %v3415
    %v4670 = vunpack.c.h.b16 %v3415
    %v4671 = vunpack.c.l.b16 %v3416
    %v4672 = vunpack.c.h.b16 %v3416
    %v4673 = vunpack.c.l.b16 %v3417
    %v4674 = vunpack.c.h.b16 %v3417
    %v4675 = vunpack.c.l.b16 %v3418
    %v4676 = vunpack.c.l.b16 %v3419
    %v4677 = vunpack.c.h.b16 %v3419
    %v4678 = vunpack.c.l.b16 %v3420
    %v4679 = vunpack.c.h.b16 %v3420
    %v4680 = vunpack.c.l.b16 %v3421
    %v4681 = vunpack.c.h.b16 %v3421
    %v4682 = vunpack.c.l.b16 %v3422
    %v4683 = vunpack.c.l.b16 %v3423
    %v4684 = vunpack.c.h.b16 %v3423
    %v4685 = vunpack.c.l.b16 %v3424
    %v4686 = vunpack.c.h.b16 %v3424
    %v4687 = vunpack.c.l.b16 %v3425
    %v4688 = vunpack.c.h.b16 %v3425
    %v4689 = vunpack.c.l.b16 %v3426
    %v4690 = vunpack.c.l.b16 %v3427
    %v4691 = vunpack.c.h.b16 %v3427
    %v4692 = vunpack.c.l.b16 %v3428
    %v4693 = vunpack.c.h.b16 %v3428
    %v4694 = vunpack.c.l.b16 %v3429
    %v4695 = vunpack.c.h.b16 %v3429
    %v4696 = vunpack.c.l.b16 %v3430
    %v4697 = vunpack.c.l.b16 %v3431
    %v4698 = vunpack.c.h.b16 %v3431
    %v4699 = vunpack.c.l.b16 %v3432
    %v4700 = vunpack.c.h.b16 %v3432
    %v4701 = vunpack.c.l.b16 %v3433
    %v4702 = vunpack.c.h.b16 %v3433
    %v4703 = vunpack.c.l.b16 %v3434
    %v4704 = vpack.c.b16 %v3927, %v3920
    %v4705 = vpack.c.b16 %v3928, %v3921
    %v4706 = vpack.c.b16 %v3929, %v3922
    %v4707 = vpack.c.b16 %v3930, %v3923
    %v4708 = vpack.c.b16 %v3931, %v3924
    %v4709 = vpack.c.b16 %v3932, %v3925
    %v4710 = vpack.c.b16 %v3933, %v3926
    %v4711 = vpack.c.b16 %v3941, %v3934
    %v4712 = vpack.c.b16 %v3942, %v3935
    %v4713 = vpack.c.b16 %v3943, %v3936
    %v4714 = vpack.c.b16 %v3944, %v3937
    %v4715 = vpack.c.b16 %v3945, %v3938
    %v4716 = vpack.c.b16 %v3946, %v3939
    %v4717 = vpack.c.b16 %v3947, %v3940
    %v4718 = vpack.c.b16 %v3955, %v3948
    %v4719 = vpack.c.b16 %v3956, %v3949
    %v4720 = vpack.c.b16 %v3957, %v3950
    %v4721 = vpack.c.b16 %v3958, %v3951
    %v4722 = vpack.c.b16 %v3959, %v3952
    %v4723 = vpack.c.b16 %v3960, %v3953
    %v4724 = vpack.c.b16 %v3961, %v3954
    %v4725 = vpack.c.b16 %v3969, %v3962
    %v4726 = vpack.c.b16 %v3970, %v3963
    %v4727 = vpack.c.b16 %v3971, %v3964
    %v4728 = vpack.c.b16 %v3972, %v3965
    %v4729 = vpack.c.b16 %v3973, %v3966
    %v4730 = vpack.c.b16 %v3974, %v3967
    %v4731 = vpack.c.b16 %v3975, %v3968
    %v4732 = vpack.c.b16 %v3983, %v3976
    %v4733 = vpack.c.b16 %v3984, %v3977
    %v4734 = vpack.c.b16 %v3985, %v3978
    %v4735 = vpack.c.b16 %v3986, %v3979
    %v4736 = vpack.c.b16 %v3987, %v3980
    %v4737 = vpack.c.b16 %v3988, %v3981
    %v4738 = vpack.c.b16 %v3989, %v3982
    %v4739 = vpack.c.b16 %v3997, %v3990
    %v4740 = vpack.c.b16 %v3998, %v3991
    %v4741 = vpack.c.b16 %v3999, %v3992
    %v4742 = vpack.c.b16 %v4000, %v3993
    %v4743 = vpack.c.b16 %v4001, %v3994
    %v4744 = vpack.c.b16 %v4002, %v3995
    %v4745 = vpack.c.b16 %v4003, %v3996
    %v4746 = vpack.c.b16 %v4011, %v4004
    %v4747 = vpack.c.b16 %v4012, %v4005
    %v4748 = vpack.c.b16 %v4013, %v4006
    %v4749 = vpack.c.b16 %v4014, %v4007
    %v4750 = vpack.c.b16 %v4015, %v4008
    %v4751 = vpack.c.b16 %v4016, %v4009
    %v4752 = vpack.c.b16 %v4017, %v4010
    %v4753 = vpack.c.b16 %v4025, %v4018
    %v4754 = vpack.c.b16 %v4026, %v4019
    %v4755 = vpack.c.b16 %v4027, %v4020
    %v4756 = vpack.c.b16 %v4028, %v4021
    %v4757 = vpack.c.b16 %v4029, %v4022
    %v4758 = vpack.c.b16 %v4030, %v4023
    %v4759 = vpack.c.b16 %v4031, %v4024
    %v4760 = vpack.c.b16 %v4039, %v4032
    %v4761 = vpack.c.b16 %v4040, %v4033
    %v4762 = vpack.c.b16 %v4041, %v4034
    %v4763 = vpack.c.b16 %v4042, %v4035
    %v4764 = vpack.c.b16 %v4043, %v4036
    %v4765 = vpack.c.b16 %v4044, %v4037
    %v4766 = vpack.c.b16 %v4045, %v4038
    %v4767 = vpack.c.b16 %v4053, %v4046
    %v4768 = vpack.c.b16 %v4054, %v4047
    %v4769 = vpack.c.b16 %v4055, %v4048
    %v4770 = vpack.c.b16 %v4056, %v4049
    %v4771 = vpack.c.b16 %v4057, %v4050
    %v4772 = vpack.c.b16 %v4058, %v4051
    %v4773 = vpack.c.b16 %v4059, %v4052
    %v4774 = vpack.c.b16 %v4067, %v4060
    %v4775 = vpack.c.b16 %v4068, %v4061
    %v4776 = vpack.c.b16 %v4069, %v4062
    %v4777 = vpack.c.b16 %v4070, %v4063
    %v4778 = vpack.c.b16 %v4071, %v4064
    %v4779 = vpack.c.b16 %v4072, %v4065
    %v4780 = vpack.c.b16 %v4073, %v4066
    %v4781 = vpack.c.b16 %v4081, %v4074
    %v4782 = vpack.c.b16 %v4082, %v4075
    %v4783 = vpack.c.b16 %v4083, %v4076
    %v4784 = vpack.c.b16 %v4084, %v4077
    %v4785 = vpack.c.b16 %v4085, %v4078
    %v4786 = vpack.c.b16 %v4086, %v4079
    %v4787 = vpack.c.b16 %v4087, %v4080
    %v4788 = vpack.c.b16 %v4095, %v4088
    %v4789 = vpack.c.b16 %v4096, %v4089
    %v4790 = vpack.c.b16 %v4097, %v4090
    %v4791 = vpack.c.b16 %v4098, %v4091
    %v4792 = vpack.c.b16 %v4099, %v4092
    %v4793 = vpack.c.b16 %v4100, %v4093
    %v4794 = vpack.c.b16 %v4101, %v4094
    %v4795 = vpack.c.b16 %v4109, %v4102
    %v4796 = vpack.c.b16 %v4110, %v4103
    %v4797 = vpack.c.b16 %v4111, %v4104
    %v4798 = vpack.c.b16 %v4112, %v4105
    %v4799 = vpack.c.b16 %v4113, %v4106
    %v4800 = vpack.c.b16 %v4114, %v4107
    %v4801 = vpack.c.b16 %v4115, %v4108
    %v4802 = vpack.c.b16 %v4123, %v4116
    %v4803 = vpack.c.b16 %v4124, %v4117
    %v4804 = vpack.c.b16 %v4125, %v4118
    %v4805 = vpack.c.b16 %v4126, %v4119
    %v4806 = vpack.c.b16 %v4127, %v4120
    %v4807 = vpack.c.b16 %v4128, %v4121
    %v4808 = vpack.c.b16 %v4129, %v4122
    %v4809 = vpack.c.b16 %v4137, %v4130
    %v4810 = vpack.c.b16 %v4138, %v4131
    %v4811 = vpack.c.b16 %v4139, %v4132
    %v4812 = vpack.c.b16 %v4140, %v4133
    %v4813 = vpack.c.b16 %v4141, %v4134
    %v4814 = vpack.c.b16 %v4142, %v4135
    %v4815 = vpack.c.b16 %v4143, %v4136
    %v4816 = vpack.c.b16 %v4151, %v4144
    %v4817 = vpack.c.b16 %v4152, %v4145
    %v4818 = vpack.c.b16 %v4153, %v4146
    %v4819 = vpack.c.b16 %v4154, %v4147
    %v4820 = vpack.c.b16 %v4155, %v4148
    %v4821 = vpack.c.b16 %v4156, %v4149
    %v4822 = vpack.c.b16 %v4157, %v4150
    %v4823 = vpack.c.b16 %v4165, %v4158
    %v4824 = vpack.c.b16 %v4166, %v4159
    %v4825 = vpack.c.b16 %v4167, %v4160
    %v4826 = vpack.c.b16 %v4168, %v4161
    %v4827 = vpack.c.b16 %v4169, %v4162
    %v4828 = vpack.c.b16 %v4170, %v4163
    %v4829 = vpack.c.b16 %v4171, %v4164
    %v4830 = vpack.c.b16 %v4179, %v4172
    %v4831 = vpack.c.b16 %v4180, %v4173
    %v4832 = vpack.c.b16 %v4181, %v4174
    %v4833 = vpack.c.b16 %v4182, %v4175
    %v4834 = vpack.c.b16 %v4183, %v4176
    %v4835 = vpack.c.b16 %v4184, %v4177
    %v4836 = vpack.c.b16 %v4185, %v4178
    %v4837 = vpack.c.b16 %v4193, %v4186
    %v4838 = vpack.c.b16 %v4194, %v4187
    %v4839 = vpack.c.b16 %v4195, %v4188
    %v4840 = vpack.c.b16 %v4196, %v4189
    %v4841 = vpack.c.b16 %v4197, %v4190
    %v4842 = vpack.c.b16 %v4198, %v4191
    %v4843 = vpack.c.b16 %v4199, %v4192
    %v4844 = vpack.c.b16 %v4207, %v4200
    %v4845 = vpack.c.b16 %v4208, %v4201
    %v4846 = vpack.c.b16 %v4209, %v4202
    %v4847 = vpack.c.b16 %v4210, %v4203
    %v4848 = vpack.c.b16 %v4211, %v4204
    %v4849 = vpack.c.b16 %v4212, %v4205
    %v4850 = vpack.c.b16 %v4213, %v4206
    %v4851 = vpack.c.b16 %v4221, %v4214
    %v4852 = vpack.c.b16 %v4222, %v4215
    %v4853 = vpack.c.b16 %v4223, %v4216
    %v4854 = vpack.c.b16 %v4224, %v4217
    %v4855 = vpack.c.b16 %v4225, %v4218
    %v4856 = vpack.c.b16 %v4226, %v4219
    %v4857 = vpack.c.b16 %v4227, %v4220
    %v4858 = vpack.c.b16 %v4235, %v4228
    %v4859 = vpack.c.b16 %v4236, %v4229
    %v4860 = vpack.c.b16 %v4237, %v4230
    %v4861 = vpack.c.b16 %v4238, %v4231
    %v4862 = vpack.c.b16 %v4239, %v4232
    %v4863 = vpack.c.b16 %v4240, %v4233
    %v4864 = vpack.c.b16 %v4241, %v4234
    %v4865 = vpack.c.b16 %v4249, %v4242
    %v4866 = vpack.c.b16 %v4250, %v4243
    %v4867 = vpack.c.b16 %v4251, %v4244
    %v4868 = vpack.c.b16 %v4252, %v4245
    %v4869 = vpack.c.b16 %v4253, %v4246
    %v4870 = vpack.c.b16 %v4254, %v4247
    %v4871 = vpack.c.b16 %v4255, %v4248
    %v4872 = vpack.c.b16 %v4263, %v4256
    %v4873 = vpack.c.b16 %v4264, %v4257
    %v4874 = vpack.c.b16 %v4265, %v4258
    %v4875 = vpack.c.b16 %v4266, %v4259
    %v4876 = vpack.c.b16 %v4267, %v4260
    %v4877 = vpack.c.b16 %v4268, %v4261
    %v4878 = vpack.c.b16 %v4269, %v4262
    %v4879 = vpack.c.b16 %v4277, %v4270
    %v4880 = vpack.c.b16 %v4278, %v4271
    %v4881 = vpack.c.b16 %v4279, %v4272
    %v4882 = vpack.c.b16 %v4280, %v4273
    %v4883 = vpack.c.b16 %v4281, %v4274
    %v4884 = vpack.c.b16 %v4282, %v4275
    %v4885 = vpack.c.b16 %v4283, %v4276
    %v4886 = vpack.c.b16 %v4291, %v4284
    %v4887 = vpack.c.b16 %v4292, %v4285
    %v4888 = vpack.c.b16 %v4293, %v4286
    %v4889 = vpack.c.b16 %v4294, %v4287
    %v4890 = vpack.c.b16 %v4295, %v4288
    %v4891 = vpack.c.b16 %v4296, %v4289
    %v4892 = vpack.c.b16 %v4297, %v4290
    %v4893 = vpack.c.b16 %v4305, %v4298
    %v4894 = vpack.c.b16 %v4306, %v4299
    %v4895 = vpack.c.b16 %v4307, %v4300
    %v4896 = vpack.c.b16 %v4308, %v4301
    %v4897 = vpack.c.b16 %v4309, %v4302
    %v4898 = vpack.c.b16 %v4310, %v4303
    %v4899 = vpack.c.b16 %v4311, %v4304
    %v4900 = vpack.c.b16 %v4319, %v4312
    %v4901 = vpack.c.b16 %v4320, %v4313
    %v4902 = vpack.c.b16 %v4321, %v4314
    %v4903 = vpack.c.b16 %v4322, %v4315
    %v4904 = vpack.c.b16 %v4323, %v4316
    %v4905 = vpack.c.b16 %v4324, %v4317
    %v4906 = vpack.c.b16 %v4325, %v4318
    %v4907 = vpack.c.b16 %v4333, %v4326
    %v4908 = vpack.c.b16 %v4334, %v4327
    %v4909 = vpack.c.b16 %v4335, %v4328
    %v4910 = vpack.c.b16 %v4336, %v4329
    %v4911 = vpack.c.b16 %v4337, %v4330
    %v4912 = vpack.c.b16 %v4338, %v4331
    %v4913 = vpack.c.b16 %v4339, %v4332
    %v4914 = vpack.c.b16 %v4347, %v4340
    %v4915 = vpack.c.b16 %v4348, %v4341
    %v4916 = vpack.c.b16 %v4349, %v4342
    %v4917 = vpack.c.b16 %v4350, %v4343
    %v4918 = vpack.c.b16 %v4351, %v4344
    %v4919 = vpack.c.b16 %v4352, %v4345
    %v4920 = vpack.c.b16 %v4353, %v4346
    %v4921 = vpack.c.b16 %v4361, %v4354
    %v4922 = vpack.c.b16 %v4362, %v4355
    %v4923 = vpack.c.b16 %v4363, %v4356
    %v4924 = vpack.c.b16 %v4364, %v4357
    %v4925 = vpack.c.b16 %v4365, %v4358
    %v4926 = vpack.c.b16 %v4366, %v4359
    %v4927 = vpack.c.b16 %v4367, %v4360
    %v4928 = vpack.c.b16 %v4375, %v4368
    %v4929 = vpack.c.b16 %v4376, %v4369
    %v4930 = vpack.c.b16 %v4377, %v4370
    %v4931 = vpack.c.b16 %v4378, %v4371
    %v4932 = vpack.c.b16 %v4379, %v4372
    %v4933 = vpack.c.b16 %v4380, %v4373
    %v4934 = vpack.c.b16 %v4381, %v4374
    %v4935 = vpack.c.b16 %v4389, %v4382
    %v4936 = vpack.c.b16 %v4390, %v4383
    %v4937 = vpack.c.b16 %v4391, %v4384
    %v4938 = vpack.c.b16 %v4392, %v4385
    %v4939 = vpack.c.b16 %v4393, %v4386
    %v4940 = vpack.c.b16 %v4394, %v4387
    %v4941 = vpack.c.b16 %v4395, %v4388
    %v4942 = vpack.c.b16 %v4403, %v4396
    %v4943 = vpack.c.b16 %v4404, %v4397
    %v4944 = vpack.c.b16 %v4405, %v4398
    %v4945 = vpack.c.b16 %v4406, %v4399
    %v4946 = vpack.c.b16 %v4407, %v4400
    %v4947 = vpack.c.b16 %v4408, %v4401
    %v4948 = vpack.c.b16 %v4409, %v4402
    %v4949 = vpack.c.b16 %v4417, %v4410
    %v4950 = vpack.c.b16 %v4418, %v4411
    %v4951 = vpack.c.b16 %v4419, %v4412
    %v4952 = vpack.c.b16 %v4420, %v4413
    %v4953 = vpack.c.b16 %v4421, %v4414
    %v4954 = vpack.c.b16 %v4422, %v4415
    %v4955 = vpack.c.b16 %v4423, %v4416
    %v4956 = vpack.c.b16 %v4431, %v4424
    %v4957 = vpack.c.b16 %v4432, %v4425
    %v4958 = vpack.c.b16 %v4433, %v4426
    %v4959 = vpack.c.b16 %v4434, %v4427
    %v4960 = vpack.c.b16 %v4435, %v4428
    %v4961 = vpack.c.b16 %v4436, %v4429
    %v4962 = vpack.c.b16 %v4437, %v4430
    %v4963 = vpack.c.b16 %v4445, %v4438
    %v4964 = vpack.c.b16 %v4446, %v4439
    %v4965 = vpack.c.b16 %v4447, %v4440
    %v4966 = vpack.c.b16 %v4448, %v4441
    %v4967 = vpack.c.b16 %v4449, %v4442
    %v4968 = vpack.c.b16 %v4450, %v4443
    %v4969 = vpack.c.b16 %v4451, %v4444
    %v4970 = vpack.c.b16 %v4459, %v4452
    %v4971 = vpack.c.b16 %v4460, %v4453
    %v4972 = vpack.c.b16 %v4461, %v4454
    %v4973 = vpack.c.b16 %v4462, %v4455
    %v4974 = vpack.c.b16 %v4463, %v4456
    %v4975 = vpack.c.b16 %v4464, %v4457
    %v4976 = vpack.c.b16 %v4465, %v4458
    %v4977 = vpack.c.b16 %v4473, %v4466
    %v4978 = vpack.c.b16 %v4474, %v4467
    %v4979 = vpack.c.b16 %v4475, %v4468
    %v4980 = vpack.c.b16 %v4476, %v4469
    %v4981 = vpack.c.b16 %v4477, %v4470
    %v4982 = vpack.c.b16 %v4478, %v4471
    %v4983 = vpack.c.b16 %v4479, %v4472
    %v4984 = vpack.c.b16 %v4487, %v4480
    %v4985 = vpack.c.b16 %v4488, %v4481
    %v4986 = vpack.c.b16 %v4489, %v4482
    %v4987 = vpack.c.b16 %v4490, %v4483
    %v4988 = vpack.c.b16 %v4491, %v4484
    %v4989 = vpack.c.b16 %v4492, %v4485
    %v4990 = vpack.c.b16 %v4493, %v4486
    %v4991 = vpack.c.b16 %v4501, %v4494
    %v4992 = vpack.c.b16 %v4502, %v4495
    %v4993 = vpack.c.b16 %v4503, %v4496
    %v4994 = vpack.c.b16 %v4504, %v4497
    %v4995 = vpack.c.b16 %v4505, %v4498
    %v4996 = vpack.c.b16 %v4506, %v4499
    %v4997 = vpack.c.b16 %v4507, %v4500
    %v4998 = vpack.c.b16 %v4515, %v4508
    %v4999 = vpack.c.b16 %v4516, %v4509
    %v5000 = vpack.c.b16 %v4517, %v4510
    %v5001 = vpack.c.b16 %v4518, %v4511
    %v5002 = vpack.c.b16 %v4519, %v4512
    %v5003 = vpack.c.b16 %v4520, %v4513
    %v5004 = vpack.c.b16 %v4521, %v4514
    %v5005 = vpack.c.b16 %v4529, %v4522
    %v5006 = vpack.c.b16 %v4530, %v4523
    %v5007 = vpack.c.b16 %v4531, %v4524
    %v5008 = vpack.c.b16 %v4532, %v4525
    %v5009 = vpack.c.b16 %v4533, %v4526
    %v5010 = vpack.c.b16 %v4534, %v4527
    %v5011 = vpack.c.b16 %v4535, %v4528
    %v5012 = vpack.c.b16 %v4543, %v4536
    %v5013 = vpack.c.b16 %v4544, %v4537
    %v5014 = vpack.c.b16 %v4545, %v4538
    %v5015 = vpack.c.b16 %v4546, %v4539
    %v5016 = vpack.c.b16 %v4547, %v4540
    %v5017 = vpack.c.b16 %v4548, %v4541
    %v5018 = vpack.c.b16 %v4549, %v4542
    %v5019 = vpack.c.b16 %v4557, %v4550
    %v5020 = vpack.c.b16 %v4558, %v4551
    %v5021 = vpack.c.b16 %v4559, %v4552
    %v5022 = vpack.c.b16 %v4560, %v4553
    %v5023 = vpack.c.b16 %v4561, %v4554
    %v5024 = vpack.c.b16 %v4562, %v4555
    %v5025 = vpack.c.b16 %v4563, %v4556
    %v5026 = vpack.c.b16 %v4571, %v4564
    %v5027 = vpack.c.b16 %v4572, %v4565
    %v5028 = vpack.c.b16 %v4573, %v4566
    %v5029 = vpack.c.b16 %v4574, %v4567
    %v5030 = vpack.c.b16 %v4575, %v4568
    %v5031 = vpack.c.b16 %v4576, %v4569
    %v5032 = vpack.c.b16 %v4577, %v4570
    %v5033 = vpack.c.b16 %v4585, %v4578
    %v5034 = vpack.c.b16 %v4586, %v4579
    %v5035 = vpack.c.b16 %v4587, %v4580
    %v5036 = vpack.c.b16 %v4588, %v4581
    %v5037 = vpack.c.b16 %v4589, %v4582
    %v5038 = vpack.c.b16 %v4590, %v4583
    %v5039 = vpack.c.b16 %v4591, %v4584
    %v5040 = vpack.c.b16 %v4599, %v4592
    %v5041 = vpack.c.b16 %v4600, %v4593
    %v5042 = vpack.c.b16 %v4601, %v4594
    %v5043 = vpack.c.b16 %v4602, %v4595
    %v5044 = vpack.c.b16 %v4603, %v4596
    %v5045 = vpack.c.b16 %v4604, %v4597
    %v5046 = vpack.c.b16 %v4605, %v4598
    %v5047 = vpack.c.b16 %v4613, %v4606
    %v5048 = vpack.c.b16 %v4614, %v4607
    %v5049 = vpack.c.b16 %v4615, %v4608
    %v5050 = vpack.c.b16 %v4616, %v4609
    %v5051 = vpack.c.b16 %v4617, %v4610
    %v5052 = vpack.c.b16 %v4618, %v4611
    %v5053 = vpack.c.b16 %v4619, %v4612
    %v5054 = vpack.c.b16 %v4627, %v4620
    %v5055 = vpack.c.b16 %v4628, %v4621
    %v5056 = vpack.c.b16 %v4629, %v4622
    %v5057 = vpack.c.b16 %v4630, %v4623
    %v5058 = vpack.c.b16 %v4631, %v4624
    %v5059 = vpack.c.b16 %v4632, %v4625
    %v5060 = vpack.c.b16 %v4633, %v4626
    %v5061 = vpack.c.b16 %v4641, %v4634
    %v5062 = vpack.c.b16 %v4642, %v4635
    %v5063 = vpack.c.b16 %v4643, %v4636
    %v5064 = vpack.c.b16 %v4644, %v4637
    %v5065 = vpack.c.b16 %v4645, %v4638
    %v5066 = vpack.c.b16 %v4646, %v4639
    %v5067 = vpack.c.b16 %v4647, %v4640
    %v5068 = vpack.c.b16 %v4655, %v4648
    %v5069 = vpack.c.b16 %v4656, %v4649
    %v5070 = vpack.c.b16 %v4657, %v4650
    %v5071 = vpack.c.b16 %v4658, %v4651
    %v5072 = vpack.c.b16 %v4659, %v4652
    %v5073 = vpack.c.b16 %v4660, %v4653
    %v5074 = vpack.c.b16 %v4661, %v4654
    %v5075 = vpack.c.b16 %v4669, %v4662
    %v5076 = vpack.c.b16 %v4670, %v4663
    %v5077 = vpack.c.b16 %v4671, %v4664
    %v5078 = vpack.c.b16 %v4672, %v4665
    %v5079 = vpack.c.b16 %v4673, %v4666
    %v5080 = vpack.c.b16 %v4674, %v4667
    %v5081 = vpack.c.b16 %v4675, %v4668
    %v5082 = vpack.c.b16 %v4683, %v4676
    %v5083 = vpack.c.b16 %v4684, %v4677
    %v5084 = vpack.c.b16 %v4685, %v4678
    %v5085 = vpack.c.b16 %v4686, %v4679
    %v5086 = vpack.c.b16 %v4687, %v4680
    %v5087 = vpack.c.b16 %v4688, %v4681
    %v5088 = vpack.c.b16 %v4689, %v4682
    %v5089 = vpack.c.b16 %v4697, %v4690
    %v5090 = vpack.c.b16 %v4698, %v4691
    %v5091 = vpack.c.b16 %v4699, %v4692
    %v5092 = vpack.c.b16 %v4700, %v4693
    %v5093 = vpack.c.b16 %v4701, %v4694
    %v5094 = vpack.c.b16 %v4702, %v4695
    %v5095 = vpack.c.b16 %v4703, %v4696
    %5488 = vmatprep.subr.bf16.mxu0 %v4705
    %5489 = vmatpush1.bf16.msra.mxu0 %v4704
    %5490 = vmatprep.subr.bf16.mxu0 %v4712
    %5491 = vmatpush1.bf16.msra.mxu0 %v4711
    %5492 = vmatprep.subr.bf16.mxu0 %v4719
    %5493 = vmatpush1.bf16.msra.mxu0 %v4718
    %5494 = vmatprep.subr.bf16.mxu0 %v4726
    %5495 = vmatpush1.bf16.msra.mxu0 %v4725
    %5496 = vmatprep.subr.bf16.mxu0 %v4733
    %5497 = vmatpush1.bf16.msra.mxu0 %v4732
    %5498 = vmatprep.subr.bf16.mxu0 %v4740
    %5499 = vmatpush1.bf16.msra.mxu0 %v4739
    %5500 = vmatprep.subr.bf16.mxu0 %v4747
    %5501 = vmatpush1.bf16.msra.mxu0 %v4746
    %5502 = vmatprep.subr.bf16.mxu0 %v4754
    %5503 = vmatpush1.bf16.msra.mxu0 %v4753
    %5504 = vmatprep.subr.bf16.mxu0 %v4761
    %5505 = vmatpush1.bf16.msra.mxu0 %v4760
    %5506 = vmatprep.subr.bf16.mxu0 %v4768
    %5507 = vmatpush1.bf16.msra.mxu0 %v4767
    %5508 = vmatprep.subr.bf16.mxu0 %v4775
    %5509 = vmatpush1.bf16.msra.mxu0 %v4774
    %5510 = vmatprep.subr.bf16.mxu0 %v4782
    %5511 = vmatpush1.bf16.msra.mxu0 %v4781
    %5512 = vmatprep.subr.bf16.mxu0 %v4789
    %5513 = vmatpush1.bf16.msra.mxu0 %v4788
    %5514 = vmatprep.subr.bf16.mxu0 %v4796
    %5515 = vmatpush1.bf16.msra.mxu0 %v4795
    %5516 = vmatprep.subr.bf16.mxu0 %v4803
    %5517 = vmatpush1.bf16.msra.mxu0 %v4802
    %5518 = vmatprep.subr.bf16.mxu0 %v4810
    %5519 = vmatpush1.bf16.msra.mxu0 %v4809
    %5520 = vmatprep.mubr.bf16.mxu0 %v2981
    %5521 = vmatmul.mubr.bf16.gmra.mrb[0].mxu0 %v2980
    %v5522 = vpop.f32.mrb[0].mxu0
    %v5523 = vadd.f32 %v3440, %v5522
    %v5524 = vpop.f32.mrb[0].mxu0
    %v5525 = vadd.f32 %v3444, %v5524
    %v5526 = vpop.f32.mrb[0].mxu0
    %v5527 = vpop.f32.mrb[0].mxu0
    %5528 = vdwg.mxu0
    %5529 = vmatprep.subr.bf16.mxu0 %v4817
    %5530 = vmatpush1.bf16.msra.mxu0 %v4816
    %5531 = vmatprep.subr.bf16.mxu0 %v4824
    %5532 = vmatpush1.bf16.msra.mxu0 %v4823
    %5533 = vmatprep.subr.bf16.mxu0 %v4831
    %5534 = vmatpush1.bf16.msra.mxu0 %v4830
    %5535 = vmatprep.subr.bf16.mxu0 %v4838
    %5536 = vmatpush1.bf16.msra.mxu0 %v4837
    %5537 = vmatprep.subr.bf16.mxu0 %v4845
    %5538 = vmatpush1.bf16.msra.mxu0 %v4844
    %5539 = vmatprep.subr.bf16.mxu0 %v4852
    %5540 = vmatpush1.bf16.msra.mxu0 %v4851
    %5541 = vmatprep.subr.bf16.mxu0 %v4859
    %5542 = vmatpush1.bf16.msra.mxu0 %v4858
    %5543 = vmatprep.subr.bf16.mxu0 %v4866
    %5544 = vmatpush1.bf16.msra.mxu0 %v4865
    %5545 = vmatprep.subr.bf16.mxu0 %v4873
    %5546 = vmatpush1.bf16.msra.mxu0 %v4872
    %5547 = vmatprep.subr.bf16.mxu0 %v4880
    %5548 = vmatpush1.bf16.msra.mxu0 %v4879
    %5549 = vmatprep.subr.bf16.mxu0 %v4887
    %5550 = vmatpush1.bf16.msra.mxu0 %v4886
    %5551 = vmatprep.subr.bf16.mxu0 %v4894
    %5552 = vmatpush1.bf16.msra.mxu0 %v4893
    %5553 = vmatprep.subr.bf16.mxu0 %v4901
    %5554 = vmatpush1.bf16.msra.mxu0 %v4900
    %5555 = vmatprep.subr.bf16.mxu0 %v4908
    %5556 = vmatpush1.bf16.msra.mxu0 %v4907
    %5557 = vmatprep.subr.bf16.mxu0 %v4915
    %5558 = vmatpush1.bf16.msra.mxu0 %v4914
    %5559 = vmatprep.subr.bf16.mxu0 %v4922
    %5560 = vmatpush1.bf16.msra.mxu0 %v4921
    %5561 = vmatprep.mubr.bf16.mxu0 %v2983
    %5562 = vmatmul.mubr.bf16.gmra.mrb[0].mxu0 %v2982
    %v5563 = vpop.f32.mrb[0].mxu0
    %v5564 = vadd.f32 %v5523, %v5563
    %v5565 = vpop.f32.mrb[0].mxu0
    %v5566 = vadd.f32 %v5525, %v5565
    %v5567 = vpop.f32.mrb[0].mxu0
    %v5568 = vpop.f32.mrb[0].mxu0
    %5569 = vdwg.mxu0
    %5570 = vmatprep.subr.bf16.mxu0 %v4929
    %5571 = vmatpush1.bf16.msra.mxu0 %v4928
    %5572 = vmatprep.subr.bf16.mxu0 %v4936
    %5573 = vmatpush1.bf16.msra.mxu0 %v4935
    %5574 = vmatprep.subr.bf16.mxu0 %v4943
    %5575 = vmatpush1.bf16.msra.mxu0 %v4942
    %5576 = vmatprep.subr.bf16.mxu0 %v4950
    %5577 = vmatpush1.bf16.msra.mxu0 %v4949
    %5578 = vmatprep.subr.bf16.mxu0 %v4957
    %5579 = vmatpush1.bf16.msra.mxu0 %v4956
    %5580 = vmatprep.subr.bf16.mxu0 %v4964
    %5581 = vmatpush1.bf16.msra.mxu0 %v4963
    %5582 = vmatprep.subr.bf16.mxu0 %v4971
    %5583 = vmatpush1.bf16.msra.mxu0 %v4970
    %5584 = vmatprep.subr.bf16.mxu0 %v4978
    %5585 = vmatpush1.bf16.msra.mxu0 %v4977
    %5586 = vmatprep.subr.bf16.mxu0 %v4985
    %5587 = vmatpush1.bf16.msra.mxu0 %v4984
    %5588 = vmatprep.subr.bf16.mxu0 %v4992
    %5589 = vmatpush1.bf16.msra.mxu0 %v4991
    %5590 = vmatprep.subr.bf16.mxu0 %v4999
    %5591 = vmatpush1.bf16.msra.mxu0 %v4998
    %5592 = vmatprep.subr.bf16.mxu0 %v5006
    %5593 = vmatpush1.bf16.msra.mxu0 %v5005
    %5594 = vmatprep.subr.bf16.mxu0 %v5013
    %5595 = vmatpush1.bf16.msra.mxu0 %v5012
    %5596 = vmatprep.subr.bf16.mxu0 %v5020
    %5597 = vmatpush1.bf16.msra.mxu0 %v5019
    %5598 = vmatprep.subr.bf16.mxu0 %v5027
    %5599 = vmatpush1.bf16.msra.mxu0 %v5026
    %5600 = vmatprep.subr.bf16.mxu0 %v5034
    %5601 = vmatpush1.bf16.msra.mxu0 %v5033
    %5602 = vmatprep.mubr.bf16.mxu0 %v2985
    %5603 = vmatmul.mubr.bf16.gmra.mrb[0].mxu0 %v2984
    %v5604 = vpop.f32.mrb[0].mxu0
    %v5605 = vadd.f32 %v5564, %v5604
    %v5606 = vpop.f32.mrb[0].mxu0
    %v5607 = vadd.f32 %v5566, %v5606
    %v5608 = vpop.f32.mrb[0].mxu0
    %v5609 = vpop.f32.mrb[0].mxu0
    %5610 = vdwg.mxu0
    %5611 = vmatprep.subr.bf16.mxu0 %v5041
    %5612 = vmatpush1.bf16.msra.mxu0 %v5040
    %5613 = vmatprep.subr.bf16.mxu0 %v5048
    %5614 = vmatpush1.bf16.msra.mxu0 %v5047
    %5615 = vmatprep.subr.bf16.mxu0 %v5055
    %5616 = vmatpush1.bf16.msra.mxu0 %v5054
    %5617 = vmatprep.subr.bf16.mxu0 %v5062
    %5618 = vmatpush1.bf16.msra.mxu0 %v5061
    %5619 = vmatprep.subr.bf16.mxu0 %v5069
    %5620 = vmatpush1.bf16.msra.mxu0 %v5068
    %5621 = vmatprep.subr.bf16.mxu0 %v5076
    %5622 = vmatpush1.bf16.msra.mxu0 %v5075
    %5623 = vmatprep.subr.bf16.mxu0 %v5083
    %5624 = vmatpush1.bf16.msra.mxu0 %v5082
    %5625 = vmatprep.subr.bf16.mxu0 %v5090
    %5626 = vmatpush1.bf16.msra.mxu0 %v5089
    %5627 = vmatprep.subr.bf16.mxu0 0
    %5628 = vmatpush1.bf16.msra.mxu0 0
    %5629 = vmatprep.subr.bf16.mxu0 0
    %5630 = vmatpush1.bf16.msra.mxu0 0
    %5631 = vmatprep.subr.bf16.mxu0 0
    %5632 = vmatpush1.bf16.msra.mxu0 0
    %5633 = vmatprep.subr.bf16.mxu0 0
    %5634 = vmatpush1.bf16.msra.mxu0 0
    %5635 = vmatprep.subr.bf16.mxu0 0
    %5636 = vmatpush1.bf16.msra.mxu0 0
    %5637 = vmatprep.subr.bf16.mxu0 0
    %5638 = vmatpush1.bf16.msra.mxu0 0
    %5639 = vmatprep.subr.bf16.mxu0 0
    %5640 = vmatpush1.bf16.msra.mxu0 0
    %5641 = vmatprep.subr.bf16.mxu0 0
    %5642 = vmatpush1.bf16.msra.mxu0 0
    %5643 = vmatprep.mubr.bf16.mxu0 0
    %5644 = vmatmul.mubr.bf16.gmra.mrb[0].mxu0 %v2986
    %v5645 = vpop.f32.mrb[0].mxu0
    %v5646 = vadd.f32 %v5605, %v5645
    %v5647 = vpop.f32.mrb[0].mxu0
    %v5648 = vadd.f32 %v5607, %v5647
    %v5649 = vpop.f32.mrb[0].mxu0
    %v5650 = vpop.f32.mrb[0].mxu0
    %5651 = vdwg.mxu0
    %5652 = vmatprep.subr.bf16.mxu0 %v4707
    %5653 = vmatpush1.bf16.msra.mxu0 %v4706
    %5654 = vmatprep.subr.bf16.mxu0 %v4714
    %5655 = vmatpush1.bf16.msra.mxu0 %v4713
    %5656 = vmatprep.subr.bf16.mxu0 %v4721
    %5657 = vmatpush1.bf16.msra.mxu0 %v4720
    %5658 = vmatprep.subr.bf16.mxu0 %v4728
    %5659 = vmatpush1.bf16.msra.mxu0 %v4727
    %5660 = vmatprep.subr.bf16.mxu0 %v4735
    %5661 = vmatpush1.bf16.msra.mxu0 %v4734
    %5662 = vmatprep.subr.bf16.mxu0 %v4742
    %5663 = vmatpush1.bf16.msra.mxu0 %v4741
    %5664 = vmatprep.subr.bf16.mxu0 %v4749
    %5665 = vmatpush1.bf16.msra.mxu0 %v4748
    %5666 = vmatprep.subr.bf16.mxu0 %v4756
    %5667 = vmatpush1.bf16.msra.mxu0 %v4755
    %5668 = vmatprep.subr.bf16.mxu0 %v4763
    %5669 = vmatpush1.bf16.msra.mxu0 %v4762
    %5670 = vmatprep.subr.bf16.mxu0 %v4770
    %5671 = vmatpush1.bf16.msra.mxu0 %v4769
    %5672 = vmatprep.subr.bf16.mxu0 %v4777
    %5673 = vmatpush1.bf16.msra.mxu0 %v4776
    %5674 = vmatprep.subr.bf16.mxu0 %v4784
    %5675 = vmatpush1.bf16.msra.mxu0 %v4783
    %5676 = vmatprep.subr.bf16.mxu0 %v4791
    %5677 = vmatpush1.bf16.msra.mxu0 %v4790
    %5678 = vmatprep.subr.bf16.mxu0 %v4798
    %5679 = vmatpush1.bf16.msra.mxu0 %v4797
    %5680 = vmatprep.subr.bf16.mxu0 %v4805
    %5681 = vmatpush1.bf16.msra.mxu0 %v4804
    %5682 = vmatprep.subr.bf16.mxu0 %v4812
    %5683 = vmatpush1.bf16.msra.mxu0 %v4811
    %5684 = vmatprep.mubr.bf16.mxu0 %v2981
    %5685 = vmatmul.mubr.bf16.gmra.mrb[0].mxu0 %v2980
    %v5686 = vpop.f32.mrb[0].mxu0
    %v5687 = vadd.f32 %v3448, %v5686
    %v5688 = vpop.f32.mrb[0].mxu0
    %v5689 = vadd.f32 %v3452, %v5688
    %v5690 = vpop.f32.mrb[0].mxu0
    %v5691 = vpop.f32.mrb[0].mxu0
    %5692 = vdwg.mxu0
    %5693 = vmatprep.subr.bf16.mxu0 %v4819
    %5694 = vmatpush1.bf16.msra.mxu0 %v4818
    %5695 = vmatprep.subr.bf16.mxu0 %v4826
    %5696 = vmatpush1.bf16.msra.mxu0 %v4825
    %5697 = vmatprep.subr.bf16.mxu0 %v4833
    %5698 = vmatpush1.bf16.msra.mxu0 %v4832
    %5699 = vmatprep.subr.bf16.mxu0 %v4840
    %5700 = vmatpush1.bf16.msra.mxu0 %v4839
    %5701 = vmatprep.subr.bf16.mxu0 %v4847
    %5702 = vmatpush1.bf16.msra.mxu0 %v4846
    %5703 = vmatprep.subr.bf16.mxu0 %v4854
    %5704 = vmatpush1.bf16.msra.mxu0 %v4853
    %5705 = vmatprep.subr.bf16.mxu0 %v4861
    %5706 = vmatpush1.bf16.msra.mxu0 %v4860
    %5707 = vmatprep.subr.bf16.mxu0 %v4868
    %5708 = vmatpush1.bf16.msra.mxu0 %v4867
    %5709 = vmatprep.subr.bf16.mxu0 %v4875
    %5710 = vmatpush1.bf16.msra.mxu0 %v4874
    %5711 = vmatprep.subr.bf16.mxu0 %v4882
    %5712 = vmatpush1.bf16.msra.mxu0 %v4881
    %5713 = vmatprep.subr.bf16.mxu0 %v4889
    %5714 = vmatpush1.bf16.msra.mxu0 %v4888
    %5715 = vmatprep.subr.bf16.mxu0 %v4896
    %5716 = vmatpush1.bf16.msra.mxu0 %v4895
    %5717 = vmatprep.subr.bf16.mxu0 %v4903
    %5718 = vmatpush1.bf16.msra.mxu0 %v4902
    %5719 = vmatprep.subr.bf16.mxu0 %v4910
    %5720 = vmatpush1.bf16.msra.mxu0 %v4909
    %5721 = vmatprep.subr.bf16.mxu0 %v4917
    %5722 = vmatpush1.bf16.msra.mxu0 %v4916
    %5723 = vmatprep.subr.bf16.mxu0 %v4924
    %5724 = vmatpush1.bf16.msra.mxu0 %v4923
    %5725 = vmatprep.mubr.bf16.mxu0 %v2983
    %5726 = vmatmul.mubr.bf16.gmra.mrb[0].mxu0 %v2982
    %v5727 = vpop.f32.mrb[0].mxu0
    %v5728 = vadd.f32 %v5687, %v5727
    %v5729 = vpop.f32.mrb[0].mxu0
    %v5730 = vadd.f32 %v5689, %v5729
    %v5731 = vpop.f32.mrb[0].mxu0
    %v5732 = vpop.f32.mrb[0].mxu0
    %5733 = vdwg.mxu0
    %5734 = vmatprep.subr.bf16.mxu0 %v4931
    %5735 = vmatpush1.bf16.msra.mxu0 %v4930
    %5736 = vmatprep.subr.bf16.mxu0 %v4938
    %5737 = vmatpush1.bf16.msra.mxu0 %v4937
    %5738 = vmatprep.subr.bf16.mxu0 %v4945
    %5739 = vmatpush1.bf16.msra.mxu0 %v4944
    %5740 = vmatprep.subr.bf16.mxu0 %v4952
    %5741 = vmatpush1.bf16.msra.mxu0 %v4951
    %5742 = vmatprep.subr.bf16.mxu0 %v4959
    %5743 = vmatpush1.bf16.msra.mxu0 %v4958
    %5744 = vmatprep.subr.bf16.mxu0 %v4966
    %5745 = vmatpush1.bf16.msra.mxu0 %v4965
    %5746 = vmatprep.subr.bf16.mxu0 %v4973
    %5747 = vmatpush1.bf16.msra.mxu0 %v4972
    %5748 = vmatprep.subr.bf16.mxu0 %v4980
    %5749 = vmatpush1.bf16.msra.mxu0 %v4979
    %5750 = vmatprep.subr.bf16.mxu0 %v4987
    %5751 = vmatpush1.bf16.msra.mxu0 %v4986
    %5752 = vmatprep.subr.bf16.mxu0 %v4994
    %5753 = vmatpush1.bf16.msra.mxu0 %v4993
    %5754 = vmatprep.subr.bf16.mxu0 %v5001
    %5755 = vmatpush1.bf16.msra.mxu0 %v5000
    %5756 = vmatprep.subr.bf16.mxu0 %v5008
    %5757 = vmatpush1.bf16.msra.mxu0 %v5007
    %5758 = vmatprep.subr.bf16.mxu0 %v5015
    %5759 = vmatpush1.bf16.msra.mxu0 %v5014
    %5760 = vmatprep.subr.bf16.mxu0 %v5022
    %5761 = vmatpush1.bf16.msra.mxu0 %v5021
    %5762 = vmatprep.subr.bf16.mxu0 %v5029
    %5763 = vmatpush1.bf16.msra.mxu0 %v5028
    %5764 = vmatprep.subr.bf16.mxu0 %v5036
    %5765 = vmatpush1.bf16.msra.mxu0 %v5035
    %5766 = vmatprep.mubr.bf16.mxu0 %v2985
    %5767 = vmatmul.mubr.bf16.gmra.mrb[0].mxu0 %v2984
    %v5768 = vpop.f32.mrb[0].mxu0
    %v5769 = vadd.f32 %v5728, %v5768
    %v5770 = vpop.f32.mrb[0].mxu0
    %v5771 = vadd.f32 %v5730, %v5770
    %v5772 = vpop.f32.mrb[0].mxu0
    %v5773 = vpop.f32.mrb[0].mxu0
    %5774 = vdwg.mxu0
    %5775 = vmatprep.subr.bf16.mxu0 %v5043
    %5776 = vmatpush1.bf16.msra.mxu0 %v5042
    %5777 = vmatprep.subr.bf16.mxu0 %v5050
    %5778 = vmatpush1.bf16.msra.mxu0 %v5049
    %5779 = vmatprep.subr.bf16.mxu0 %v5057
    %5780 = vmatpush1.bf16.msra.mxu0 %v5056
    %5781 = vmatprep.subr.bf16.mxu0 %v5064
    %5782 = vmatpush1.bf16.msra.mxu0 %v5063
    %5783 = vmatprep.subr.bf16.mxu0 %v5071
    %5784 = vmatpush1.bf16.msra.mxu0 %v5070
    %5785 = vmatprep.subr.bf16.mxu0 %v5078
    %5786 = vmatpush1.bf16.msra.mxu0 %v5077
    %5787 = vmatprep.subr.bf16.mxu0 %v5085
    %5788 = vmatpush1.bf16.msra.mxu0 %v5084
    %5789 = vmatprep.subr.bf16.mxu0 %v5092
    %5790 = vmatpush1.bf16.msra.mxu0 %v5091
    %5791 = vmatprep.subr.bf16.mxu0 0
    %5792 = vmatpush1.bf16.msra.mxu0 0
    %5793 = vmatprep.subr.bf16.mxu0 0
    %5794 = vmatpush1.bf16.msra.mxu0 0
    %5795 = vmatprep.subr.bf16.mxu0 0
    %5796 = vmatpush1.bf16.msra.mxu0 0
    %5797 = vmatprep.subr.bf16.mxu0 0
    %5798 = vmatpush1.bf16.msra.mxu0 0
    %5799 = vmatprep.subr.bf16.mxu0 0
    %5800 = vmatpush1.bf16.msra.mxu0 0
    %5801 = vmatprep.subr.bf16.mxu0 0
    %5802 = vmatpush1.bf16.msra.mxu0 0
    %5803 = vmatprep.subr.bf16.mxu0 0
    %5804 = vmatpush1.bf16.msra.mxu0 0
    %5805 = vmatprep.subr.bf16.mxu0 0
    %5806 = vmatpush1.bf16.msra.mxu0 0
    %5807 = vmatprep.mubr.bf16.mxu0 0
    %5808 = vmatmul.mubr.bf16.gmra.mrb[0].mxu0 %v2986
    %v5809 = vpop.f32.mrb[0].mxu0
    %v5810 = vadd.f32 %v5769, %v5809
    %v5811 = vpop.f32.mrb[0].mxu0
    %v5812 = vadd.f32 %v5771, %v5811
    %v5813 = vpop.f32.mrb[0].mxu0
    %v5814 = vpop.f32.mrb[0].mxu0
    %5815 = vdwg.mxu0
    %5816 = vmatprep.subr.bf16.mxu0 %v4709
    %5817 = vmatpush1.bf16.msra.mxu0 %v4708
    %5818 = vmatprep.subr.bf16.mxu0 %v4716
    %5819 = vmatpush1.bf16.msra.mxu0 %v4715
    %5820 = vmatprep.subr.bf16.mxu0 %v4723
    %5821 = vmatpush1.bf16.msra.mxu0 %v4722
    %5822 = vmatprep.subr.bf16.mxu0 %v4730
    %5823 = vmatpush1.bf16.msra.mxu0 %v4729
    %5824 = vmatprep.subr.bf16.mxu0 %v4737
    %5825 = vmatpush1.bf16.msra.mxu0 %v4736
    %5826 = vmatprep.subr.bf16.mxu0 %v4744
    %5827 = vmatpush1.bf16.msra.mxu0 %v4743
    %5828 = vmatprep.subr.bf16.mxu0 %v4751
    %5829 = vmatpush1.bf16.msra.mxu0 %v4750
    %5830 = vmatprep.subr.bf16.mxu0 %v4758
    %5831 = vmatpush1.bf16.msra.mxu0 %v4757
    %5832 = vmatprep.subr.bf16.mxu0 %v4765
    %5833 = vmatpush1.bf16.msra.mxu0 %v4764
    %5834 = vmatprep.subr.bf16.mxu0 %v4772
    %5835 = vmatpush1.bf16.msra.mxu0 %v4771
    %5836 = vmatprep.subr.bf16.mxu0 %v4779
    %5837 = vmatpush1.bf16.msra.mxu0 %v4778
    %5838 = vmatprep.subr.bf16.mxu0 %v4786
    %5839 = vmatpush1.bf16.msra.mxu0 %v4785
    %5840 = vmatprep.subr.bf16.mxu0 %v4793
    %5841 = vmatpush1.bf16.msra.mxu0 %v4792
    %5842 = vmatprep.subr.bf16.mxu0 %v4800
    %5843 = vmatpush1.bf16.msra.mxu0 %v4799
    %5844 = vmatprep.subr.bf16.mxu0 %v4807
    %5845 = vmatpush1.bf16.msra.mxu0 %v4806
    %5846 = vmatprep.subr.bf16.mxu0 %v4814
    %5847 = vmatpush1.bf16.msra.mxu0 %v4813
    %5848 = vmatprep.mubr.bf16.mxu0 %v2981
    %5849 = vmatmul.mubr.bf16.gmra.mrb[0].mxu0 %v2980
    %v5850 = vpop.f32.mrb[0].mxu0
    %v5851 = vadd.f32 %v3456, %v5850
    %v5852 = vpop.f32.mrb[0].mxu0
    %v5853 = vadd.f32 %v3460, %v5852
    %v5854 = vpop.f32.mrb[0].mxu0
    %v5855 = vpop.f32.mrb[0].mxu0
    %5856 = vdwg.mxu0
    %5857 = vmatprep.subr.bf16.mxu0 %v4821
    %5858 = vmatpush1.bf16.msra.mxu0 %v4820
    %5859 = vmatprep.subr.bf16.mxu0 %v4828
    %5860 = vmatpush1.bf16.msra.mxu0 %v4827
    %5861 = vmatprep.subr.bf16.mxu0 %v4835
    %5862 = vmatpush1.bf16.msra.mxu0 %v4834
    %5863 = vmatprep.subr.bf16.mxu0 %v4842
    %5864 = vmatpush1.bf16.msra.mxu0 %v4841
    %5865 = vmatprep.subr.bf16.mxu0 %v4849
    %5866 = vmatpush1.bf16.msra.mxu0 %v4848
    %5867 = vmatprep.subr.bf16.mxu0 %v4856
    %5868 = vmatpush1.bf16.msra.mxu0 %v4855
    %5869 = vmatprep.subr.bf16.mxu0 %v4863
    %5870 = vmatpush1.bf16.msra.mxu0 %v4862
    %5871 = vmatprep.subr.bf16.mxu0 %v4870
    %5872 = vmatpush1.bf16.msra.mxu0 %v4869
    %5873 = vmatprep.subr.bf16.mxu0 %v4877
    %5874 = vmatpush1.bf16.msra.mxu0 %v4876
    %5875 = vmatprep.subr.bf16.mxu0 %v4884
    %5876 = vmatpush1.bf16.msra.mxu0 %v4883
    %5877 = vmatprep.subr.bf16.mxu0 %v4891
    %5878 = vmatpush1.bf16.msra.mxu0 %v4890
    %5879 = vmatprep.subr.bf16.mxu0 %v4898
    %5880 = vmatpush1.bf16.msra.mxu0 %v4897
    %5881 = vmatprep.subr.bf16.mxu0 %v4905
    %5882 = vmatpush1.bf16.msra.mxu0 %v4904
    %5883 = vmatprep.subr.bf16.mxu0 %v4912
    %5884 = vmatpush1.bf16.msra.mxu0 %v4911
    %5885 = vmatprep.subr.bf16.mxu0 %v4919
    %5886 = vmatpush1.bf16.msra.mxu0 %v4918
    %5887 = vmatprep.subr.bf16.mxu0 %v4926
    %5888 = vmatpush1.bf16.msra.mxu0 %v4925
    %5889 = vmatprep.mubr.bf16.mxu0 %v2983
    %5890 = vmatmul.mubr.bf16.gmra.mrb[0].mxu0 %v2982
    %v5891 = vpop.f32.mrb[0].mxu0
    %v5892 = vadd.f32 %v5851, %v5891
    %v5893 = vpop.f32.mrb[0].mxu0
    %v5894 = vadd.f32 %v5853, %v5893
    %v5895 = vpop.f32.mrb[0].mxu0
    %v5896 = vpop.f32.mrb[0].mxu0
    %5897 = vdwg.mxu0
    %5898 = vmatprep.subr.bf16.mxu0 %v4933
    %5899 = vmatpush1.bf16.msra.mxu0 %v4932
    %5900 = vmatprep.subr.bf16.mxu0 %v4940
    %5901 = vmatpush1.bf16.msra.mxu0 %v4939
    %5902 = vmatprep.subr.bf16.mxu0 %v4947
    %5903 = vmatpush1.bf16.msra.mxu0 %v4946
    %5904 = vmatprep.subr.bf16.mxu0 %v4954
    %5905 = vmatpush1.bf16.msra.mxu0 %v4953
    %5906 = vmatprep.subr.bf16.mxu0 %v4961
    %5907 = vmatpush1.bf16.msra.mxu0 %v4960
    %5908 = vmatprep.subr.bf16.mxu0 %v4968
    %5909 = vmatpush1.bf16.msra.mxu0 %v4967
    %5910 = vmatprep.subr.bf16.mxu0 %v4975
    %5911 = vmatpush1.bf16.msra.mxu0 %v4974
    %5912 = vmatprep.subr.bf16.mxu0 %v4982
    %5913 = vmatpush1.bf16.msra.mxu0 %v4981
    %5914 = vmatprep.subr.bf16.mxu0 %v4989
    %5915 = vmatpush1.bf16.msra.mxu0 %v4988
    %5916 = vmatprep.subr.bf16.mxu0 %v4996
    %5917 = vmatpush1.bf16.msra.mxu0 %v4995
    %5918 = vmatprep.subr.bf16.mxu0 %v5003
    %5919 = vmatpush1.bf16.msra.mxu0 %v5002
    %5920 = vmatprep.subr.bf16.mxu0 %v5010
    %5921 = vmatpush1.bf16.msra.mxu0 %v5009
    %5922 = vmatprep.subr.bf16.mxu0 %v5017
    %5923 = vmatpush1.bf16.msra.mxu0 %v5016
    %5924 = vmatprep.subr.bf16.mxu0 %v5024
    %5925 = vmatpush1.bf16.msra.mxu0 %v5023
    %5926 = vmatprep.subr.bf16.mxu0 %v5031
    %5927 = vmatpush1.bf16.msra.mxu0 %v5030
    %5928 = vmatprep.subr.bf16.mxu0 %v5038
    %5929 = vmatpush1.bf16.msra.mxu0 %v5037
    %5930 = vmatprep.mubr.bf16.mxu0 %v2985
    %5931 = vmatmul.mubr.bf16.gmra.mrb[0].mxu0 %v2984
    %v5932 = vpop.f32.mrb[0].mxu0
    %v5933 = vadd.f32 %v5892, %v5932
    %v5934 = vpop.f32.mrb[0].mxu0
    %v5935 = vadd.f32 %v5894, %v5934
    %v5936 = vpop.f32.mrb[0].mxu0
    %v5937 = vpop.f32.mrb[0].mxu0
    %5938 = vdwg.mxu0
    %5939 = vmatprep.subr.bf16.mxu0 %v5045
    %5940 = vmatpush1.bf16.msra.mxu0 %v5044
    %5941 = vmatprep.subr.bf16.mxu0 %v5052
    %5942 = vmatpush1.bf16.msra.mxu0 %v5051
    %5943 = vmatprep.subr.bf16.mxu0 %v5059
    %5944 = vmatpush1.bf16.msra.mxu0 %v5058
    %5945 = vmatprep.subr.bf16.mxu0 %v5066
    %5946 = vmatpush1.bf16.msra.mxu0 %v5065
    %5947 = vmatprep.subr.bf16.mxu0 %v5073
    %5948 = vmatpush1.bf16.msra.mxu0 %v5072
    %5949 = vmatprep.subr.bf16.mxu0 %v5080
    %5950 = vmatpush1.bf16.msra.mxu0 %v5079
    %5951 = vmatprep.subr.bf16.mxu0 %v5087
    %5952 = vmatpush1.bf16.msra.mxu0 %v5086
    %5953 = vmatprep.subr.bf16.mxu0 %v5094
    %5954 = vmatpush1.bf16.msra.mxu0 %v5093
    %5955 = vmatprep.subr.bf16.mxu0 0
    %5956 = vmatpush1.bf16.msra.mxu0 0
    %5957 = vmatprep.subr.bf16.mxu0 0
    %5958 = vmatpush1.bf16.msra.mxu0 0
    %5959 = vmatprep.subr.bf16.mxu0 0
    %5960 = vmatpush1.bf16.msra.mxu0 0
    %5961 = vmatprep.subr.bf16.mxu0 0
    %5962 = vmatpush1.bf16.msra.mxu0 0
    %5963 = vmatprep.subr.bf16.mxu0 0
    %5964 = vmatpush1.bf16.msra.mxu0 0
    %5965 = vmatprep.subr.bf16.mxu0 0
    %5966 = vmatpush1.bf16.msra.mxu0 0
    %5967 = vmatprep.subr.bf16.mxu0 0
    %5968 = vmatpush1.bf16.msra.mxu0 0
    %5969 = vmatprep.subr.bf16.mxu0 0
    %5970 = vmatpush1.bf16.msra.mxu0 0
    %5971 = vmatprep.mubr.bf16.mxu0 0
    %5972 = vmatmul.mubr.bf16.gmra.mrb[0].mxu0 %v2986
    %v5973 = vpop.f32.mrb[0].mxu0
    %v5974 = vadd.f32 %v5933, %v5973
    %v5975 = vpop.f32.mrb[0].mxu0
    %v5976 = vadd.f32 %v5935, %v5975
    %v5977 = vpop.f32.mrb[0].mxu0
    %v5978 = vpop.f32.mrb[0].mxu0
    %5979 = vdwg.mxu0
    %5980 = vmatprep.subr.bf16.mxu0 0
    %5981 = vmatpush1.bf16.msra.mxu0 %v4710
    %5982 = vmatprep.subr.bf16.mxu0 0
    %5983 = vmatpush1.bf16.msra.mxu0 %v4717
    %5984 = vmatprep.subr.bf16.mxu0 0
    %5985 = vmatpush1.bf16.msra.mxu0 %v4724
    %5986 = vmatprep.subr.bf16.mxu0 0
    %5987 = vmatpush1.bf16.msra.mxu0 %v4731
    %5988 = vmatprep.subr.bf16.mxu0 0
    %5989 = vmatpush1.bf16.msra.mxu0 %v4738
    %5990 = vmatprep.subr.bf16.mxu0 0
    %5991 = vmatpush1.bf16.msra.mxu0 %v4745
    %5992 = vmatprep.subr.bf16.mxu0 0
    %5993 = vmatpush1.bf16.msra.mxu0 %v4752
    %5994 = vmatprep.subr.bf16.mxu0 0
    %5995 = vmatpush1.bf16.msra.mxu0 %v4759
    %5996 = vmatprep.subr.bf16.mxu0 0
    %5997 = vmatpush1.bf16.msra.mxu0 %v4766
    %5998 = vmatprep.subr.bf16.mxu0 0
    %5999 = vmatpush1.bf16.msra.mxu0 %v4773
    %6000 = vmatprep.subr.bf16.mxu0 0
    %6001 = vmatpush1.bf16.msra.mxu0 %v4780
    %6002 = vmatprep.subr.bf16.mxu0 0
    %6003 = vmatpush1.bf16.msra.mxu0 %v4787
    %6004 = vmatprep.subr.bf16.mxu0 0
    %6005 = vmatpush1.bf16.msra.mxu0 %v4794
    %6006 = vmatprep.subr.bf16.mxu0 0
    %6007 = vmatpush1.bf16.msra.mxu0 %v4801
    %6008 = vmatprep.subr.bf16.mxu0 0
    %6009 = vmatpush1.bf16.msra.mxu0 %v4808
    %6010 = vmatprep.subr.bf16.mxu0 0
    %6011 = vmatpush1.bf16.msra.mxu0 %v4815
    %6012 = vmatprep.mubr.bf16.mxu0 %v2981
    %6013 = vmatmul.mubr.bf16.gmra.mrb[0].mxu0 %v2980
    %v6014 = vpop.f32.mrb[0].mxu0
    %v6015 = vadd.f32 %v3464, %v6014
    %v6016 = vpop.f32.mrb[0].mxu0
    %v6017 = vpop.f32.mrb[0].mxu0
    %v6018 = vpop.f32.mrb[0].mxu0
    %6019 = vdwg.mxu0
    %6020 = vmatprep.subr.bf16.mxu0 0
    %6021 = vmatpush1.bf16.msra.mxu0 %v4822
    %6022 = vmatprep.subr.bf16.mxu0 0
    %6023 = vmatpush1.bf16.msra.mxu0 %v4829
    %6024 = vmatprep.subr.bf16.mxu0 0
    %6025 = vmatpush1.bf16.msra.mxu0 %v4836
    %6026 = vmatprep.subr.bf16.mxu0 0
    %6027 = vmatpush1.bf16.msra.mxu0 %v4843
    %6028 = vmatprep.subr.bf16.mxu0 0
    %6029 = vmatpush1.bf16.msra.mxu0 %v4850
    %6030 = vmatprep.subr.bf16.mxu0 0
    %6031 = vmatpush1.bf16.msra.mxu0 %v4857
    %6032 = vmatprep.subr.bf16.mxu0 0
    %6033 = vmatpush1.bf16.msra.mxu0 %v4864
    %6034 = vmatprep.subr.bf16.mxu0 0
    %6035 = vmatpush1.bf16.msra.mxu0 %v4871
    %6036 = vmatprep.subr.bf16.mxu0 0
    %6037 = vmatpush1.bf16.msra.mxu0 %v4878
    %6038 = vmatprep.subr.bf16.mxu0 0
    %6039 = vmatpush1.bf16.msra.mxu0 %v4885
    %6040 = vmatprep.subr.bf16.mxu0 0
    %6041 = vmatpush1.bf16.msra.mxu0 %v4892
    %6042 = vmatprep.subr.bf16.mxu0 0
    %6043 = vmatpush1.bf16.msra.mxu0 %v4899
    %6044 = vmatprep.subr.bf16.mxu0 0
    %6045 = vmatpush1.bf16.msra.mxu0 %v4906
    %6046 = vmatprep.subr.bf16.mxu0 0
    %6047 = vmatpush1.bf16.msra.mxu0 %v4913
    %6048 = vmatprep.subr.bf16.mxu0 0
    %6049 = vmatpush1.bf16.msra.mxu0 %v4920
    %6050 = vmatprep.subr.bf16.mxu0 0
    %6051 = vmatpush1.bf16.msra.mxu0 %v4927
    %6052 = vmatprep.mubr.bf16.mxu0 %v2983
    %6053 = vmatmul.mubr.bf16.gmra.mrb[0].mxu0 %v2982
    %v6054 = vpop.f32.mrb[0].mxu0
    %v6055 = vadd.f32 %v6015, %v6054
    %v6056 = vpop.f32.mrb[0].mxu0
    %v6057 = vpop.f32.mrb[0].mxu0
    %v6058 = vpop.f32.mrb[0].mxu0
    %6059 = vdwg.mxu0
    %6060 = vmatprep.subr.bf16.mxu0 0
    %6061 = vmatpush1.bf16.msra.mxu0 %v4934
    %6062 = vmatprep.subr.bf16.mxu0 0
    %6063 = vmatpush1.bf16.msra.mxu0 %v4941
    %6064 = vmatprep.subr.bf16.mxu0 0
    %6065 = vmatpush1.bf16.msra.mxu0 %v4948
    %6066 = vmatprep.subr.bf16.mxu0 0
    %6067 = vmatpush1.bf16.msra.mxu0 %v4955
    %6068 = vmatprep.subr.bf16.mxu0 0
    %6069 = vmatpush1.bf16.msra.mxu0 %v4962
    %6070 = vmatprep.subr.bf16.mxu0 0
    %6071 = vmatpush1.bf16.msra.mxu0 %v4969
    %6072 = vmatprep.subr.bf16.mxu0 0
    %6073 = vmatpush1.bf16.msra.mxu0 %v4976
    %6074 = vmatprep.subr.bf16.mxu0 0
    %6075 = vmatpush1.bf16.msra.mxu0 %v4983
    %6076 = vmatprep.subr.bf16.mxu0 0
    %6077 = vmatpush1.bf16.msra.mxu0 %v4990
    %6078 = vmatprep.subr.bf16.mxu0 0
    %6079 = vmatpush1.bf16.msra.mxu0 %v4997
    %6080 = vmatprep.subr.bf16.mxu0 0
    %6081 = vmatpush1.bf16.msra.mxu0 %v5004
    %6082 = vmatprep.subr.bf16.mxu0 0
    %6083 = vmatpush1.bf16.msra.mxu0 %v5011
    %6084 = vmatprep.subr.bf16.mxu0 0
    %6085 = vmatpush1.bf16.msra.mxu0 %v5018
    %6086 = vmatprep.subr.bf16.mxu0 0
    %6087 = vmatpush1.bf16.msra.mxu0 %v5025
    %6088 = vmatprep.subr.bf16.mxu0 0
    %6089 = vmatpush1.bf16.msra.mxu0 %v5032
    %6090 = vmatprep.subr.bf16.mxu0 0
    %6091 = vmatpush1.bf16.msra.mxu0 %v5039
    %6092 = vmatprep.mubr.bf16.mxu0 %v2985
    %6093 = vmatmul.mubr.bf16.gmra.mrb[0].mxu0 %v2984
    %v6094 = vpop.f32.mrb[0].mxu0
    %v6095 = vadd.f32 %v6055, %v6094
    %v6096 = vpop.f32.mrb[0].mxu0
    %v6097 = vpop.f32.mrb[0].mxu0
    %v6098 = vpop.f32.mrb[0].mxu0
    %6099 = vdwg.mxu0
    %6100 = vmatprep.subr.bf16.mxu0 0
    %6101 = vmatpush1.bf16.msra.mxu0 %v5046
    %6102 = vmatprep.subr.bf16.mxu0 0
    %6103 = vmatpush1.bf16.msra.mxu0 %v5053
    %6104 = vmatprep.subr.bf16.mxu0 0
    %6105 = vmatpush1.bf16.msra.mxu0 %v5060
    %6106 = vmatprep.subr.bf16.mxu0 0
    %6107 = vmatpush1.bf16.msra.mxu0 %v5067
    %6108 = vmatprep.subr.bf16.mxu0 0
    %6109 = vmatpush1.bf16.msra.mxu0 %v5074
    %6110 = vmatprep.subr.bf16.mxu0 0
    %6111 = vmatpush1.bf16.msra.mxu0 %v5081
    %6112 = vmatprep.subr.bf16.mxu0 0
    %6113 = vmatpush1.bf16.msra.mxu0 %v5088
    %6114 = vmatprep.subr.bf16.mxu0 0
    %6115 = vmatpush1.bf16.msra.mxu0 %v5095
    %6116 = vmatprep.subr.bf16.mxu0 0
    %6117 = vmatpush1.bf16.msra.mxu0 0
    %6118 = vmatprep.subr.bf16.mxu0 0
    %6119 = vmatpush1.bf16.msra.mxu0 0
    %6120 = vmatprep.subr.bf16.mxu0 0
    %6121 = vmatpush1.bf16.msra.mxu0 0
    %6122 = vmatprep.subr.bf16.mxu0 0
    %6123 = vmatpush1.bf16.msra.mxu0 0
    %6124 = vmatprep.subr.bf16.mxu0 0
    %6125 = vmatpush1.bf16.msra.mxu0 0
    %6126 = vmatprep.subr.bf16.mxu0 0
    %6127 = vmatpush1.bf16.msra.mxu0 0
    %6128 = vmatprep.subr.bf16.mxu0 0
    %6129 = vmatpush1.bf16.msra.mxu0 0
    %6130 = vmatprep.subr.bf16.mxu0 0
    %6131 = vmatpush1.bf16.msra.mxu0 0
    %6132 = vmatprep.mubr.bf16.mxu0 0
    %6133 = vmatmul.mubr.bf16.gmra.mrb[0].mxu0 %v2986
    %v6134 = vpop.f32.mrb[0].mxu0
    %v6135 = vadd.f32 %v6095, %v6134
    %v6136 = vpop.f32.mrb[0].mxu0
    %v6137 = vpop.f32.mrb[0].mxu0
    %v6138 = vpop.f32.mrb[0].mxu0
    %6139 = vdwg.mxu0
    %v6147 = vcombine.low %v5646, %v5648
    %v6148 = vcombine.low %v5810, %v5812
    %v6150 = vunpack.c.l.s4 1983009808
    %v6151 = vunpack.c.0.s8 %v6150
    %v6152 = vlaneseq
    %v6153 = vshrl.u32 %v6152, 7
    %v6154 = vsub.s32 %v6151, %v6153
    %v6155 = vrot.slane %v6147, %v6154
    %v6157 = vunpack.c.l.s4 1983009808
    %v6158 = vunpack.c.0.s8 %v6157
    %v6159 = vlaneseq
    %v6160 = vshrl.u32 %v6159, 7
    %v6161 = vsub.s32 %v6158, %v6160
    %v6162 = vrot.slane %v6148, %v6161
    %v6163 = vcombine.low %v6155, %v6162
    %v6164 = vcombine.low %v5974, %v5976
    %v6166 = vunpack.c.l.s4 1983009808
    %v6167 = vunpack.c.0.s8 %v6166
    %v6168 = vlaneseq
    %v6169 = vshrl.u32 %v6168, 7
    %v6170 = vsub.s32 %v6167, %v6169
    %v6171 = vrot.slane %v6164, %v6170
    %v6173 = vunpack.c.l.s4 1983009808
    %v6174 = vunpack.c.0.s8 %v6173
    %v6175 = vlaneseq
    %v6176 = vshrl.u32 %v6175, 7
    %v6177 = vsub.s32 %v6174, %v6176
    %v6178 = vrot.slane %v6135, %v6177
    %v6179 = vcombine.low %v6171, %v6178
    %6182 = vst [vmem:[#allocation10] sm:$0xff] %v6163
    %6183 = vst [vmem:[#allocation10 + $0x8] sm:$0x3f] %v6179
    // Predicated region
    $region38: #{small_repr_net_forward.1} parent=1 // pred_check
      _
    $region39: #{small_repr_net_forward.1} parent=1 // pred_check_branch
      %6185 = sbr.rel (0) target = $region41
    $region40: #{small_repr_net_forward.1} parent=1 // pred_region
      %s6187 = ssub.s32 224, 224
      %6188 = vsyncadd [#allocation4], %s6187
      %s6190 = sshll.u32 [#allocation10], 4
      %s6191 = int_to_ptr.vmem [resolvable:$true] %s6190
      %6193 = dma.vmem_to_hbm [thread:$0]  %s6191, 224, %s5, [#allocation4]
    $region41: #{small_repr_net_forward.1} parent=1 // pred_fallthru
      _
    // Predicated region
    $region42: #{small_repr_net_forward.1} parent=1 // pred_check
      _
    $region43: #{small_repr_net_forward.1} parent=1 // pred_check_branch
      %6195 = sbr.rel (0) target = $region45
    $region44: #{small_repr_net_forward.1} parent=1 // pred_region
      %6196 = dma.done [#allocation4], 224
    $region45: #{small_repr_net_forward.1} parent=1 // pred_fallthru
      _
    %6197 = vsyncpa [#allocation3], 1
    %6198 = vsyncpa [#allocation6], 1
    %6199 = vsyncpa [#allocation9], 1
    %6200 = vsyncpa [#allocation4], 1

</llo_original>
